<compile_context>
chip_gen: v5e
topology: v5e:2x2
jax: 0.10.0
libtpu: 0.0.40
codegen_flags: <defaults>
</compile_context>

<pallas_src>
import math
from functools import partial

import jax
import jax.numpy as jnp
from jax.experimental import pallas as pl
from jax.experimental.pallas import tpu as pltpu

NEG_SLOPE = 0.01   # F.leaky_relu default negative_slope
BN_EPS = 1e-5      # nn.BatchNorm1d default eps
IN_FEATURES = 9
LANES = 128        # TPU lane width; fc4 output padded 1 -> LANES, batch packed into lanes


def _bn_lrelu(h, gamma, beta, ones_row, inv_n):
    """BatchNorm1d training-mode forward (biased batch stats) + leaky_relu.

    Batch-axis sums run on the MXU (ones-row matmul) instead of cross-sublane
    XLU reductions; normalize / activation stay f32 (v5e-safe); returns bf16
    so the next matmul needs no extra operand cast.
    """
    s1 = jnp.dot(ones_row, h, preferred_element_type=jnp.float32)      # (1, N) sum
    s2 = jnp.dot(ones_row, h * h, preferred_element_type=jnp.float32)  # (1, N) sum of squares
    mean = s1 * inv_n
    var = jnp.maximum(s2 * inv_n - mean * mean, 0.0)   # clamp f32 cancellation
    scale = jax.lax.rsqrt(var + BN_EPS) * gamma        # fold gamma into the (1, N) scale
    hn = (h - mean) * scale + beta
    hn = jnp.maximum(hn, NEG_SLOPE * hn)               # leaky_relu: one VALU op
    return hn.astype(jnp.bfloat16)                     # single cast feeding the next MXU op


def mlp_kernel(x_ref,
               w1_ref, g1_ref, be1_ref,
               w2_ref, g2_ref, be2_ref,
               w3_ref, g3_ref, be3_ref,
               w4_ref, b4_ref,
               o_ref):
    n_rows = x_ref.shape[0]                         # static batch-tile size
    inv_n = 1.0 / n_rows
    ones_row = jnp.ones((1, n_rows), jnp.float32)   # MXU batch-axis reducer

    # fc1..fc3 biases omitted: exactly cancelled by BN mean subtraction.
    h = jnp.dot(x_ref[...].astype(jnp.bfloat16), w1_ref[...],
                preferred_element_type=jnp.float32)
    h = _bn_lrelu(h, g1_ref[...], be1_ref[...], ones_row, inv_n)
    # TODO(synk): dropout(0.3) identity here and after the next two layers.

    h = jnp.dot(h, w2_ref[...], preferred_element_type=jnp.float32)
    h = _bn_lrelu(h, g2_ref[...], be2_ref[...], ones_row, inv_n)

    h = jnp.dot(h, w3_ref[...], preferred_element_type=jnp.float32)
    h = _bn_lrelu(h, g3_ref[...], be3_ref[...], ones_row, inv_n)

    # fc4: weight/bias zero-padded 1 -> LANES columns; only column 0 is live.
    h4 = jnp.dot(h, w4_ref[...], preferred_element_type=jnp.float32) + b4_ref[...]

    # Output compaction: pad columns are exactly zero, so a lane-sum of each
    # (LANES, LANES) sub-block moves the LANES batch logits into lanes:
    #   logits[i, j] = h4[i*LANES + j, 0]
    nb = n_rows // LANES
    logits = jnp.sum(h4.reshape(nb, LANES, LANES), axis=-1)   # (nb, LANES)
    o_ref[...] = jax.nn.sigmoid(logits)                       # lane-dense store


@partial(jax.jit, static_argnames=("block_b",))
def net_forward(x, params, *, block_b=1024):
    """x: (B, 9) float32 with B a multiple of 128.  Returns (B, 1) float32."""
    B = x.shape[0]
    block_b = min(block_b, B)
    if block_b % LANES != 0 or B % block_b != 0:
        raise ValueError(
            f"batch {B} must be a multiple of block_b={block_b}, and block_b "
            f"must be a multiple of {LANES}")
    n_blocks = B // block_b

    # fc1..fc3 biases are mathematically inert under batch-stat BN, so they
    # are neither DMA'd nor added.  Only fc4's bias matters.
    weight_args = (params["w1"], params["g1"], params["be1"],
                   params["w2"], params["g2"], params["be2"],
                   params["w3"], params["g3"], params["be3"],
                   params["w4"], params["b4"])

    def resident(a):
        # Grid-invariant index_map -> VMEM-resident across the whole grid.
        return pl.BlockSpec(a.shape, lambda i: (0, 0))

    out = pl.pallas_call(
        mlp_kernel,
        out_shape=jax.ShapeDtypeStruct((B // LANES, LANES), jnp.float32),
        grid=(n_blocks,),
        in_specs=[pl.BlockSpec((block_b, IN_FEATURES), lambda i: (i, 0))]
                 + [resident(a) for a in weight_args],
        out_specs=pl.BlockSpec((block_b // LANES, LANES), lambda i: (i, 0)),
        compiler_params=pltpu.CompilerParams(
            # "parallel" is portable across 1-TC chips; on v7x use
            # pltpu.CORE_PARALLEL to shard the batch grid over both cores.
            dimension_semantics=("parallel",),
            vmem_limit_bytes=32 * 1024 * 1024),
    )(x, *weight_args)

    # out[r, c] = logit of batch row r*LANES + c  ->  row-major reshape.
    return out.reshape(B, 1)


def _kaiming_uniform_t(key, fan_in, fan_out, gain):
    # PyTorch kaiming_uniform_ on weight (out, in): bound = gain*sqrt(3/fan_in).
    # Returned transposed as (in, out) so the kernel computes x @ W.
    bound = gain * math.sqrt(3.0 / fan_in)
    return jax.random.uniform(key, (fan_in, fan_out), jnp.float32,
                              minval=-bound, maxval=bound)


def init_params(key):
    ks = jax.random.split(key, 8)
    gain_lrelu = math.sqrt(2.0)  # calculate_gain('leaky_relu', a=0)
    gain_sig = 1.0               # calculate_gain('sigmoid')

    dims = [(9, 128), (128, 256), (256, 512), (512, 1)]
    gains = [gain_lrelu, gain_lrelu, gain_lrelu, gain_sig]

    w, b = [], []
    for i, ((fin, fout), g) in enumerate(zip(dims, gains)):
        w.append(_kaiming_uniform_t(ks[2 * i], fin, fout, g))
        b.append(jax.random.uniform(ks[2 * i + 1], (1, fout), jnp.float32))  # init.uniform_ -> U(0,1)

    # Kernel-friendly layout: fc4 weight/bias zero-padded 1 -> LANES columns
    # (lane-dense output compaction); matmul weights stored bf16 (MXU
    # operands; accumulation stays f32).
    w4 = jnp.pad(w[3], ((0, 0), (0, LANES - 1)))
    b4 = jnp.pad(b[3], ((0, 0), (0, LANES - 1)))

    return {
        # b1..b3 are kept for parameter-set fidelity with the module but are
        # unused (cancelled by batch-stat BatchNorm mean subtraction).
        "w1": w[0].astype(jnp.bfloat16), "b1": b[0],
        "g1": jnp.ones((1, 128), jnp.float32), "be1": jnp.zeros((1, 128), jnp.float32),
        "w2": w[1].astype(jnp.bfloat16), "b2": b[1],
        "g2": jnp.ones((1, 256), jnp.float32), "be2": jnp.zeros((1, 256), jnp.float32),
        "w3": w[2].astype(jnp.bfloat16), "b3": b[2],
        "g3": jnp.ones((1, 512), jnp.float32), "be3": jnp.zeros((1, 512), jnp.float32),
        "w4": w4.astype(jnp.bfloat16), "b4": b4,
    }


def ref_forward(x, params, *, block_b=1024):
    """Pure-JAX reference mirroring the kernel math (per-tile BN statistics,
    bf16 matmul operands, f32 accumulation, clamped variance)."""
    B = x.shape[0]
    block_b = min(block_b, B)
    layers = [("w1", "g1", "be1"), ("w2", "g2", "be2"), ("w3", "g3", "be3")]
    outs = []
    for s in range(0, B, block_b):
        h = x[s:s + block_b]
        for wk, gk, bk in layers:
            h = jnp.dot(h.astype(jnp.bfloat16), params[wk],
                        preferred_element_type=jnp.float32)
            mean = jnp.mean(h, axis=0, keepdims=True)
            var = jnp.maximum(jnp.mean(h * h, axis=0, keepdims=True) - mean * mean, 0.0)
            hn = (h - mean) * jax.lax.rsqrt(var + BN_EPS) * params[gk] + params[bk]
            h = jnp.maximum(hn, NEG_SLOPE * hn)
        logit = jnp.dot(h.astype(jnp.bfloat16), params["w4"],
                        preferred_element_type=jnp.float32) + params["b4"]
        outs.append(jax.nn.sigmoid(logit)[:, :1])
    return jnp.concatenate(outs, axis=0)


if __name__ == "__main__":
    key = jax.random.PRNGKey(0)
    pkey, xkey1, xkey2 = jax.random.split(key, 3)
    params = init_params(pkey)

    # Single-tile case (B=128): exact full-batch BN statistics.
    x_small = jax.random.normal(xkey1, (128, IN_FEATURES), jnp.float32)
    out_small = jax.block_until_ready(net_forward(x_small, params))
    assert out_small.shape == (128, 1) and out_small.dtype == jnp.float32
    assert bool(jnp.all((out_small >= 0.0) & (out_small <= 1.0)))
    ref_small = ref_forward(x_small, params)
    assert bool(jnp.allclose(out_small, ref_small, atol=1e-2))

    # Multi-tile case: two parallel 1024-row tiles (per-tile BN statistics).
    x_big = jax.random.normal(xkey2, (2048, IN_FEATURES), jnp.float32)
    out_big = jax.block_until_ready(net_forward(x_big, params, block_b=1024))
    assert out_big.shape == (2048, 1) and out_big.dtype == jnp.float32
    assert bool(jnp.all((out_big >= 0.0) & (out_big <= 1.0)))
    ref_big = ref_forward(x_big, params, block_b=1024)
    assert bool(jnp.allclose(out_big, ref_big, atol=1e-2))

    print("KERNEL_OK")
</pallas_src>

<mosaic_0001>
module attributes {stable_mosaic.version = 11 : i64} {
  func.func @mlp_kernel(%arg0: i32, %arg1: memref<128x9xf32, #tpu.memory_space<vmem>>, %arg2: memref<9x128xbf16, #tpu.memory_space<vmem>>, %arg3: memref<1x128xf32, #tpu.memory_space<vmem>>, %arg4: memref<1x128xf32, #tpu.memory_space<vmem>>, %arg5: memref<128x256xbf16, #tpu.memory_space<vmem>>, %arg6: memref<1x256xf32, #tpu.memory_space<vmem>>, %arg7: memref<1x256xf32, #tpu.memory_space<vmem>>, %arg8: memref<256x512xbf16, #tpu.memory_space<vmem>>, %arg9: memref<1x512xf32, #tpu.memory_space<vmem>>, %arg10: memref<1x512xf32, #tpu.memory_space<vmem>>, %arg11: memref<512x128xbf16, #tpu.memory_space<vmem>>, %arg12: memref<1x128xf32, #tpu.memory_space<vmem>>, %arg13: memref<1x128xf32, #tpu.memory_space<vmem>>) attributes {dimension_semantics = [#tpu.dimension_semantics<parallel>], iteration_bounds = array<i64: 1>, scalar_prefetch = 0 : i64, scratch_operands = 0 : i64, tpu.core_type = #tpu.core_type<tc>, window_params = [{transform_indices = @transform_0, window_bounds = array<i64: 128, 9>}, {pipeline_mode = #tpu.pipeline_mode<synchronous>, transform_indices = @transform_1, window_bounds = array<i64: 9, 128>}, {pipeline_mode = #tpu.pipeline_mode<synchronous>, transform_indices = @transform_2, window_bounds = array<i64: 1, 128>}, {pipeline_mode = #tpu.pipeline_mode<synchronous>, transform_indices = @transform_3, window_bounds = array<i64: 1, 128>}, {pipeline_mode = #tpu.pipeline_mode<synchronous>, transform_indices = @transform_4, window_bounds = array<i64: 128, 256>}, {pipeline_mode = #tpu.pipeline_mode<synchronous>, transform_indices = @transform_5, window_bounds = array<i64: 1, 256>}, {pipeline_mode = #tpu.pipeline_mode<synchronous>, transform_indices = @transform_6, window_bounds = array<i64: 1, 256>}, {pipeline_mode = #tpu.pipeline_mode<synchronous>, transform_indices = @transform_7, window_bounds = array<i64: 256, 512>}, {pipeline_mode = #tpu.pipeline_mode<synchronous>, transform_indices = @transform_8, window_bounds = array<i64: 1, 512>}, {pipeline_mode = #tpu.pipeline_mode<synchronous>, transform_indices = @transform_9, window_bounds = array<i64: 1, 512>}, {pipeline_mode = #tpu.pipeline_mode<synchronous>, transform_indices = @transform_10, window_bounds = array<i64: 512, 128>}, {pipeline_mode = #tpu.pipeline_mode<synchronous>, transform_indices = @transform_11, window_bounds = array<i64: 1, 128>}, {transform_indices = @transform_12, window_bounds = array<i64: 1, 128>}]} {
    %cst = arith.constant 1.000000e+00 : f32
    %0 = vector.broadcast %cst : f32 to vector<1x128xf32>
    %c0 = arith.constant 0 : index
    %c0_0 = arith.constant 0 : index
    %1 = vector.load %arg1[%c0, %c0_0] : memref<128x9xf32, #tpu.memory_space<vmem>>, vector<128x9xf32>
    %2 = arith.truncf %1 : vector<128x9xf32> to vector<128x9xbf16>
    %c0_1 = arith.constant 0 : index
    %c0_2 = arith.constant 0 : index
    %3 = vector.load %arg2[%c0_1, %c0_2] : memref<9x128xbf16, #tpu.memory_space<vmem>>, vector<9x128xbf16>
    %cst_3 = arith.constant dense<0.000000e+00> : vector<128x128xf32>
    %4 = tpu.matmul %2, %3, %cst_3 {dimension_numbers = #tpu.dot_dimension_numbers<[1], [0], [0], [1], [0, 0, 1, 1], [], []>} : vector<128x9xbf16>, vector<9x128xbf16>, vector<128x128xf32> -> vector<128x128xf32>
    %c0_4 = arith.constant 0 : index
    %c0_5 = arith.constant 0 : index
    %5 = vector.load %arg3[%c0_4, %c0_5] : memref<1x128xf32, #tpu.memory_space<vmem>>, vector<1x128xf32>
    %c0_6 = arith.constant 0 : index
    %c0_7 = arith.constant 0 : index
    %6 = vector.load %arg4[%c0_6, %c0_7] : memref<1x128xf32, #tpu.memory_space<vmem>>, vector<1x128xf32>
    %cst_8 = arith.constant dense<0.000000e+00> : vector<1x128xf32>
    %7 = tpu.matmul %0, %4, %cst_8 {dimension_numbers = #tpu.dot_dimension_numbers<[1], [0], [0], [1], [0, 0, 1, 1], [], []>} : vector<1x128xf32>, vector<128x128xf32>, vector<1x128xf32> -> vector<1x128xf32>
    %8 = arith.mulf %4, %4 : vector<128x128xf32>
    %cst_9 = arith.constant dense<0.000000e+00> : vector<1x128xf32>
    %9 = tpu.matmul %0, %8, %cst_9 {dimension_numbers = #tpu.dot_dimension_numbers<[1], [0], [0], [1], [0, 0, 1, 1], [], []>} : vector<1x128xf32>, vector<128x128xf32>, vector<1x128xf32> -> vector<1x128xf32>
    %cst_10 = arith.constant 7.812500e-03 : f32
    %10 = vector.broadcast %cst_10 : f32 to vector<1x128xf32>
    %11 = arith.mulf %7, %10 : vector<1x128xf32>
    %cst_11 = arith.constant 7.812500e-03 : f32
    %12 = vector.broadcast %cst_11 : f32 to vector<1x128xf32>
    %13 = arith.mulf %9, %12 : vector<1x128xf32>
    %14 = arith.mulf %11, %11 : vector<1x128xf32>
    %15 = arith.subf %13, %14 : vector<1x128xf32>
    %cst_12 = arith.constant 0.000000e+00 : f32
    %16 = vector.broadcast %cst_12 : f32 to vector<1x128xf32>
    %17 = arith.maximumf %15, %16 : vector<1x128xf32>
    %cst_13 = arith.constant 9.99999974E-6 : f32
    %18 = vector.broadcast %cst_13 : f32 to vector<1x128xf32>
    %19 = arith.addf %17, %18 : vector<1x128xf32>
    %20 = math.rsqrt %19 : vector<1x128xf32>
    %21 = arith.mulf %20, %5 : vector<1x128xf32>
    %22 = vector.broadcast %11 : vector<1x128xf32> to vector<128x128xf32>
    %23 = arith.subf %4, %22 : vector<128x128xf32>
    %24 = vector.broadcast %21 : vector<1x128xf32> to vector<128x128xf32>
    %25 = arith.mulf %23, %24 : vector<128x128xf32>
    %26 = vector.broadcast %6 : vector<1x128xf32> to vector<128x128xf32>
    %27 = arith.addf %25, %26 : vector<128x128xf32>
    %cst_14 = arith.constant 0.00999999977 : f32
    %28 = vector.broadcast %cst_14 : f32 to vector<128x128xf32>
    %29 = arith.mulf %28, %27 : vector<128x128xf32>
    %30 = arith.maximumf %27, %29 : vector<128x128xf32>
    %31 = arith.truncf %30 : vector<128x128xf32> to vector<128x128xbf16>
    %c0_15 = arith.constant 0 : index
    %c0_16 = arith.constant 0 : index
    %32 = vector.load %arg5[%c0_15, %c0_16] : memref<128x256xbf16, #tpu.memory_space<vmem>>, vector<128x256xbf16>
    %cst_17 = arith.constant dense<0.000000e+00> : vector<128x256xf32>
    %33 = tpu.matmul %31, %32, %cst_17 {dimension_numbers = #tpu.dot_dimension_numbers<[1], [0], [0], [1], [0, 0, 1, 1], [], []>} : vector<128x128xbf16>, vector<128x256xbf16>, vector<128x256xf32> -> vector<128x256xf32>
    %c0_18 = arith.constant 0 : index
    %c0_19 = arith.constant 0 : index
    %34 = vector.load %arg6[%c0_18, %c0_19] : memref<1x256xf32, #tpu.memory_space<vmem>>, vector<1x256xf32>
    %c0_20 = arith.constant 0 : index
    %c0_21 = arith.constant 0 : index
    %35 = vector.load %arg7[%c0_20, %c0_21] : memref<1x256xf32, #tpu.memory_space<vmem>>, vector<1x256xf32>
    %cst_22 = arith.constant dense<0.000000e+00> : vector<1x256xf32>
    %36 = tpu.matmul %0, %33, %cst_22 {dimension_numbers = #tpu.dot_dimension_numbers<[1], [0], [0], [1], [0, 0, 1, 1], [], []>} : vector<1x128xf32>, vector<128x256xf32>, vector<1x256xf32> -> vector<1x256xf32>
    %37 = arith.mulf %33, %33 : vector<128x256xf32>
    %cst_23 = arith.constant dense<0.000000e+00> : vector<1x256xf32>
    %38 = tpu.matmul %0, %37, %cst_23 {dimension_numbers = #tpu.dot_dimension_numbers<[1], [0], [0], [1], [0, 0, 1, 1], [], []>} : vector<1x128xf32>, vector<128x256xf32>, vector<1x256xf32> -> vector<1x256xf32>
    %cst_24 = arith.constant 7.812500e-03 : f32
    %39 = vector.broadcast %cst_24 : f32 to vector<1x256xf32>
    %40 = arith.mulf %36, %39 : vector<1x256xf32>
    %cst_25 = arith.constant 7.812500e-03 : f32
    %41 = vector.broadcast %cst_25 : f32 to vector<1x256xf32>
    %42 = arith.mulf %38, %41 : vector<1x256xf32>
    %43 = arith.mulf %40, %40 : vector<1x256xf32>
    %44 = arith.subf %42, %43 : vector<1x256xf32>
    %cst_26 = arith.constant 0.000000e+00 : f32
    %45 = vector.broadcast %cst_26 : f32 to vector<1x256xf32>
    %46 = arith.maximumf %44, %45 : vector<1x256xf32>
    %cst_27 = arith.constant 9.99999974E-6 : f32
    %47 = vector.broadcast %cst_27 : f32 to vector<1x256xf32>
    %48 = arith.addf %46, %47 : vector<1x256xf32>
    %49 = math.rsqrt %48 : vector<1x256xf32>
    %50 = arith.mulf %49, %34 : vector<1x256xf32>
    %51 = vector.broadcast %40 : vector<1x256xf32> to vector<128x256xf32>
    %52 = arith.subf %33, %51 : vector<128x256xf32>
    %53 = vector.broadcast %50 : vector<1x256xf32> to vector<128x256xf32>
    %54 = arith.mulf %52, %53 : vector<128x256xf32>
    %55 = vector.broadcast %35 : vector<1x256xf32> to vector<128x256xf32>
    %56 = arith.addf %54, %55 : vector<128x256xf32>
    %cst_28 = arith.constant 0.00999999977 : f32
    %57 = vector.broadcast %cst_28 : f32 to vector<128x256xf32>
    %58 = arith.mulf %57, %56 : vector<128x256xf32>
    %59 = arith.maximumf %56, %58 : vector<128x256xf32>
    %60 = arith.truncf %59 : vector<128x256xf32> to vector<128x256xbf16>
    %c0_29 = arith.constant 0 : index
    %c0_30 = arith.constant 0 : index
    %61 = vector.load %arg8[%c0_29, %c0_30] : memref<256x512xbf16, #tpu.memory_space<vmem>>, vector<256x512xbf16>
    %cst_31 = arith.constant dense<0.000000e+00> : vector<128x512xf32>
    %62 = tpu.matmul %60, %61, %cst_31 {dimension_numbers = #tpu.dot_dimension_numbers<[1], [0], [0], [1], [0, 0, 1, 1], [], []>} : vector<128x256xbf16>, vector<256x512xbf16>, vector<128x512xf32> -> vector<128x512xf32>
    %c0_32 = arith.constant 0 : index
    %c0_33 = arith.constant 0 : index
    %63 = vector.load %arg9[%c0_32, %c0_33] : memref<1x512xf32, #tpu.memory_space<vmem>>, vector<1x512xf32>
    %c0_34 = arith.constant 0 : index
    %c0_35 = arith.constant 0 : index
    %64 = vector.load %arg10[%c0_34, %c0_35] : memref<1x512xf32, #tpu.memory_space<vmem>>, vector<1x512xf32>
    %cst_36 = arith.constant dense<0.000000e+00> : vector<1x512xf32>
    %65 = tpu.matmul %0, %62, %cst_36 {dimension_numbers = #tpu.dot_dimension_numbers<[1], [0], [0], [1], [0, 0, 1, 1], [], []>} : vector<1x128xf32>, vector<128x512xf32>, vector<1x512xf32> -> vector<1x512xf32>
    %66 = arith.mulf %62, %62 : vector<128x512xf32>
    %cst_37 = arith.constant dense<0.000000e+00> : vector<1x512xf32>
    %67 = tpu.matmul %0, %66, %cst_37 {dimension_numbers = #tpu.dot_dimension_numbers<[1], [0], [0], [1], [0, 0, 1, 1], [], []>} : vector<1x128xf32>, vector<128x512xf32>, vector<1x512xf32> -> vector<1x512xf32>
    %cst_38 = arith.constant 7.812500e-03 : f32
    %68 = vector.broadcast %cst_38 : f32 to vector<1x512xf32>
    %69 = arith.mulf %65, %68 : vector<1x512xf32>
    %cst_39 = arith.constant 7.812500e-03 : f32
    %70 = vector.broadcast %cst_39 : f32 to vector<1x512xf32>
    %71 = arith.mulf %67, %70 : vector<1x512xf32>
    %72 = arith.mulf %69, %69 : vector<1x512xf32>
    %73 = arith.subf %71, %72 : vector<1x512xf32>
    %cst_40 = arith.constant 0.000000e+00 : f32
    %74 = vector.broadcast %cst_40 : f32 to vector<1x512xf32>
    %75 = arith.maximumf %73, %74 : vector<1x512xf32>
    %cst_41 = arith.constant 9.99999974E-6 : f32
    %76 = vector.broadcast %cst_41 : f32 to vector<1x512xf32>
    %77 = arith.addf %75, %76 : vector<1x512xf32>
    %78 = math.rsqrt %77 : vector<1x512xf32>
    %79 = arith.mulf %78, %63 : vector<1x512xf32>
    %80 = vector.broadcast %69 : vector<1x512xf32> to vector<128x512xf32>
    %81 = arith.subf %62, %80 : vector<128x512xf32>
    %82 = vector.broadcast %79 : vector<1x512xf32> to vector<128x512xf32>
    %83 = arith.mulf %81, %82 : vector<128x512xf32>
    %84 = vector.broadcast %64 : vector<1x512xf32> to vector<128x512xf32>
    %85 = arith.addf %83, %84 : vector<128x512xf32>
    %cst_42 = arith.constant 0.00999999977 : f32
    %86 = vector.broadcast %cst_42 : f32 to vector<128x512xf32>
    %87 = arith.mulf %86, %85 : vector<128x512xf32>
    %88 = arith.maximumf %85, %87 : vector<128x512xf32>
    %89 = arith.truncf %88 : vector<128x512xf32> to vector<128x512xbf16>
    %c0_43 = arith.constant 0 : index
    %c0_44 = arith.constant 0 : index
    %90 = vector.load %arg11[%c0_43, %c0_44] : memref<512x128xbf16, #tpu.memory_space<vmem>>, vector<512x128xbf16>
    %cst_45 = arith.constant dense<0.000000e+00> : vector<128x128xf32>
    %91 = tpu.matmul %89, %90, %cst_45 {dimension_numbers = #tpu.dot_dimension_numbers<[1], [0], [0], [1], [0, 0, 1, 1], [], []>} : vector<128x512xbf16>, vector<512x128xbf16>, vector<128x128xf32> -> vector<128x128xf32>
    %c0_46 = arith.constant 0 : index
    %c0_47 = arith.constant 0 : index
    %92 = vector.load %arg12[%c0_46, %c0_47] : memref<1x128xf32, #tpu.memory_space<vmem>>, vector<1x128xf32>
    %93 = vector.broadcast %92 : vector<1x128xf32> to vector<128x128xf32>
    %94 = arith.addf %91, %93 : vector<128x128xf32>
    %95 = vector.shape_cast %94 : vector<128x128xf32> to vector<1x128x128xf32>
    %cst_48 = arith.constant dense<0.000000e+00> : vector<1x128xf32>
    %96 = vector.multi_reduction <add>, %95, %cst_48 [2] : vector<1x128x128xf32> to vector<1x128xf32>
    %97 = arith.negf %96 : vector<1x128xf32>
    %98 = math.exp %97 : vector<1x128xf32>
    %cst_49 = arith.constant 1.000000e+00 : f32
    %99 = vector.broadcast %cst_49 : f32 to vector<1x128xf32>
    %100 = arith.addf %99, %98 : vector<1x128xf32>
    %101 = arith.divf %99, %100 : vector<1x128xf32>
    %c0_50 = arith.constant 0 : index
    %c0_51 = arith.constant 0 : index
    %102 = vector.load %arg13[%c0_50, %c0_51] : memref<1x128xf32, #tpu.memory_space<vmem>>, vector<1x128xf32>
    tpu.vector_store %arg13[%c0_50, %c0_51], %101 {strides = array<i32>} : memref<1x128xf32, #tpu.memory_space<vmem>>, vector<1x128xf32>,
    return
  }
  func.func @transform_0(%arg0: i32) -> (i32, i32) {
    %c0_i32 = arith.constant 0 : i32
    %c0_i32_0 = arith.constant 0 : i32
    return %arg0, %c0_i32 : i32, i32
  }
  func.func @transform_1(%arg0: i32) -> (i32, i32) {
    %c0_i32 = arith.constant 0 : i32
    %c0_i32_0 = arith.constant 0 : i32
    %c0_i32_1 = arith.constant 0 : i32
    return %c0_i32, %c0_i32_0 : i32, i32
  }
  func.func @transform_2(%arg0: i32) -> (i32, i32) {
    %c0_i32 = arith.constant 0 : i32
    %c0_i32_0 = arith.constant 0 : i32
    %c0_i32_1 = arith.constant 0 : i32
    return %c0_i32, %c0_i32_0 : i32, i32
  }
  func.func @transform_3(%arg0: i32) -> (i32, i32) {
    %c0_i32 = arith.constant 0 : i32
    %c0_i32_0 = arith.constant 0 : i32
    %c0_i32_1 = arith.constant 0 : i32
    return %c0_i32, %c0_i32_0 : i32, i32
  }
  func.func @transform_4(%arg0: i32) -> (i32, i32) {
    %c0_i32 = arith.constant 0 : i32
    %c0_i32_0 = arith.constant 0 : i32
    %c0_i32_1 = arith.constant 0 : i32
    return %c0_i32, %c0_i32_0 : i32, i32
  }
  func.func @transform_5(%arg0: i32) -> (i32, i32) {
    %c0_i32 = arith.constant 0 : i32
    %c0_i32_0 = arith.constant 0 : i32
    %c0_i32_1 = arith.constant 0 : i32
    return %c0_i32, %c0_i32_0 : i32, i32
  }
  func.func @transform_6(%arg0: i32) -> (i32, i32) {
    %c0_i32 = arith.constant 0 : i32
    %c0_i32_0 = arith.constant 0 : i32
    %c0_i32_1 = arith.constant 0 : i32
    return %c0_i32, %c0_i32_0 : i32, i32
  }
  func.func @transform_7(%arg0: i32) -> (i32, i32) {
    %c0_i32 = arith.constant 0 : i32
    %c0_i32_0 = arith.constant 0 : i32
    %c0_i32_1 = arith.constant 0 : i32
    return %c0_i32, %c0_i32_0 : i32, i32
  }
  func.func @transform_8(%arg0: i32) -> (i32, i32) {
    %c0_i32 = arith.constant 0 : i32
    %c0_i32_0 = arith.constant 0 : i32
    %c0_i32_1 = arith.constant 0 : i32
    return %c0_i32, %c0_i32_0 : i32, i32
  }
  func.func @transform_9(%arg0: i32) -> (i32, i32) {
    %c0_i32 = arith.constant 0 : i32
    %c0_i32_0 = arith.constant 0 : i32
    %c0_i32_1 = arith.constant 0 : i32
    return %c0_i32, %c0_i32_0 : i32, i32
  }
  func.func @transform_10(%arg0: i32) -> (i32, i32) {
    %c0_i32 = arith.constant 0 : i32
    %c0_i32_0 = arith.constant 0 : i32
    %c0_i32_1 = arith.constant 0 : i32
    return %c0_i32, %c0_i32_0 : i32, i32
  }
  func.func @transform_11(%arg0: i32) -> (i32, i32) {
    %c0_i32 = arith.constant 0 : i32
    %c0_i32_0 = arith.constant 0 : i32
    %c0_i32_1 = arith.constant 0 : i32
    return %c0_i32, %c0_i32_0 : i32, i32
  }
  func.func @transform_12(%arg0: i32) -> (i32, i32) {
    %c0_i32 = arith.constant 0 : i32
    %c0_i32_0 = arith.constant 0 : i32
    return %arg0, %c0_i32 : i32, i32
  }
}

</mosaic_0001>

<llo_original>
// kernel: net_forward.1
$region0: #{net_forward.1}
  #allocation0 [shape = 'u32[]', space=smem, size = 0x4, offset = 0x4, fixed_abs, tag = 'smem constant byte address 0x4 - core index']
  #allocation1 [shape = 'u32[72,128]{1,0:T(1,128)}', space=vmem, size = 0x9000, scoped, tag = 'internal scratch']
  %s0 = inlined_call_operand.vmem [shape: f32[128,9], index: 0, kind: input, shape index: {}]
  %s1 = inlined_call_operand.vmem [shape: bf16[9,128], index: 1, kind: input, shape index: {}]
  %s2 = inlined_call_operand.vmem [shape: f32[1,128], index: 2, kind: input, shape index: {}]
  %s3 = inlined_call_operand.vmem [shape: f32[1,128], index: 3, kind: input, shape index: {}]
  %s4 = inlined_call_operand.vmem [shape: bf16[128,256], index: 4, kind: input, shape index: {}]
  %s5 = inlined_call_operand.vmem [shape: f32[1,256], index: 5, kind: input, shape index: {}]
  %s6 = inlined_call_operand.vmem [shape: f32[1,256], index: 6, kind: input, shape index: {}]
  %s7 = inlined_call_operand.hbm [shape: bf16[256,512], index: 7, kind: input, shape index: {}]
  %s8 = inlined_call_operand.vmem [shape: f32[1,512], index: 8, kind: input, shape index: {}]
  %s9 = inlined_call_operand.vmem [shape: f32[1,512], index: 9, kind: input, shape index: {}]
  %s10 = inlined_call_operand.hbm [shape: bf16[512,128], index: 10, kind: input, shape index: {}]
  %s11 = inlined_call_operand.vmem [shape: f32[1,128], index: 11, kind: input, shape index: {}]
  %s12 = inlined_call_operand.hbm [shape: f32[1,128], index: 12, kind: output, shape index: {}]
  %s13 = sld [smem:[#allocation0]]
  $region66: #{net_forward.1} parent=0
    _
  %s15 = ssub.s32 1, %s13
  %s16 = scalar_select 0, %s15, %s13
  $region1: #{net_forward.1} parent=0
    #allocation2 [shape = 'u8[262144]{0}', space=vmem, size = 0x40000, scoped, tag = 'input window, operand 7, single buffered']
    #allocation3 [shape = 's32[1]{0}', space=sflag, size = 0x4, scoped, tag = 'scoped memory for net_forward.1']
    #allocation4 [shape = 's32[1]{0}', space=sflag, size = 0x4, scoped, tag = 'scoped memory for net_forward.1']
    #allocation5 [shape = 'u8[131072]{0}', space=vmem, size = 0x20000, scoped, tag = 'input window, operand 10, single buffered']
    #allocation6 [shape = 's32[1]{0}', space=sflag, size = 0x4, scoped, tag = 'scoped memory for net_forward.1']
    #allocation7 [shape = 'u8[512]{0}', space=vmem, size = 0x400, scoped, tag = 'output window, operand 0, single buffered']
    %17 = vsyncpa [#allocation3], 0
    %18 = vsyncpa [#allocation6], 0
    %19 = vsyncpa [#allocation4], 0
    // Predicated region
    $region2: #{net_forward.1} parent=1 // pred_check
      _
    $region3: #{net_forward.1} parent=1 // pred_check_branch
      %21 = sbr.rel (0) target = $region5
    $region4: #{net_forward.1} parent=1 // pred_region
      _
    $region5: #{net_forward.1} parent=1 // pred_fallthru
      _
    // Predicated region
    $region6: #{net_forward.1} parent=1 // pred_check
      _
    $region7: #{net_forward.1} parent=1 // pred_check_branch
      %23 = sbr.rel (0) target = $region9
    $region8: #{net_forward.1} parent=1 // pred_region
      _
    $region9: #{net_forward.1} parent=1 // pred_fallthru
      _
    // Predicated region
    $region10: #{net_forward.1} parent=1 // pred_check
      _
    $region11: #{net_forward.1} parent=1 // pred_check_branch
      %25 = sbr.rel (0) target = $region13
    $region12: #{net_forward.1} parent=1 // pred_region
      _
    $region13: #{net_forward.1} parent=1 // pred_fallthru
      _
    // Predicated region
    $region14: #{net_forward.1} parent=1 // pred_check
      _
    $region15: #{net_forward.1} parent=1 // pred_check_branch
      %27 = sbr.rel (0) target = $region17
    $region16: #{net_forward.1} parent=1 // pred_region
      _
    $region17: #{net_forward.1} parent=1 // pred_fallthru
      _
    // Predicated region
    $region18: #{net_forward.1} parent=1 // pred_check
      _
    $region19: #{net_forward.1} parent=1 // pred_check_branch
      %29 = sbr.rel (0) target = $region21
    $region20: #{net_forward.1} parent=1 // pred_region
      _
    $region21: #{net_forward.1} parent=1 // pred_fallthru
      _
    // Predicated region
    $region22: #{net_forward.1} parent=1 // pred_check
      _
    $region23: #{net_forward.1} parent=1 // pred_check_branch
      %31 = sbr.rel (0) target = $region25
    $region24: #{net_forward.1} parent=1 // pred_region
      _
    $region25: #{net_forward.1} parent=1 // pred_fallthru
      _
    // Predicated region
    $region26: #{net_forward.1} parent=1 // pred_check
      _
    $region27: #{net_forward.1} parent=1 // pred_check_branch
      %33 = sbr.rel (0) target = $region29
    $region28: #{net_forward.1} parent=1 // pred_region
      _
    $region29: #{net_forward.1} parent=1 // pred_fallthru
      _
    // Predicated region
    $region30: #{net_forward.1} parent=1 // pred_check
      _
    $region31: #{net_forward.1} parent=1 // pred_check_branch
      %35 = sbr.rel (0) target = $region33
    $region32: #{net_forward.1} parent=1 // pred_region
      %37 = vsyncadd [#allocation3], 0
      %s38 = sshll.u32 %s7, 4
      %s39 = int_to_ptr.hbm [resolvable:$true] %s38
      %s40 = sshll.u32 [#allocation2], 4
      %s41 = int_to_ptr.vmem [resolvable:$true] %s40
      %46 = dma.hbm_to_vmem [thread:$0]  %s39, 8192, %s41, [#allocation3], 256, 256, 16
    $region33: #{net_forward.1} parent=1 // pred_fallthru
      _
    // Predicated region
    $region34: #{net_forward.1} parent=1 // pred_check
      _
    $region35: #{net_forward.1} parent=1 // pred_check_branch
      %48 = sbr.rel (0) target = $region37
    $region36: #{net_forward.1} parent=1 // pred_region
      _
    $region37: #{net_forward.1} parent=1 // pred_fallthru
      _
    // Predicated region
    $region38: #{net_forward.1} parent=1 // pred_check
      _
    $region39: #{net_forward.1} parent=1 // pred_check_branch
      %50 = sbr.rel (0) target = $region41
    $region40: #{net_forward.1} parent=1 // pred_region
      _
    $region41: #{net_forward.1} parent=1 // pred_fallthru
      _
    // Predicated region
    $region42: #{net_forward.1} parent=1 // pred_check
      _
    $region43: #{net_forward.1} parent=1 // pred_check_branch
      %52 = sbr.rel (0) target = $region45
    $region44: #{net_forward.1} parent=1 // pred_region
      %54 = vsyncadd [#allocation6], 0
      %s55 = sshll.u32 %s10, 4
      %s56 = int_to_ptr.hbm [resolvable:$true] %s55
      %s57 = sshll.u32 [#allocation5], 4
      %s58 = int_to_ptr.vmem [resolvable:$true] %s57
      %63 = dma.hbm_to_vmem [thread:$0]  %s56, 4096, %s58, [#allocation6], 64, 64, 4
    $region45: #{net_forward.1} parent=1 // pred_fallthru
      _
    // Predicated region
    $region46: #{net_forward.1} parent=1 // pred_check
      _
    $region47: #{net_forward.1} parent=1 // pred_check_branch
      %65 = sbr.rel (0) target = $region49
    $region48: #{net_forward.1} parent=1 // pred_region
      _
    $region49: #{net_forward.1} parent=1 // pred_fallthru
      _
    // Predicated region
    $region50: #{net_forward.1} parent=1 // pred_check
      _
    $region51: #{net_forward.1} parent=1 // pred_check_branch
      %67 = sbr.rel (0) target = $region53
    $region52: #{net_forward.1} parent=1 // pred_region
      %69 = dma.done [#allocation3], 8192
    $region53: #{net_forward.1} parent=1 // pred_fallthru
      _
    // Predicated region
    $region54: #{net_forward.1} parent=1 // pred_check
      _
    $region55: #{net_forward.1} parent=1 // pred_check_branch
      %71 = sbr.rel (0) target = $region57
    $region56: #{net_forward.1} parent=1 // pred_region
      %73 = dma.done [#allocation6], 4096
    $region57: #{net_forward.1} parent=1 // pred_fallthru
      _
    %v75 = vld [vmem:[%s0] sm:$0xff]
    %v76 = vld [vmem:[%s0 + $0x8] sm:$0xff]
    %v77 = vld [vmem:[%s0 + $0x10] sm:$0xff]
    %v78 = vld [vmem:[%s0 + $0x18] sm:$0xff]
    %v79 = vld [vmem:[%s0 + $0x20] sm:$0xff]
    %v80 = vld [vmem:[%s0 + $0x28] sm:$0xff]
    %v81 = vld [vmem:[%s0 + $0x30] sm:$0xff]
    %v82 = vld [vmem:[%s0 + $0x38] sm:$0xff]
    %v83 = vld [vmem:[%s0 + $0x40] sm:$0xff]
    %v84 = vld [vmem:[%s0 + $0x48] sm:$0xff]
    %v85 = vld [vmem:[%s0 + $0x50] sm:$0xff]
    %v86 = vld [vmem:[%s0 + $0x58] sm:$0xff]
    %v87 = vld [vmem:[%s0 + $0x60] sm:$0xff]
    %v88 = vld [vmem:[%s0 + $0x68] sm:$0xff]
    %v89 = vld [vmem:[%s0 + $0x70] sm:$0xff]
    %v90 = vld [vmem:[%s0 + $0x78] sm:$0xff]
    %v91 = vpack.c.bf16 %v76, %v75
    %v92 = vpack.c.bf16 %v78, %v77
    %v93 = vpack.c.bf16 %v80, %v79
    %v94 = vpack.c.bf16 %v82, %v81
    %v95 = vpack.c.bf16 %v84, %v83
    %v96 = vpack.c.bf16 %v86, %v85
    %v97 = vpack.c.bf16 %v88, %v87
    %v98 = vpack.c.bf16 %v90, %v89
    %v99 = vld [vmem:[%s1] sm:$0xf]
    %v100 = vld [vmem:[%s1 + $0x4] sm:$0x1]
    %v103 = vunpack.c.l.b16 %v99
    %v104 = vunpack.c.l.b16 %v100
    %v105 = vpack.c.b16 %v104, %v103
    %vm106 = vcmask 72704
    %v108 = vsel %vm106, %v91, 0
    %v111 = vsel %vm106, %v92, 0
    %v114 = vsel %vm106, %v93, 0
    %v117 = vsel %vm106, %v94, 0
    %v120 = vsel %vm106, %v95, 0
    %v123 = vsel %vm106, %v96, 0
    %v126 = vsel %vm106, %v97, 0
    %v129 = vsel %vm106, %v98, 0
    %vm131 = vcmask 1043456
    %vm132 = vcmask 1044480
    %v133 = vsel %vm131, 4294967295, 65535
    %v134 = vsel %vm132, %v133, 0
    %v136 = vand.u32 %v105, %v134
    %138 = vmatpush.bf16.msra.mxu0 0
    %139 = vmatpush.bf16.msra.mxu0 0
    %140 = vmatpush.bf16.msra.mxu0 0
    %141 = vmatpush.bf16.msra.mxu0 0
    %142 = vmatpush.bf16.msra.mxu0 0
    %143 = vmatpush.bf16.msra.mxu0 0
    %144 = vmatpush.bf16.msra.mxu0 0
    %145 = vmatpush.bf16.msra.mxu0 %v136
    %146 = vmatmul.bf16.gmra.mxu0 %v108
    %v147 = vpop.f32.mrf.mxu0
    %v148 = vadd.f32 0.0, %v147
    %v149 = vpop.f32.mrf.mxu0
    %v150 = vadd.f32 0.0, %v149
    %151 = vmatmul.bf16.gmra.mxu0 %v111
    %v152 = vpop.f32.mrf.mxu0
    %v153 = vadd.f32 0.0, %v152
    %v154 = vpop.f32.mrf.mxu0
    %v155 = vadd.f32 0.0, %v154
    %156 = vmatmul.bf16.gmra.mxu0 %v114
    %v157 = vpop.f32.mrf.mxu0
    %v158 = vadd.f32 0.0, %v157
    %v159 = vpop.f32.mrf.mxu0
    %v160 = vadd.f32 0.0, %v159
    %161 = vmatmul.bf16.gmra.mxu0 %v117
    %v162 = vpop.f32.mrf.mxu0
    %v163 = vadd.f32 0.0, %v162
    %v164 = vpop.f32.mrf.mxu0
    %v165 = vadd.f32 0.0, %v164
    %166 = vmatmul.bf16.gmra.mxu0 %v120
    %v167 = vpop.f32.mrf.mxu0
    %v168 = vadd.f32 0.0, %v167
    %v169 = vpop.f32.mrf.mxu0
    %v170 = vadd.f32 0.0, %v169
    %171 = vmatmul.bf16.gmra.mxu0 %v123
    %v172 = vpop.f32.mrf.mxu0
    %v173 = vadd.f32 0.0, %v172
    %v174 = vpop.f32.mrf.mxu0
    %v175 = vadd.f32 0.0, %v174
    %176 = vmatmul.bf16.gmra.mxu0 %v126
    %v177 = vpop.f32.mrf.mxu0
    %v178 = vadd.f32 0.0, %v177
    %v179 = vpop.f32.mrf.mxu0
    %v180 = vadd.f32 0.0, %v179
    %181 = vmatmul.bf16.gmra.mxu0 %v129
    %v182 = vpop.f32.mrf.mxu0
    %v183 = vadd.f32 0.0, %v182
    %v184 = vpop.f32.mrf.mxu0
    %v185 = vadd.f32 0.0, %v184
    %186 = vdwg.mxu0
    %v187 = vld [vmem:[%s2] sm:$0x1]
    %v188 = vld [vmem:[%s3] sm:$0x1]
    %189 = vmatpush.msra.mxu0 %v185
    %190 = vmatpush.msra.mxu0 %v183
    %191 = vmatpush.msra.mxu0 %v180
    %192 = vmatpush.msra.mxu0 %v178
    %193 = vmatpush.msra.mxu0 %v175
    %194 = vmatpush.msra.mxu0 %v173
    %195 = vmatpush.msra.mxu0 %v170
    %196 = vmatpush.msra.mxu0 %v168
    %197 = vmatpush.msra.mxu0 %v165
    %198 = vmatpush.msra.mxu0 %v163
    %199 = vmatpush.msra.mxu0 %v160
    %200 = vmatpush.msra.mxu0 %v158
    %201 = vmatpush.msra.mxu0 %v155
    %202 = vmatpush.msra.mxu0 %v153
    %203 = vmatpush.msra.mxu0 %v150
    %204 = vmatpush.msra.mxu0 %v148
    %205 = vmatmul.f32.gmra.mxu0 1.0
    %v206 = vpop.f32.mrf.mxu0
    %v207 = vadd.f32 0.0, %v206
    %208 = vdwg.mxu0
    %v209 = vmul.f32 %v148, %v148
    %v210 = vmul.f32 %v150, %v150
    %v211 = vmul.f32 %v153, %v153
    %v212 = vmul.f32 %v155, %v155
    %v213 = vmul.f32 %v158, %v158
    %v214 = vmul.f32 %v160, %v160
    %v215 = vmul.f32 %v163, %v163
    %v216 = vmul.f32 %v165, %v165
    %v217 = vmul.f32 %v168, %v168
    %v218 = vmul.f32 %v170, %v170
    %v219 = vmul.f32 %v173, %v173
    %v220 = vmul.f32 %v175, %v175
    %v221 = vmul.f32 %v178, %v178
    %v222 = vmul.f32 %v180, %v180
    %v223 = vmul.f32 %v183, %v183
    %v224 = vmul.f32 %v185, %v185
    %225 = vmatpush.msra.mxu0 %v224
    %226 = vmatpush.msra.mxu0 %v223
    %227 = vmatpush.msra.mxu0 %v222
    %228 = vmatpush.msra.mxu0 %v221
    %229 = vmatpush.msra.mxu0 %v220
    %230 = vmatpush.msra.mxu0 %v219
    %231 = vmatpush.msra.mxu0 %v218
    %232 = vmatpush.msra.mxu0 %v217
    %233 = vmatpush.msra.mxu0 %v216
    %234 = vmatpush.msra.mxu0 %v215
    %235 = vmatpush.msra.mxu0 %v214
    %236 = vmatpush.msra.mxu0 %v213
    %237 = vmatpush.msra.mxu0 %v212
    %238 = vmatpush.msra.mxu0 %v211
    %239 = vmatpush.msra.mxu0 %v210
    %240 = vmatpush.msra.mxu0 %v209
    %241 = vmatmul.f32.gmra.mxu0 1.0
    %v242 = vpop.f32.mrf.mxu0
    %v243 = vadd.f32 0.0, %v242
    %244 = vdwg.mxu0
    %v245 = vmul.f32 %v207, 0.0078125
    %v246 = vmul.f32 %v243, 0.0078125
    %v247 = vmul.f32 %v245, %v245
    %v248 = vsub.f32 %v246, %v247
    %v249 = vmax.f32 %v248, 0.0
    %v250 = vadd.f32 %v249, 1e-05
    %v251 = vrsqrt.pop %v250
    %v252 = vmul.f32 %v251, %v250
    %v253 = vmul.f32 %v252, %v251
    %v254 = vmul.f32 0.5, %v253
    %v255 = vsub.f32 1.5, %v254
    %v256 = vmul.f32 %v251, %v255
    %vm257 = vweird.f32 %v250
    %vm258 = vweird.f32 %v251
    %vm259 = vmor %vm257, %vm258
    %v260 = vsel %vm259, %v251, %v256
    %v261 = vmul.f32 %v260, %v187
    %v262 = vperm.slane %v245, 0
    %v263 = vsub.f32 %v148, %v262
    %v264 = vsub.f32 %v150, %v262
    %v265 = vsub.f32 %v153, %v262
    %v266 = vsub.f32 %v155, %v262
    %v267 = vsub.f32 %v158, %v262
    %v268 = vsub.f32 %v160, %v262
    %v269 = vsub.f32 %v163, %v262
    %v270 = vsub.f32 %v165, %v262
    %v271 = vsub.f32 %v168, %v262
    %v272 = vsub.f32 %v170, %v262
    %v273 = vsub.f32 %v173, %v262
    %v274 = vsub.f32 %v175, %v262
    %v275 = vsub.f32 %v178, %v262
    %v276 = vsub.f32 %v180, %v262
    %v277 = vsub.f32 %v183, %v262
    %v278 = vsub.f32 %v185, %v262
    %v279 = vperm.slane %v261, 0
    %v280 = vmul.f32 %v263, %v279
    %v281 = vmul.f32 %v264, %v279
    %v282 = vmul.f32 %v265, %v279
    %v283 = vmul.f32 %v266, %v279
    %v284 = vmul.f32 %v267, %v279
    %v285 = vmul.f32 %v268, %v279
    %v286 = vmul.f32 %v269, %v279
    %v287 = vmul.f32 %v270, %v279
    %v288 = vmul.f32 %v271, %v279
    %v289 = vmul.f32 %v272, %v279
    %v290 = vmul.f32 %v273, %v279
    %v291 = vmul.f32 %v274, %v279
    %v292 = vmul.f32 %v275, %v279
    %v293 = vmul.f32 %v276, %v279
    %v294 = vmul.f32 %v277, %v279
    %v295 = vmul.f32 %v278, %v279
    %v297 = vperm.slane %v188, 0
    %v299 = vadd.f32 %v280, %v297
    %v300 = vadd.f32 %v281, %v297
    %v301 = vadd.f32 %v282, %v297
    %v302 = vadd.f32 %v283, %v297
    %v303 = vadd.f32 %v284, %v297
    %v304 = vadd.f32 %v285, %v297
    %v305 = vadd.f32 %v286, %v297
    %v306 = vadd.f32 %v287, %v297
    %v307 = vadd.f32 %v288, %v297
    %v308 = vadd.f32 %v289, %v297
    %v309 = vadd.f32 %v290, %v297
    %v310 = vadd.f32 %v291, %v297
    %v311 = vadd.f32 %v292, %v297
    %v312 = vadd.f32 %v293, %v297
    %v313 = vadd.f32 %v294, %v297
    %v314 = vadd.f32 %v295, %v297
    %v315 = vmul.f32 %v299, 0.01
    %v316 = vmul.f32 %v300, 0.01
    %v317 = vmul.f32 %v301, 0.01
    %v318 = vmul.f32 %v302, 0.01
    %v319 = vmul.f32 %v303, 0.01
    %v320 = vmul.f32 %v304, 0.01
    %v321 = vmul.f32 %v305, 0.01
    %v322 = vmul.f32 %v306, 0.01
    %v323 = vmul.f32 %v307, 0.01
    %v324 = vmul.f32 %v308, 0.01
    %v325 = vmul.f32 %v309, 0.01
    %v326 = vmul.f32 %v310, 0.01
    %v327 = vmul.f32 %v311, 0.01
    %v328 = vmul.f32 %v312, 0.01
    %v329 = vmul.f32 %v313, 0.01
    %v330 = vmul.f32 %v314, 0.01
    %v331 = vmax.f32 %v299, %v315
    %v332 = vmax.f32 %v300, %v316
    %v333 = vmax.f32 %v301, %v317
    %v334 = vmax.f32 %v302, %v318
    %v335 = vmax.f32 %v303, %v319
    %v336 = vmax.f32 %v304, %v320
    %v337 = vmax.f32 %v305, %v321
    %v338 = vmax.f32 %v306, %v322
    %v339 = vmax.f32 %v307, %v323
    %v340 = vmax.f32 %v308, %v324
    %v341 = vmax.f32 %v309, %v325
    %v342 = vmax.f32 %v310, %v326
    %v343 = vmax.f32 %v311, %v327
    %v344 = vmax.f32 %v312, %v328
    %v345 = vmax.f32 %v313, %v329
    %v346 = vmax.f32 %v314, %v330
    %v347 = vpack.c.bf16 %v332, %v331
    %v348 = vpack.c.bf16 %v334, %v333
    %v349 = vpack.c.bf16 %v336, %v335
    %v350 = vpack.c.bf16 %v338, %v337
    %v351 = vpack.c.bf16 %v340, %v339
    %v352 = vpack.c.bf16 %v342, %v341
    %v353 = vpack.c.bf16 %v344, %v343
    %v354 = vpack.c.bf16 %v346, %v345
    %v355 = vld [vmem:[%s4] sm:$0xff]
    %v356 = vld [vmem:[%s4 + $0x8] sm:$0xff]
    %v357 = vld [vmem:[%s4 + $0x10] sm:$0xff]
    %v358 = vld [vmem:[%s4 + $0x18] sm:$0xff]
    %v359 = vld [vmem:[%s4 + $0x20] sm:$0xff]
    %v360 = vld [vmem:[%s4 + $0x28] sm:$0xff]
    %v361 = vld [vmem:[%s4 + $0x30] sm:$0xff]
    %v362 = vld [vmem:[%s4 + $0x38] sm:$0xff]
    %v363 = vld [vmem:[%s4 + $0x40] sm:$0xff]
    %v364 = vld [vmem:[%s4 + $0x48] sm:$0xff]
    %v365 = vld [vmem:[%s4 + $0x50] sm:$0xff]
    %v366 = vld [vmem:[%s4 + $0x58] sm:$0xff]
    %v367 = vld [vmem:[%s4 + $0x60] sm:$0xff]
    %v368 = vld [vmem:[%s4 + $0x68] sm:$0xff]
    %v369 = vld [vmem:[%s4 + $0x70] sm:$0xff]
    %v370 = vld [vmem:[%s4 + $0x78] sm:$0xff]
    %v387 = vunpack.c.l.b16 %v355
    %v388 = vunpack.c.h.b16 %v355
    %v389 = vunpack.c.l.b16 %v356
    %v390 = vunpack.c.h.b16 %v356
    %v391 = vunpack.c.l.b16 %v357
    %v392 = vunpack.c.h.b16 %v357
    %v393 = vunpack.c.l.b16 %v358
    %v394 = vunpack.c.h.b16 %v358
    %v395 = vunpack.c.l.b16 %v359
    %v396 = vunpack.c.h.b16 %v359
    %v397 = vunpack.c.l.b16 %v360
    %v398 = vunpack.c.h.b16 %v360
    %v399 = vunpack.c.l.b16 %v361
    %v400 = vunpack.c.h.b16 %v361
    %v401 = vunpack.c.l.b16 %v362
    %v402 = vunpack.c.h.b16 %v362
    %v403 = vunpack.c.l.b16 %v363
    %v404 = vunpack.c.h.b16 %v363
    %v405 = vunpack.c.l.b16 %v364
    %v406 = vunpack.c.h.b16 %v364
    %v407 = vunpack.c.l.b16 %v365
    %v408 = vunpack.c.h.b16 %v365
    %v409 = vunpack.c.l.b16 %v366
    %v410 = vunpack.c.h.b16 %v366
    %v411 = vunpack.c.l.b16 %v367
    %v412 = vunpack.c.h.b16 %v367
    %v413 = vunpack.c.l.b16 %v368
    %v414 = vunpack.c.h.b16 %v368
    %v415 = vunpack.c.l.b16 %v369
    %v416 = vunpack.c.h.b16 %v369
    %v417 = vunpack.c.l.b16 %v370
    %v418 = vunpack.c.h.b16 %v370
    %v419 = vpack.c.b16 %v389, %v387
    %v420 = vpack.c.b16 %v390, %v388
    %v421 = vpack.c.b16 %v393, %v391
    %v422 = vpack.c.b16 %v394, %v392
    %v423 = vpack.c.b16 %v397, %v395
    %v424 = vpack.c.b16 %v398, %v396
    %v425 = vpack.c.b16 %v401, %v399
    %v426 = vpack.c.b16 %v402, %v400
    %v427 = vpack.c.b16 %v405, %v403
    %v428 = vpack.c.b16 %v406, %v404
    %v429 = vpack.c.b16 %v409, %v407
    %v430 = vpack.c.b16 %v410, %v408
    %v431 = vpack.c.b16 %v413, %v411
    %v432 = vpack.c.b16 %v414, %v412
    %v433 = vpack.c.b16 %v417, %v415
    %v434 = vpack.c.b16 %v418, %v416
    %451 = vmatpush.bf16.msra.mxu0 %v433
    %452 = vmatpush.bf16.msra.mxu0 %v431
    %453 = vmatpush.bf16.msra.mxu0 %v429
    %454 = vmatpush.bf16.msra.mxu0 %v427
    %455 = vmatpush.bf16.msra.mxu0 %v425
    %456 = vmatpush.bf16.msra.mxu0 %v423
    %457 = vmatpush.bf16.msra.mxu0 %v421
    %458 = vmatpush.bf16.msra.mxu0 %v419
    %459 = vmatmul.bf16.gmra.mxu0 %v347
    %v460 = vpop.f32.mrf.mxu0
    %v461 = vadd.f32 0.0, %v460
    %v462 = vpop.f32.mrf.mxu0
    %v463 = vadd.f32 0.0, %v462
    %464 = vmatmul.bf16.gmra.mxu0 %v348
    %v465 = vpop.f32.mrf.mxu0
    %v466 = vadd.f32 0.0, %v465
    %v467 = vpop.f32.mrf.mxu0
    %v468 = vadd.f32 0.0, %v467
    %469 = vmatmul.bf16.gmra.mxu0 %v349
    %v470 = vpop.f32.mrf.mxu0
    %v471 = vadd.f32 0.0, %v470
    %v472 = vpop.f32.mrf.mxu0
    %v473 = vadd.f32 0.0, %v472
    %474 = vmatmul.bf16.gmra.mxu0 %v350
    %v475 = vpop.f32.mrf.mxu0
    %v476 = vadd.f32 0.0, %v475
    %v477 = vpop.f32.mrf.mxu0
    %v478 = vadd.f32 0.0, %v477
    %479 = vmatmul.bf16.gmra.mxu0 %v351
    %v480 = vpop.f32.mrf.mxu0
    %v481 = vadd.f32 0.0, %v480
    %v482 = vpop.f32.mrf.mxu0
    %v483 = vadd.f32 0.0, %v482
    %484 = vmatmul.bf16.gmra.mxu0 %v352
    %v485 = vpop.f32.mrf.mxu0
    %v486 = vadd.f32 0.0, %v485
    %v487 = vpop.f32.mrf.mxu0
    %v488 = vadd.f32 0.0, %v487
    %489 = vmatmul.bf16.gmra.mxu0 %v353
    %v490 = vpop.f32.mrf.mxu0
    %v491 = vadd.f32 0.0, %v490
    %v492 = vpop.f32.mrf.mxu0
    %v493 = vadd.f32 0.0, %v492
    %494 = vmatmul.bf16.gmra.mxu0 %v354
    %v495 = vpop.f32.mrf.mxu0
    %v496 = vadd.f32 0.0, %v495
    %v497 = vpop.f32.mrf.mxu0
    %v498 = vadd.f32 0.0, %v497
    %499 = vdwg.mxu0
    %500 = vmatpush.bf16.msra.mxu0 %v434
    %501 = vmatpush.bf16.msra.mxu0 %v432
    %502 = vmatpush.bf16.msra.mxu0 %v430
    %503 = vmatpush.bf16.msra.mxu0 %v428
    %504 = vmatpush.bf16.msra.mxu0 %v426
    %505 = vmatpush.bf16.msra.mxu0 %v424
    %506 = vmatpush.bf16.msra.mxu0 %v422
    %507 = vmatpush.bf16.msra.mxu0 %v420
    %508 = vmatmul.bf16.gmra.mxu0 %v347
    %v509 = vpop.f32.mrf.mxu0
    %v510 = vadd.f32 0.0, %v509
    %v511 = vpop.f32.mrf.mxu0
    %v512 = vadd.f32 0.0, %v511
    %513 = vmatmul.bf16.gmra.mxu0 %v348
    %v514 = vpop.f32.mrf.mxu0
    %v515 = vadd.f32 0.0, %v514
    %v516 = vpop.f32.mrf.mxu0
    %v517 = vadd.f32 0.0, %v516
    %518 = vmatmul.bf16.gmra.mxu0 %v349
    %v519 = vpop.f32.mrf.mxu0
    %v520 = vadd.f32 0.0, %v519
    %v521 = vpop.f32.mrf.mxu0
    %v522 = vadd.f32 0.0, %v521
    %523 = vmatmul.bf16.gmra.mxu0 %v350
    %v524 = vpop.f32.mrf.mxu0
    %v525 = vadd.f32 0.0, %v524
    %v526 = vpop.f32.mrf.mxu0
    %v527 = vadd.f32 0.0, %v526
    %528 = vmatmul.bf16.gmra.mxu0 %v351
    %v529 = vpop.f32.mrf.mxu0
    %v530 = vadd.f32 0.0, %v529
    %v531 = vpop.f32.mrf.mxu0
    %v532 = vadd.f32 0.0, %v531
    %533 = vmatmul.bf16.gmra.mxu0 %v352
    %v534 = vpop.f32.mrf.mxu0
    %v535 = vadd.f32 0.0, %v534
    %v536 = vpop.f32.mrf.mxu0
    %v537 = vadd.f32 0.0, %v536
    %538 = vmatmul.bf16.gmra.mxu0 %v353
    %v539 = vpop.f32.mrf.mxu0
    %v540 = vadd.f32 0.0, %v539
    %v541 = vpop.f32.mrf.mxu0
    %v542 = vadd.f32 0.0, %v541
    %543 = vmatmul.bf16.gmra.mxu0 %v354
    %v544 = vpop.f32.mrf.mxu0
    %v545 = vadd.f32 0.0, %v544
    %v546 = vpop.f32.mrf.mxu0
    %v547 = vadd.f32 0.0, %v546
    %548 = vdwg.mxu0
    %v549 = vld [vmem:[%s5] sm:$0x3]
    %v550 = vld [vmem:[%s6] sm:$0x3]
    %551 = vmatpush.msra.mxu0 %v498
    %552 = vmatpush.msra.mxu0 %v496
    %553 = vmatpush.msra.mxu0 %v493
    %554 = vmatpush.msra.mxu0 %v491
    %555 = vmatpush.msra.mxu0 %v488
    %556 = vmatpush.msra.mxu0 %v486
    %557 = vmatpush.msra.mxu0 %v483
    %558 = vmatpush.msra.mxu0 %v481
    %559 = vmatpush.msra.mxu0 %v478
    %560 = vmatpush.msra.mxu0 %v476
    %561 = vmatpush.msra.mxu0 %v473
    %562 = vmatpush.msra.mxu0 %v471
    %563 = vmatpush.msra.mxu0 %v468
    %564 = vmatpush.msra.mxu0 %v466
    %565 = vmatpush.msra.mxu0 %v463
    %566 = vmatpush.msra.mxu0 %v461
    %567 = vmatmul.f32.gmra.mxu0 1.0
    %v568 = vpop.f32.mrf.mxu0
    %v569 = vadd.f32 0.0, %v568
    %570 = vdwg.mxu0
    %571 = vmatpush.msra.mxu0 %v547
    %572 = vmatpush.msra.mxu0 %v545
    %573 = vmatpush.msra.mxu0 %v542
    %574 = vmatpush.msra.mxu0 %v540
    %575 = vmatpush.msra.mxu0 %v537
    %576 = vmatpush.msra.mxu0 %v535
    %577 = vmatpush.msra.mxu0 %v532
    %578 = vmatpush.msra.mxu0 %v530
    %579 = vmatpush.msra.mxu0 %v527
    %580 = vmatpush.msra.mxu0 %v525
    %581 = vmatpush.msra.mxu0 %v522
    %582 = vmatpush.msra.mxu0 %v520
    %583 = vmatpush.msra.mxu0 %v517
    %584 = vmatpush.msra.mxu0 %v515
    %585 = vmatpush.msra.mxu0 %v512
    %586 = vmatpush.msra.mxu0 %v510
    %587 = vmatmul.f32.gmra.mxu0 1.0
    %v588 = vpop.f32.mrf.mxu0
    %v589 = vadd.f32 0.0, %v588
    %590 = vdwg.mxu0
    %v591 = vmul.f32 %v461, %v461
    %v592 = vmul.f32 %v510, %v510
    %v593 = vmul.f32 %v463, %v463
    %v594 = vmul.f32 %v512, %v512
    %v595 = vmul.f32 %v466, %v466
    %v596 = vmul.f32 %v515, %v515
    %v597 = vmul.f32 %v468, %v468
    %v598 = vmul.f32 %v517, %v517
    %v599 = vmul.f32 %v471, %v471
    %v600 = vmul.f32 %v520, %v520
    %v601 = vmul.f32 %v473, %v473
    %v602 = vmul.f32 %v522, %v522
    %v603 = vmul.f32 %v476, %v476
    %v604 = vmul.f32 %v525, %v525
    %v605 = vmul.f32 %v478, %v478
    %v606 = vmul.f32 %v527, %v527
    %v607 = vmul.f32 %v481, %v481
    %v608 = vmul.f32 %v530, %v530
    %v609 = vmul.f32 %v483, %v483
    %v610 = vmul.f32 %v532, %v532
    %v611 = vmul.f32 %v486, %v486
    %v612 = vmul.f32 %v535, %v535
    %v613 = vmul.f32 %v488, %v488
    %v614 = vmul.f32 %v537, %v537
    %v615 = vmul.f32 %v491, %v491
    %v616 = vmul.f32 %v540, %v540
    %v617 = vmul.f32 %v493, %v493
    %v618 = vmul.f32 %v542, %v542
    %v619 = vmul.f32 %v496, %v496
    %v620 = vmul.f32 %v545, %v545
    %v621 = vmul.f32 %v498, %v498
    %v622 = vmul.f32 %v547, %v547
    %623 = vmatpush.msra.mxu0 %v621
    %624 = vmatpush.msra.mxu0 %v619
    %625 = vmatpush.msra.mxu0 %v617
    %626 = vmatpush.msra.mxu0 %v615
    %627 = vmatpush.msra.mxu0 %v613
    %628 = vmatpush.msra.mxu0 %v611
    %629 = vmatpush.msra.mxu0 %v609
    %630 = vmatpush.msra.mxu0 %v607
    %631 = vmatpush.msra.mxu0 %v605
    %632 = vmatpush.msra.mxu0 %v603
    %633 = vmatpush.msra.mxu0 %v601
    %634 = vmatpush.msra.mxu0 %v599
    %635 = vmatpush.msra.mxu0 %v597
    %636 = vmatpush.msra.mxu0 %v595
    %637 = vmatpush.msra.mxu0 %v593
    %638 = vmatpush.msra.mxu0 %v591
    %639 = vmatmul.f32.gmra.mxu0 1.0
    %v640 = vpop.f32.mrf.mxu0
    %v641 = vadd.f32 0.0, %v640
    %642 = vdwg.mxu0
    %643 = vmatpush.msra.mxu0 %v622
    %644 = vmatpush.msra.mxu0 %v620
    %645 = vmatpush.msra.mxu0 %v618
    %646 = vmatpush.msra.mxu0 %v616
    %647 = vmatpush.msra.mxu0 %v614
    %648 = vmatpush.msra.mxu0 %v612
    %649 = vmatpush.msra.mxu0 %v610
    %650 = vmatpush.msra.mxu0 %v608
    %651 = vmatpush.msra.mxu0 %v606
    %652 = vmatpush.msra.mxu0 %v604
    %653 = vmatpush.msra.mxu0 %v602
    %654 = vmatpush.msra.mxu0 %v600
    %655 = vmatpush.msra.mxu0 %v598
    %656 = vmatpush.msra.mxu0 %v596
    %657 = vmatpush.msra.mxu0 %v594
    %658 = vmatpush.msra.mxu0 %v592
    %659 = vmatmul.f32.gmra.mxu0 1.0
    %v660 = vpop.f32.mrf.mxu0
    %v661 = vadd.f32 0.0, %v660
    %662 = vdwg.mxu0
    %v663 = vmul.f32 %v569, 0.0078125
    %v664 = vmul.f32 %v589, 0.0078125
    %v665 = vmul.f32 %v641, 0.0078125
    %v666 = vmul.f32 %v661, 0.0078125
    %v667 = vmul.f32 %v663, %v663
    %v668 = vmul.f32 %v664, %v664
    %v669 = vsub.f32 %v665, %v667
    %v670 = vsub.f32 %v666, %v668
    %v671 = vmax.f32 %v669, 0.0
    %v672 = vmax.f32 %v670, 0.0
    %v673 = vadd.f32 %v671, 1e-05
    %v674 = vadd.f32 %v672, 1e-05
    %v675 = vrsqrt.pop %v673
    %v676 = vmul.f32 %v675, %v673
    %v677 = vmul.f32 %v676, %v675
    %v678 = vmul.f32 0.5, %v677
    %v679 = vsub.f32 1.5, %v678
    %v680 = vmul.f32 %v675, %v679
    %vm681 = vweird.f32 %v673
    %vm682 = vweird.f32 %v675
    %vm683 = vmor %vm681, %vm682
    %v684 = vsel %vm683, %v675, %v680
    %v685 = vrsqrt.pop %v674
    %v686 = vmul.f32 %v685, %v674
    %v687 = vmul.f32 %v686, %v685
    %v688 = vmul.f32 0.5, %v687
    %v689 = vsub.f32 1.5, %v688
    %v690 = vmul.f32 %v685, %v689
    %vm691 = vweird.f32 %v674
    %vm692 = vweird.f32 %v685
    %vm693 = vmor %vm691, %vm692
    %v694 = vsel %vm693, %v685, %v690
    %v696 = vperm.slane %v549, 0
    %v697 = vperm.slane %v549, 1
    %v700 = vmul.f32 %v684, %v696
    %v701 = vmul.f32 %v694, %v697
    %v702 = vperm.slane %v663, 0
    %v703 = vperm.slane %v664, 0
    %v704 = vsub.f32 %v461, %v702
    %v705 = vsub.f32 %v510, %v703
    %v706 = vsub.f32 %v463, %v702
    %v707 = vsub.f32 %v512, %v703
    %v708 = vsub.f32 %v466, %v702
    %v709 = vsub.f32 %v515, %v703
    %v710 = vsub.f32 %v468, %v702
    %v711 = vsub.f32 %v517, %v703
    %v712 = vsub.f32 %v471, %v702
    %v713 = vsub.f32 %v520, %v703
    %v714 = vsub.f32 %v473, %v702
    %v715 = vsub.f32 %v522, %v703
    %v716 = vsub.f32 %v476, %v702
    %v717 = vsub.f32 %v525, %v703
    %v718 = vsub.f32 %v478, %v702
    %v719 = vsub.f32 %v527, %v703
    %v720 = vsub.f32 %v481, %v702
    %v721 = vsub.f32 %v530, %v703
    %v722 = vsub.f32 %v483, %v702
    %v723 = vsub.f32 %v532, %v703
    %v724 = vsub.f32 %v486, %v702
    %v725 = vsub.f32 %v535, %v703
    %v726 = vsub.f32 %v488, %v702
    %v727 = vsub.f32 %v537, %v703
    %v728 = vsub.f32 %v491, %v702
    %v729 = vsub.f32 %v540, %v703
    %v730 = vsub.f32 %v493, %v702
    %v731 = vsub.f32 %v542, %v703
    %v732 = vsub.f32 %v496, %v702
    %v733 = vsub.f32 %v545, %v703
    %v734 = vsub.f32 %v498, %v702
    %v735 = vsub.f32 %v547, %v703
    %v736 = vperm.slane %v700, 0
    %v737 = vperm.slane %v701, 0
    %v738 = vmul.f32 %v704, %v736
    %v739 = vmul.f32 %v705, %v737
    %v740 = vmul.f32 %v706, %v736
    %v741 = vmul.f32 %v707, %v737
    %v742 = vmul.f32 %v708, %v736
    %v743 = vmul.f32 %v709, %v737
    %v744 = vmul.f32 %v710, %v736
    %v745 = vmul.f32 %v711, %v737
    %v746 = vmul.f32 %v712, %v736
    %v747 = vmul.f32 %v713, %v737
    %v748 = vmul.f32 %v714, %v736
    %v749 = vmul.f32 %v715, %v737
    %v750 = vmul.f32 %v716, %v736
    %v751 = vmul.f32 %v717, %v737
    %v752 = vmul.f32 %v718, %v736
    %v753 = vmul.f32 %v719, %v737
    %v754 = vmul.f32 %v720, %v736
    %v755 = vmul.f32 %v721, %v737
    %v756 = vmul.f32 %v722, %v736
    %v757 = vmul.f32 %v723, %v737
    %v758 = vmul.f32 %v724, %v736
    %v759 = vmul.f32 %v725, %v737
    %v760 = vmul.f32 %v726, %v736
    %v761 = vmul.f32 %v727, %v737
    %v762 = vmul.f32 %v728, %v736
    %v763 = vmul.f32 %v729, %v737
    %v764 = vmul.f32 %v730, %v736
    %v765 = vmul.f32 %v731, %v737
    %v766 = vmul.f32 %v732, %v736
    %v767 = vmul.f32 %v733, %v737
    %v768 = vmul.f32 %v734, %v736
    %v769 = vmul.f32 %v735, %v737
    %v771 = vperm.slane %v550, 0
    %v772 = vperm.slane %v550, 1
    %v775 = vadd.f32 %v738, %v771
    %v776 = vadd.f32 %v739, %v772
    %v777 = vadd.f32 %v740, %v771
    %v778 = vadd.f32 %v741, %v772
    %v779 = vadd.f32 %v742, %v771
    %v780 = vadd.f32 %v743, %v772
    %v781 = vadd.f32 %v744, %v771
    %v782 = vadd.f32 %v745, %v772
    %v783 = vadd.f32 %v746, %v771
    %v784 = vadd.f32 %v747, %v772
    %v785 = vadd.f32 %v748, %v771
    %v786 = vadd.f32 %v749, %v772
    %v787 = vadd.f32 %v750, %v771
    %v788 = vadd.f32 %v751, %v772
    %v789 = vadd.f32 %v752, %v771
    %v790 = vadd.f32 %v753, %v772
    %v791 = vadd.f32 %v754, %v771
    %v792 = vadd.f32 %v755, %v772
    %v793 = vadd.f32 %v756, %v771
    %v794 = vadd.f32 %v757, %v772
    %v795 = vadd.f32 %v758, %v771
    %v796 = vadd.f32 %v759, %v772
    %v797 = vadd.f32 %v760, %v771
    %v798 = vadd.f32 %v761, %v772
    %v799 = vadd.f32 %v762, %v771
    %v800 = vadd.f32 %v763, %v772
    %v801 = vadd.f32 %v764, %v771
    %v802 = vadd.f32 %v765, %v772
    %v803 = vadd.f32 %v766, %v771
    %v804 = vadd.f32 %v767, %v772
    %v805 = vadd.f32 %v768, %v771
    %v806 = vadd.f32 %v769, %v772
    %v807 = vmul.f32 %v775, 0.01
    %v808 = vmul.f32 %v776, 0.01
    %v809 = vmul.f32 %v777, 0.01
    %v810 = vmul.f32 %v778, 0.01
    %v811 = vmul.f32 %v779, 0.01
    %v812 = vmul.f32 %v780, 0.01
    %v813 = vmul.f32 %v781, 0.01
    %v814 = vmul.f32 %v782, 0.01
    %v815 = vmul.f32 %v783, 0.01
    %v816 = vmul.f32 %v784, 0.01
    %v817 = vmul.f32 %v785, 0.01
    %v818 = vmul.f32 %v786, 0.01
    %v819 = vmul.f32 %v787, 0.01
    %v820 = vmul.f32 %v788, 0.01
    %v821 = vmul.f32 %v789, 0.01
    %v822 = vmul.f32 %v790, 0.01
    %v823 = vmul.f32 %v791, 0.01
    %v824 = vmul.f32 %v792, 0.01
    %v825 = vmul.f32 %v793, 0.01
    %v826 = vmul.f32 %v794, 0.01
    %v827 = vmul.f32 %v795, 0.01
    %v828 = vmul.f32 %v796, 0.01
    %v829 = vmul.f32 %v797, 0.01
    %v830 = vmul.f32 %v798, 0.01
    %v831 = vmul.f32 %v799, 0.01
    %v832 = vmul.f32 %v800, 0.01
    %v833 = vmul.f32 %v801, 0.01
    %v834 = vmul.f32 %v802, 0.01
    %v835 = vmul.f32 %v803, 0.01
    %v836 = vmul.f32 %v804, 0.01
    %v837 = vmul.f32 %v805, 0.01
    %v838 = vmul.f32 %v806, 0.01
    %v839 = vmax.f32 %v775, %v807
    %v840 = vmax.f32 %v776, %v808
    %v841 = vmax.f32 %v777, %v809
    %v842 = vmax.f32 %v778, %v810
    %v843 = vmax.f32 %v779, %v811
    %v844 = vmax.f32 %v780, %v812
    %v845 = vmax.f32 %v781, %v813
    %v846 = vmax.f32 %v782, %v814
    %v847 = vmax.f32 %v783, %v815
    %v848 = vmax.f32 %v784, %v816
    %v849 = vmax.f32 %v785, %v817
    %v850 = vmax.f32 %v786, %v818
    %v851 = vmax.f32 %v787, %v819
    %v852 = vmax.f32 %v788, %v820
    %v853 = vmax.f32 %v789, %v821
    %v854 = vmax.f32 %v790, %v822
    %v855 = vmax.f32 %v791, %v823
    %v856 = vmax.f32 %v792, %v824
    %v857 = vmax.f32 %v793, %v825
    %v858 = vmax.f32 %v794, %v826
    %v859 = vmax.f32 %v795, %v827
    %v860 = vmax.f32 %v796, %v828
    %v861 = vmax.f32 %v797, %v829
    %v862 = vmax.f32 %v798, %v830
    %v863 = vmax.f32 %v799, %v831
    %v864 = vmax.f32 %v800, %v832
    %v865 = vmax.f32 %v801, %v833
    %v866 = vmax.f32 %v802, %v834
    %v867 = vmax.f32 %v803, %v835
    %v868 = vmax.f32 %v804, %v836
    %v869 = vmax.f32 %v805, %v837
    %v870 = vmax.f32 %v806, %v838
    %v871 = vpack.c.bf16 %v841, %v839
    %v872 = vpack.c.bf16 %v842, %v840
    %v873 = vpack.c.bf16 %v845, %v843
    %v874 = vpack.c.bf16 %v846, %v844
    %v875 = vpack.c.bf16 %v849, %v847
    %v876 = vpack.c.bf16 %v850, %v848
    %v877 = vpack.c.bf16 %v853, %v851
    %v878 = vpack.c.bf16 %v854, %v852
    %v879 = vpack.c.bf16 %v857, %v855
    %v880 = vpack.c.bf16 %v858, %v856
    %v881 = vpack.c.bf16 %v861, %v859
    %v882 = vpack.c.bf16 %v862, %v860
    %v883 = vpack.c.bf16 %v865, %v863
    %v884 = vpack.c.bf16 %v866, %v864
    %v885 = vpack.c.bf16 %v869, %v867
    %v886 = vpack.c.bf16 %v870, %v868
    %v887 = vld [vmem:[#allocation2] sm:$0xff]
    %v888 = vld [vmem:[#allocation2 + $0x8] sm:$0xff]
    %v889 = vld [vmem:[#allocation2 + $0x10] sm:$0xff]
    %v890 = vld [vmem:[#allocation2 + $0x18] sm:$0xff]
    %v891 = vld [vmem:[#allocation2 + $0x20] sm:$0xff]
    %v892 = vld [vmem:[#allocation2 + $0x28] sm:$0xff]
    %v893 = vld [vmem:[#allocation2 + $0x30] sm:$0xff]
    %v894 = vld [vmem:[#allocation2 + $0x38] sm:$0xff]
    %v895 = vld [vmem:[#allocation2 + $0x40] sm:$0xff]
    %v896 = vld [vmem:[#allocation2 + $0x48] sm:$0xff]
    %v897 = vld [vmem:[#allocation2 + $0x50] sm:$0xff]
    %v898 = vld [vmem:[#allocation2 + $0x58] sm:$0xff]
    %v899 = vld [vmem:[#allocation2 + $0x60] sm:$0xff]
    %v900 = vld [vmem:[#allocation2 + $0x68] sm:$0xff]
    %v901 = vld [vmem:[#allocation2 + $0x70] sm:$0xff]
    %v902 = vld [vmem:[#allocation2 + $0x78] sm:$0xff]
    %v903 = vld [vmem:[#allocation2 + $0x80] sm:$0xff]
    %v904 = vld [vmem:[#allocation2 + $0x88] sm:$0xff]
    %v905 = vld [vmem:[#allocation2 + $0x90] sm:$0xff]
    %v906 = vld [vmem:[#allocation2 + $0x98] sm:$0xff]
    %v907 = vld [vmem:[#allocation2 + $0xa0] sm:$0xff]
    %v908 = vld [vmem:[#allocation2 + $0xa8] sm:$0xff]
    %v909 = vld [vmem:[#allocation2 + $0xb0] sm:$0xff]
    %v910 = vld [vmem:[#allocation2 + $0xb8] sm:$0xff]
    %v911 = vld [vmem:[#allocation2 + $0xc0] sm:$0xff]
    %v912 = vld [vmem:[#allocation2 + $0xc8] sm:$0xff]
    %v913 = vld [vmem:[#allocation2 + $0xd0] sm:$0xff]
    %v914 = vld [vmem:[#allocation2 + $0xd8] sm:$0xff]
    %v915 = vld [vmem:[#allocation2 + $0xe0] sm:$0xff]
    %v916 = vld [vmem:[#allocation2 + $0xe8] sm:$0xff]
    %v917 = vld [vmem:[#allocation2 + $0xf0] sm:$0xff]
    %v918 = vld [vmem:[#allocation2 + $0xf8] sm:$0xff]
    %v919 = vld [vmem:[#allocation2 + $0x100] sm:$0xff]
    %v920 = vld [vmem:[#allocation2 + $0x108] sm:$0xff]
    %v921 = vld [vmem:[#allocation2 + $0x110] sm:$0xff]
    %v922 = vld [vmem:[#allocation2 + $0x118] sm:$0xff]
    %v923 = vld [vmem:[#allocation2 + $0x120] sm:$0xff]
    %v924 = vld [vmem:[#allocation2 + $0x128] sm:$0xff]
    %v925 = vld [vmem:[#allocation2 + $0x130] sm:$0xff]
    %v926 = vld [vmem:[#allocation2 + $0x138] sm:$0xff]
    %v927 = vld [vmem:[#allocation2 + $0x140] sm:$0xff]
    %v928 = vld [vmem:[#allocation2 + $0x148] sm:$0xff]
    %v929 = vld [vmem:[#allocation2 + $0x150] sm:$0xff]
    %v930 = vld [vmem:[#allocation2 + $0x158] sm:$0xff]
    %v931 = vld [vmem:[#allocation2 + $0x160] sm:$0xff]
    %v932 = vld [vmem:[#allocation2 + $0x168] sm:$0xff]
    %v933 = vld [vmem:[#allocation2 + $0x170] sm:$0xff]
    %v934 = vld [vmem:[#allocation2 + $0x178] sm:$0xff]
    %v935 = vld [vmem:[#allocation2 + $0x180] sm:$0xff]
    %v936 = vld [vmem:[#allocation2 + $0x188] sm:$0xff]
    %v937 = vld [vmem:[#allocation2 + $0x190] sm:$0xff]
    %v938 = vld [vmem:[#allocation2 + $0x198] sm:$0xff]
    %v939 = vld [vmem:[#allocation2 + $0x1a0] sm:$0xff]
    %v940 = vld [vmem:[#allocation2 + $0x1a8] sm:$0xff]
    %v941 = vld [vmem:[#allocation2 + $0x1b0] sm:$0xff]
    %v942 = vld [vmem:[#allocation2 + $0x1b8] sm:$0xff]
    %v943 = vld [vmem:[#allocation2 + $0x1c0] sm:$0xff]
    %v944 = vld [vmem:[#allocation2 + $0x1c8] sm:$0xff]
    %v945 = vld [vmem:[#allocation2 + $0x1d0] sm:$0xff]
    %v946 = vld [vmem:[#allocation2 + $0x1d8] sm:$0xff]
    %v947 = vld [vmem:[#allocation2 + $0x1e0] sm:$0xff]
    %v948 = vld [vmem:[#allocation2 + $0x1e8] sm:$0xff]
    %v949 = vld [vmem:[#allocation2 + $0x1f0] sm:$0xff]
    %v950 = vld [vmem:[#allocation2 + $0x1f8] sm:$0xff]
    %v1015 = vunpack.c.l.b16 %v887
    %v1016 = vunpack.c.h.b16 %v887
    %v1017 = vunpack.c.l.b16 %v888
    %v1018 = vunpack.c.h.b16 %v888
    %v1019 = vunpack.c.l.b16 %v889
    %v1020 = vunpack.c.h.b16 %v889
    %v1021 = vunpack.c.l.b16 %v890
    %v1022 = vunpack.c.h.b16 %v890
    %v1023 = vunpack.c.l.b16 %v891
    %v1024 = vunpack.c.h.b16 %v891
    %v1025 = vunpack.c.l.b16 %v892
    %v1026 = vunpack.c.h.b16 %v892
    %v1027 = vunpack.c.l.b16 %v893
    %v1028 = vunpack.c.h.b16 %v893
    %v1029 = vunpack.c.l.b16 %v894
    %v1030 = vunpack.c.h.b16 %v894
    %v1031 = vunpack.c.l.b16 %v895
    %v1032 = vunpack.c.h.b16 %v895
    %v1033 = vunpack.c.l.b16 %v896
    %v1034 = vunpack.c.h.b16 %v896
    %v1035 = vunpack.c.l.b16 %v897
    %v1036 = vunpack.c.h.b16 %v897
    %v1037 = vunpack.c.l.b16 %v898
    %v1038 = vunpack.c.h.b16 %v898
    %v1039 = vunpack.c.l.b16 %v899
    %v1040 = vunpack.c.h.b16 %v899
    %v1041 = vunpack.c.l.b16 %v900
    %v1042 = vunpack.c.h.b16 %v900
    %v1043 = vunpack.c.l.b16 %v901
    %v1044 = vunpack.c.h.b16 %v901
    %v1045 = vunpack.c.l.b16 %v902
    %v1046 = vunpack.c.h.b16 %v902
    %v1047 = vunpack.c.l.b16 %v903
    %v1048 = vunpack.c.h.b16 %v903
    %v1049 = vunpack.c.l.b16 %v904
    %v1050 = vunpack.c.h.b16 %v904
    %v1051 = vunpack.c.l.b16 %v905
    %v1052 = vunpack.c.h.b16 %v905
    %v1053 = vunpack.c.l.b16 %v906
    %v1054 = vunpack.c.h.b16 %v906
    %v1055 = vunpack.c.l.b16 %v907
    %v1056 = vunpack.c.h.b16 %v907
    %v1057 = vunpack.c.l.b16 %v908
    %v1058 = vunpack.c.h.b16 %v908
    %v1059 = vunpack.c.l.b16 %v909
    %v1060 = vunpack.c.h.b16 %v909
    %v1061 = vunpack.c.l.b16 %v910
    %v1062 = vunpack.c.h.b16 %v910
    %v1063 = vunpack.c.l.b16 %v911
    %v1064 = vunpack.c.h.b16 %v911
    %v1065 = vunpack.c.l.b16 %v912
    %v1066 = vunpack.c.h.b16 %v912
    %v1067 = vunpack.c.l.b16 %v913
    %v1068 = vunpack.c.h.b16 %v913
    %v1069 = vunpack.c.l.b16 %v914
    %v1070 = vunpack.c.h.b16 %v914
    %v1071 = vunpack.c.l.b16 %v915
    %v1072 = vunpack.c.h.b16 %v915
    %v1073 = vunpack.c.l.b16 %v916
    %v1074 = vunpack.c.h.b16 %v916
    %v1075 = vunpack.c.l.b16 %v917
    %v1076 = vunpack.c.h.b16 %v917
    %v1077 = vunpack.c.l.b16 %v918
    %v1078 = vunpack.c.h.b16 %v918
    %v1079 = vunpack.c.l.b16 %v919
    %v1080 = vunpack.c.h.b16 %v919
    %v1081 = vunpack.c.l.b16 %v920
    %v1082 = vunpack.c.h.b16 %v920
    %v1083 = vunpack.c.l.b16 %v921
    %v1084 = vunpack.c.h.b16 %v921
    %v1085 = vunpack.c.l.b16 %v922
    %v1086 = vunpack.c.h.b16 %v922
    %v1087 = vunpack.c.l.b16 %v923
    %v1088 = vunpack.c.h.b16 %v923
    %v1089 = vunpack.c.l.b16 %v924
    %v1090 = vunpack.c.h.b16 %v924
    %v1091 = vunpack.c.l.b16 %v925
    %v1092 = vunpack.c.h.b16 %v925
    %v1093 = vunpack.c.l.b16 %v926
    %v1094 = vunpack.c.h.b16 %v926
    %v1095 = vunpack.c.l.b16 %v927
    %v1096 = vunpack.c.h.b16 %v927
    %v1097 = vunpack.c.l.b16 %v928
    %v1098 = vunpack.c.h.b16 %v928
    %v1099 = vunpack.c.l.b16 %v929
    %v1100 = vunpack.c.h.b16 %v929
    %v1101 = vunpack.c.l.b16 %v930
    %v1102 = vunpack.c.h.b16 %v930
    %v1103 = vunpack.c.l.b16 %v931
    %v1104 = vunpack.c.h.b16 %v931
    %v1105 = vunpack.c.l.b16 %v932
    %v1106 = vunpack.c.h.b16 %v932
    %v1107 = vunpack.c.l.b16 %v933
    %v1108 = vunpack.c.h.b16 %v933
    %v1109 = vunpack.c.l.b16 %v934
    %v1110 = vunpack.c.h.b16 %v934
    %v1111 = vunpack.c.l.b16 %v935
    %v1112 = vunpack.c.h.b16 %v935
    %v1113 = vunpack.c.l.b16 %v936
    %v1114 = vunpack.c.h.b16 %v936
    %v1115 = vunpack.c.l.b16 %v937
    %v1116 = vunpack.c.h.b16 %v937
    %v1117 = vunpack.c.l.b16 %v938
    %v1118 = vunpack.c.h.b16 %v938
    %v1119 = vunpack.c.l.b16 %v939
    %v1120 = vunpack.c.h.b16 %v939
    %v1121 = vunpack.c.l.b16 %v940
    %v1122 = vunpack.c.h.b16 %v940
    %v1123 = vunpack.c.l.b16 %v941
    %v1124 = vunpack.c.h.b16 %v941
    %v1125 = vunpack.c.l.b16 %v942
    %v1126 = vunpack.c.h.b16 %v942
    %v1127 = vunpack.c.l.b16 %v943
    %v1128 = vunpack.c.h.b16 %v943
    %v1129 = vunpack.c.l.b16 %v944
    %v1130 = vunpack.c.h.b16 %v944
    %v1131 = vunpack.c.l.b16 %v945
    %v1132 = vunpack.c.h.b16 %v945
    %v1133 = vunpack.c.l.b16 %v946
    %v1134 = vunpack.c.h.b16 %v946
    %v1135 = vunpack.c.l.b16 %v947
    %v1136 = vunpack.c.h.b16 %v947
    %v1137 = vunpack.c.l.b16 %v948
    %v1138 = vunpack.c.h.b16 %v948
    %v1139 = vunpack.c.l.b16 %v949
    %v1140 = vunpack.c.h.b16 %v949
    %v1141 = vunpack.c.l.b16 %v950
    %v1142 = vunpack.c.h.b16 %v950
    %v1143 = vpack.c.b16 %v1019, %v1015
    %v1144 = vpack.c.b16 %v1020, %v1016
    %v1145 = vpack.c.b16 %v1021, %v1017
    %v1146 = vpack.c.b16 %v1022, %v1018
    %v1147 = vpack.c.b16 %v1027, %v1023
    %v1148 = vpack.c.b16 %v1028, %v1024
    %v1149 = vpack.c.b16 %v1029, %v1025
    %v1150 = vpack.c.b16 %v1030, %v1026
    %v1151 = vpack.c.b16 %v1035, %v1031
    %v1152 = vpack.c.b16 %v1036, %v1032
    %v1153 = vpack.c.b16 %v1037, %v1033
    %v1154 = vpack.c.b16 %v1038, %v1034
    %v1155 = vpack.c.b16 %v1043, %v1039
    %v1156 = vpack.c.b16 %v1044, %v1040
    %v1157 = vpack.c.b16 %v1045, %v1041
    %v1158 = vpack.c.b16 %v1046, %v1042
    %v1159 = vpack.c.b16 %v1051, %v1047
    %v1160 = vpack.c.b16 %v1052, %v1048
    %v1161 = vpack.c.b16 %v1053, %v1049
    %v1162 = vpack.c.b16 %v1054, %v1050
    %v1163 = vpack.c.b16 %v1059, %v1055
    %v1164 = vpack.c.b16 %v1060, %v1056
    %v1165 = vpack.c.b16 %v1061, %v1057
    %v1166 = vpack.c.b16 %v1062, %v1058
    %v1167 = vpack.c.b16 %v1067, %v1063
    %v1168 = vpack.c.b16 %v1068, %v1064
    %v1169 = vpack.c.b16 %v1069, %v1065
    %v1170 = vpack.c.b16 %v1070, %v1066
    %v1171 = vpack.c.b16 %v1075, %v1071
    %v1172 = vpack.c.b16 %v1076, %v1072
    %v1173 = vpack.c.b16 %v1077, %v1073
    %v1174 = vpack.c.b16 %v1078, %v1074
    %v1175 = vpack.c.b16 %v1083, %v1079
    %v1176 = vpack.c.b16 %v1084, %v1080
    %v1177 = vpack.c.b16 %v1085, %v1081
    %v1178 = vpack.c.b16 %v1086, %v1082
    %v1179 = vpack.c.b16 %v1091, %v1087
    %v1180 = vpack.c.b16 %v1092, %v1088
    %v1181 = vpack.c.b16 %v1093, %v1089
    %v1182 = vpack.c.b16 %v1094, %v1090
    %v1183 = vpack.c.b16 %v1099, %v1095
    %v1184 = vpack.c.b16 %v1100, %v1096
    %v1185 = vpack.c.b16 %v1101, %v1097
    %v1186 = vpack.c.b16 %v1102, %v1098
    %v1187 = vpack.c.b16 %v1107, %v1103
    %v1188 = vpack.c.b16 %v1108, %v1104
    %v1189 = vpack.c.b16 %v1109, %v1105
    %v1190 = vpack.c.b16 %v1110, %v1106
    %v1191 = vpack.c.b16 %v1115, %v1111
    %v1192 = vpack.c.b16 %v1116, %v1112
    %v1193 = vpack.c.b16 %v1117, %v1113
    %v1194 = vpack.c.b16 %v1118, %v1114
    %v1195 = vpack.c.b16 %v1123, %v1119
    %v1196 = vpack.c.b16 %v1124, %v1120
    %v1197 = vpack.c.b16 %v1125, %v1121
    %v1198 = vpack.c.b16 %v1126, %v1122
    %v1199 = vpack.c.b16 %v1131, %v1127
    %v1200 = vpack.c.b16 %v1132, %v1128
    %v1201 = vpack.c.b16 %v1133, %v1129
    %v1202 = vpack.c.b16 %v1134, %v1130
    %v1203 = vpack.c.b16 %v1139, %v1135
    %v1204 = vpack.c.b16 %v1140, %v1136
    %v1205 = vpack.c.b16 %v1141, %v1137
    %v1206 = vpack.c.b16 %v1142, %v1138
    %1271 = vmatpush.bf16.msra.mxu0 %v1171
    %1272 = vmatpush.bf16.msra.mxu0 %v1167
    %1273 = vmatpush.bf16.msra.mxu0 %v1163
    %1274 = vmatpush.bf16.msra.mxu0 %v1159
    %1275 = vmatpush.bf16.msra.mxu0 %v1155
    %1276 = vmatpush.bf16.msra.mxu0 %v1151
    %1277 = vmatpush.bf16.msra.mxu0 %v1147
    %1278 = vmatpush.bf16.msra.mxu0 %v1143
    %1279 = vmatmul.bf16.gmra.mxu0 %v871
    %v1280 = vpop.f32.mrf.mxu0
    %v1281 = vadd.f32 0.0, %v1280
    %v1282 = vpop.f32.mrf.mxu0
    %v1283 = vadd.f32 0.0, %v1282
    %1284 = vmatmul.bf16.gmra.mxu0 %v873
    %v1285 = vpop.f32.mrf.mxu0
    %v1286 = vadd.f32 0.0, %v1285
    %v1287 = vpop.f32.mrf.mxu0
    %v1288 = vadd.f32 0.0, %v1287
    %1289 = vmatmul.bf16.gmra.mxu0 %v875
    %v1290 = vpop.f32.mrf.mxu0
    %v1291 = vadd.f32 0.0, %v1290
    %v1292 = vpop.f32.mrf.mxu0
    %v1293 = vadd.f32 0.0, %v1292
    %1294 = vmatmul.bf16.gmra.mxu0 %v877
    %v1295 = vpop.f32.mrf.mxu0
    %v1296 = vadd.f32 0.0, %v1295
    %v1297 = vpop.f32.mrf.mxu0
    %v1298 = vadd.f32 0.0, %v1297
    %1299 = vmatmul.bf16.gmra.mxu0 %v879
    %v1300 = vpop.f32.mrf.mxu0
    %v1301 = vadd.f32 0.0, %v1300
    %v1302 = vpop.f32.mrf.mxu0
    %v1303 = vadd.f32 0.0, %v1302
    %1304 = vmatmul.bf16.gmra.mxu0 %v881
    %v1305 = vpop.f32.mrf.mxu0
    %v1306 = vadd.f32 0.0, %v1305
    %v1307 = vpop.f32.mrf.mxu0
    %v1308 = vadd.f32 0.0, %v1307
    %1309 = vmatmul.bf16.gmra.mxu0 %v883
    %v1310 = vpop.f32.mrf.mxu0
    %v1311 = vadd.f32 0.0, %v1310
    %v1312 = vpop.f32.mrf.mxu0
    %v1313 = vadd.f32 0.0, %v1312
    %1314 = vmatmul.bf16.gmra.mxu0 %v885
    %v1315 = vpop.f32.mrf.mxu0
    %v1316 = vadd.f32 0.0, %v1315
    %v1317 = vpop.f32.mrf.mxu0
    %v1318 = vadd.f32 0.0, %v1317
    %1319 = vdwg.mxu0
    %1320 = vmatpush.bf16.msra.mxu0 %v1203
    %1321 = vmatpush.bf16.msra.mxu0 %v1199
    %1322 = vmatpush.bf16.msra.mxu0 %v1195
    %1323 = vmatpush.bf16.msra.mxu0 %v1191
    %1324 = vmatpush.bf16.msra.mxu0 %v1187
    %1325 = vmatpush.bf16.msra.mxu0 %v1183
    %1326 = vmatpush.bf16.msra.mxu0 %v1179
    %1327 = vmatpush.bf16.msra.mxu0 %v1175
    %1328 = vmatmul.bf16.gmra.mxu0 %v872
    %v1329 = vpop.f32.mrf.mxu0
    %v1330 = vadd.f32 %v1281, %v1329
    %v1331 = vpop.f32.mrf.mxu0
    %v1332 = vadd.f32 %v1283, %v1331
    %1333 = vmatmul.bf16.gmra.mxu0 %v874
    %v1334 = vpop.f32.mrf.mxu0
    %v1335 = vadd.f32 %v1286, %v1334
    %v1336 = vpop.f32.mrf.mxu0
    %v1337 = vadd.f32 %v1288, %v1336
    %1338 = vmatmul.bf16.gmra.mxu0 %v876
    %v1339 = vpop.f32.mrf.mxu0
    %v1340 = vadd.f32 %v1291, %v1339
    %v1341 = vpop.f32.mrf.mxu0
    %v1342 = vadd.f32 %v1293, %v1341
    %1343 = vmatmul.bf16.gmra.mxu0 %v878
    %v1344 = vpop.f32.mrf.mxu0
    %v1345 = vadd.f32 %v1296, %v1344
    %v1346 = vpop.f32.mrf.mxu0
    %v1347 = vadd.f32 %v1298, %v1346
    %1348 = vmatmul.bf16.gmra.mxu0 %v880
    %v1349 = vpop.f32.mrf.mxu0
    %v1350 = vadd.f32 %v1301, %v1349
    %v1351 = vpop.f32.mrf.mxu0
    %v1352 = vadd.f32 %v1303, %v1351
    %1353 = vmatmul.bf16.gmra.mxu0 %v882
    %v1354 = vpop.f32.mrf.mxu0
    %v1355 = vadd.f32 %v1306, %v1354
    %v1356 = vpop.f32.mrf.mxu0
    %v1357 = vadd.f32 %v1308, %v1356
    %1358 = vmatmul.bf16.gmra.mxu0 %v884
    %v1359 = vpop.f32.mrf.mxu0
    %v1360 = vadd.f32 %v1311, %v1359
    %v1361 = vpop.f32.mrf.mxu0
    %v1362 = vadd.f32 %v1313, %v1361
    %1363 = vmatmul.bf16.gmra.mxu0 %v886
    %v1364 = vpop.f32.mrf.mxu0
    %v1365 = vadd.f32 %v1316, %v1364
    %v1366 = vpop.f32.mrf.mxu0
    %v1367 = vadd.f32 %v1318, %v1366
    %1368 = vdwg.mxu0
    %1369 = vmatpush.bf16.msra.mxu0 %v1172
    %1370 = vmatpush.bf16.msra.mxu0 %v1168
    %1371 = vmatpush.bf16.msra.mxu0 %v1164
    %1372 = vmatpush.bf16.msra.mxu0 %v1160
    %1373 = vmatpush.bf16.msra.mxu0 %v1156
    %1374 = vmatpush.bf16.msra.mxu0 %v1152
    %1375 = vmatpush.bf16.msra.mxu0 %v1148
    %1376 = vmatpush.bf16.msra.mxu0 %v1144
    %1377 = vmatmul.bf16.gmra.mxu0 %v871
    %v1378 = vpop.f32.mrf.mxu0
    %v1379 = vadd.f32 0.0, %v1378
    %v1380 = vpop.f32.mrf.mxu0
    %v1381 = vadd.f32 0.0, %v1380
    %1382 = vmatmul.bf16.gmra.mxu0 %v873
    %v1383 = vpop.f32.mrf.mxu0
    %v1384 = vadd.f32 0.0, %v1383
    %v1385 = vpop.f32.mrf.mxu0
    %v1386 = vadd.f32 0.0, %v1385
    %1387 = vmatmul.bf16.gmra.mxu0 %v875
    %v1388 = vpop.f32.mrf.mxu0
    %v1389 = vadd.f32 0.0, %v1388
    %v1390 = vpop.f32.mrf.mxu0
    %v1391 = vadd.f32 0.0, %v1390
    %1392 = vmatmul.bf16.gmra.mxu0 %v877
    %v1393 = vpop.f32.mrf.mxu0
    %v1394 = vadd.f32 0.0, %v1393
    %v1395 = vpop.f32.mrf.mxu0
    %v1396 = vadd.f32 0.0, %v1395
    %1397 = vmatmul.bf16.gmra.mxu0 %v879
    %v1398 = vpop.f32.mrf.mxu0
    %v1399 = vadd.f32 0.0, %v1398
    %v1400 = vpop.f32.mrf.mxu0
    %v1401 = vadd.f32 0.0, %v1400
    %1402 = vmatmul.bf16.gmra.mxu0 %v881
    %v1403 = vpop.f32.mrf.mxu0
    %v1404 = vadd.f32 0.0, %v1403
    %v1405 = vpop.f32.mrf.mxu0
    %v1406 = vadd.f32 0.0, %v1405
    %1407 = vmatmul.bf16.gmra.mxu0 %v883
    %v1408 = vpop.f32.mrf.mxu0
    %v1409 = vadd.f32 0.0, %v1408
    %v1410 = vpop.f32.mrf.mxu0
    %v1411 = vadd.f32 0.0, %v1410
    %1412 = vmatmul.bf16.gmra.mxu0 %v885
    %v1413 = vpop.f32.mrf.mxu0
    %v1414 = vadd.f32 0.0, %v1413
    %v1415 = vpop.f32.mrf.mxu0
    %v1416 = vadd.f32 0.0, %v1415
    %1417 = vdwg.mxu0
    %1418 = vmatpush.bf16.msra.mxu0 %v1204
    %1419 = vmatpush.bf16.msra.mxu0 %v1200
    %1420 = vmatpush.bf16.msra.mxu0 %v1196
    %1421 = vmatpush.bf16.msra.mxu0 %v1192
    %1422 = vmatpush.bf16.msra.mxu0 %v1188
    %1423 = vmatpush.bf16.msra.mxu0 %v1184
    %1424 = vmatpush.bf16.msra.mxu0 %v1180
    %1425 = vmatpush.bf16.msra.mxu0 %v1176
    %1426 = vmatmul.bf16.gmra.mxu0 %v872
    %v1427 = vpop.f32.mrf.mxu0
    %v1428 = vadd.f32 %v1379, %v1427
    %v1429 = vpop.f32.mrf.mxu0
    %v1430 = vadd.f32 %v1381, %v1429
    %1431 = vmatmul.bf16.gmra.mxu0 %v874
    %v1432 = vpop.f32.mrf.mxu0
    %v1433 = vadd.f32 %v1384, %v1432
    %v1434 = vpop.f32.mrf.mxu0
    %v1435 = vadd.f32 %v1386, %v1434
    %1436 = vmatmul.bf16.gmra.mxu0 %v876
    %v1437 = vpop.f32.mrf.mxu0
    %v1438 = vadd.f32 %v1389, %v1437
    %v1439 = vpop.f32.mrf.mxu0
    %v1440 = vadd.f32 %v1391, %v1439
    %1441 = vmatmul.bf16.gmra.mxu0 %v878
    %v1442 = vpop.f32.mrf.mxu0
    %v1443 = vadd.f32 %v1394, %v1442
    %v1444 = vpop.f32.mrf.mxu0
    %v1445 = vadd.f32 %v1396, %v1444
    %1446 = vmatmul.bf16.gmra.mxu0 %v880
    %v1447 = vpop.f32.mrf.mxu0
    %v1448 = vadd.f32 %v1399, %v1447
    %v1449 = vpop.f32.mrf.mxu0
    %v1450 = vadd.f32 %v1401, %v1449
    %1451 = vmatmul.bf16.gmra.mxu0 %v882
    %v1452 = vpop.f32.mrf.mxu0
    %v1453 = vadd.f32 %v1404, %v1452
    %v1454 = vpop.f32.mrf.mxu0
    %v1455 = vadd.f32 %v1406, %v1454
    %1456 = vmatmul.bf16.gmra.mxu0 %v884
    %v1457 = vpop.f32.mrf.mxu0
    %v1458 = vadd.f32 %v1409, %v1457
    %v1459 = vpop.f32.mrf.mxu0
    %v1460 = vadd.f32 %v1411, %v1459
    %1461 = vmatmul.bf16.gmra.mxu0 %v886
    %v1462 = vpop.f32.mrf.mxu0
    %v1463 = vadd.f32 %v1414, %v1462
    %v1464 = vpop.f32.mrf.mxu0
    %v1465 = vadd.f32 %v1416, %v1464
    %1466 = vdwg.mxu0
    %1467 = vmatpush.bf16.msra.mxu0 %v1173
    %1468 = vmatpush.bf16.msra.mxu0 %v1169
    %1469 = vmatpush.bf16.msra.mxu0 %v1165
    %1470 = vmatpush.bf16.msra.mxu0 %v1161
    %1471 = vmatpush.bf16.msra.mxu0 %v1157
    %1472 = vmatpush.bf16.msra.mxu0 %v1153
    %1473 = vmatpush.bf16.msra.mxu0 %v1149
    %1474 = vmatpush.bf16.msra.mxu0 %v1145
    %1475 = vmatmul.bf16.gmra.mxu0 %v871
    %v1476 = vpop.f32.mrf.mxu0
    %v1477 = vadd.f32 0.0, %v1476
    %v1478 = vpop.f32.mrf.mxu0
    %v1479 = vadd.f32 0.0, %v1478
    %1480 = vmatmul.bf16.gmra.mxu0 %v873
    %v1481 = vpop.f32.mrf.mxu0
    %v1482 = vadd.f32 0.0, %v1481
    %v1483 = vpop.f32.mrf.mxu0
    %v1484 = vadd.f32 0.0, %v1483
    %1485 = vmatmul.bf16.gmra.mxu0 %v875
    %v1486 = vpop.f32.mrf.mxu0
    %v1487 = vadd.f32 0.0, %v1486
    %v1488 = vpop.f32.mrf.mxu0
    %v1489 = vadd.f32 0.0, %v1488
    %1490 = vmatmul.bf16.gmra.mxu0 %v877
    %v1491 = vpop.f32.mrf.mxu0
    %v1492 = vadd.f32 0.0, %v1491
    %v1493 = vpop.f32.mrf.mxu0
    %v1494 = vadd.f32 0.0, %v1493
    %1495 = vmatmul.bf16.gmra.mxu0 %v879
    %v1496 = vpop.f32.mrf.mxu0
    %v1497 = vadd.f32 0.0, %v1496
    %v1498 = vpop.f32.mrf.mxu0
    %v1499 = vadd.f32 0.0, %v1498
    %1500 = vmatmul.bf16.gmra.mxu0 %v881
    %v1501 = vpop.f32.mrf.mxu0
    %v1502 = vadd.f32 0.0, %v1501
    %v1503 = vpop.f32.mrf.mxu0
    %v1504 = vadd.f32 0.0, %v1503
    %1505 = vmatmul.bf16.gmra.mxu0 %v883
    %v1506 = vpop.f32.mrf.mxu0
    %v1507 = vadd.f32 0.0, %v1506
    %v1508 = vpop.f32.mrf.mxu0
    %v1509 = vadd.f32 0.0, %v1508
    %1510 = vmatmul.bf16.gmra.mxu0 %v885
    %v1511 = vpop.f32.mrf.mxu0
    %v1512 = vadd.f32 0.0, %v1511
    %v1513 = vpop.f32.mrf.mxu0
    %v1514 = vadd.f32 0.0, %v1513
    %1515 = vdwg.mxu0
    %1516 = vmatpush.bf16.msra.mxu0 %v1205
    %1517 = vmatpush.bf16.msra.mxu0 %v1201
    %1518 = vmatpush.bf16.msra.mxu0 %v1197
    %1519 = vmatpush.bf16.msra.mxu0 %v1193
    %1520 = vmatpush.bf16.msra.mxu0 %v1189
    %1521 = vmatpush.bf16.msra.mxu0 %v1185
    %1522 = vmatpush.bf16.msra.mxu0 %v1181
    %1523 = vmatpush.bf16.msra.mxu0 %v1177
    %1524 = vmatmul.bf16.gmra.mxu0 %v872
    %v1525 = vpop.f32.mrf.mxu0
    %v1526 = vadd.f32 %v1477, %v1525
    %v1527 = vpop.f32.mrf.mxu0
    %v1528 = vadd.f32 %v1479, %v1527
    %1529 = vmatmul.bf16.gmra.mxu0 %v874
    %v1530 = vpop.f32.mrf.mxu0
    %v1531 = vadd.f32 %v1482, %v1530
    %v1532 = vpop.f32.mrf.mxu0
    %v1533 = vadd.f32 %v1484, %v1532
    %1534 = vmatmul.bf16.gmra.mxu0 %v876
    %v1535 = vpop.f32.mrf.mxu0
    %v1536 = vadd.f32 %v1487, %v1535
    %v1537 = vpop.f32.mrf.mxu0
    %v1538 = vadd.f32 %v1489, %v1537
    %1539 = vmatmul.bf16.gmra.mxu0 %v878
    %v1540 = vpop.f32.mrf.mxu0
    %v1541 = vadd.f32 %v1492, %v1540
    %v1542 = vpop.f32.mrf.mxu0
    %v1543 = vadd.f32 %v1494, %v1542
    %1544 = vmatmul.bf16.gmra.mxu0 %v880
    %v1545 = vpop.f32.mrf.mxu0
    %v1546 = vadd.f32 %v1497, %v1545
    %v1547 = vpop.f32.mrf.mxu0
    %v1548 = vadd.f32 %v1499, %v1547
    %1549 = vmatmul.bf16.gmra.mxu0 %v882
    %v1550 = vpop.f32.mrf.mxu0
    %v1551 = vadd.f32 %v1502, %v1550
    %v1552 = vpop.f32.mrf.mxu0
    %v1553 = vadd.f32 %v1504, %v1552
    %1554 = vmatmul.bf16.gmra.mxu0 %v884
    %v1555 = vpop.f32.mrf.mxu0
    %v1556 = vadd.f32 %v1507, %v1555
    %v1557 = vpop.f32.mrf.mxu0
    %v1558 = vadd.f32 %v1509, %v1557
    %1559 = vmatmul.bf16.gmra.mxu0 %v886
    %v1560 = vpop.f32.mrf.mxu0
    %v1561 = vadd.f32 %v1512, %v1560
    %v1562 = vpop.f32.mrf.mxu0
    %v1563 = vadd.f32 %v1514, %v1562
    %1564 = vdwg.mxu0
    %1565 = vmatpush.bf16.msra.mxu0 %v1174
    %1566 = vmatpush.bf16.msra.mxu0 %v1170
    %1567 = vmatpush.bf16.msra.mxu0 %v1166
    %1568 = vmatpush.bf16.msra.mxu0 %v1162
    %1569 = vmatpush.bf16.msra.mxu0 %v1158
    %1570 = vmatpush.bf16.msra.mxu0 %v1154
    %1571 = vmatpush.bf16.msra.mxu0 %v1150
    %1572 = vmatpush.bf16.msra.mxu0 %v1146
    %1573 = vmatmul.bf16.gmra.mxu0 %v871
    %v1574 = vpop.f32.mrf.mxu0
    %v1575 = vadd.f32 0.0, %v1574
    %v1576 = vpop.f32.mrf.mxu0
    %v1577 = vadd.f32 0.0, %v1576
    %1578 = vmatmul.bf16.gmra.mxu0 %v873
    %v1579 = vpop.f32.mrf.mxu0
    %v1580 = vadd.f32 0.0, %v1579
    %v1581 = vpop.f32.mrf.mxu0
    %v1582 = vadd.f32 0.0, %v1581
    %1583 = vmatmul.bf16.gmra.mxu0 %v875
    %v1584 = vpop.f32.mrf.mxu0
    %v1585 = vadd.f32 0.0, %v1584
    %v1586 = vpop.f32.mrf.mxu0
    %v1587 = vadd.f32 0.0, %v1586
    %1588 = vmatmul.bf16.gmra.mxu0 %v877
    %v1589 = vpop.f32.mrf.mxu0
    %v1590 = vadd.f32 0.0, %v1589
    %v1591 = vpop.f32.mrf.mxu0
    %v1592 = vadd.f32 0.0, %v1591
    %1593 = vmatmul.bf16.gmra.mxu0 %v879
    %v1594 = vpop.f32.mrf.mxu0
    %v1595 = vadd.f32 0.0, %v1594
    %v1596 = vpop.f32.mrf.mxu0
    %v1597 = vadd.f32 0.0, %v1596
    %1598 = vmatmul.bf16.gmra.mxu0 %v881
    %v1599 = vpop.f32.mrf.mxu0
    %v1600 = vadd.f32 0.0, %v1599
    %v1601 = vpop.f32.mrf.mxu0
    %v1602 = vadd.f32 0.0, %v1601
    %1603 = vmatmul.bf16.gmra.mxu0 %v883
    %v1604 = vpop.f32.mrf.mxu0
    %v1605 = vadd.f32 0.0, %v1604
    %v1606 = vpop.f32.mrf.mxu0
    %v1607 = vadd.f32 0.0, %v1606
    %1608 = vmatmul.bf16.gmra.mxu0 %v885
    %v1609 = vpop.f32.mrf.mxu0
    %v1610 = vadd.f32 0.0, %v1609
    %v1611 = vpop.f32.mrf.mxu0
    %v1612 = vadd.f32 0.0, %v1611
    %1613 = vdwg.mxu0
    %1614 = vmatpush.bf16.msra.mxu0 %v1206
    %1615 = vmatpush.bf16.msra.mxu0 %v1202
    %1616 = vmatpush.bf16.msra.mxu0 %v1198
    %1617 = vmatpush.bf16.msra.mxu0 %v1194
    %1618 = vmatpush.bf16.msra.mxu0 %v1190
    %1619 = vmatpush.bf16.msra.mxu0 %v1186
    %1620 = vmatpush.bf16.msra.mxu0 %v1182
    %1621 = vmatpush.bf16.msra.mxu0 %v1178
    %1622 = vmatmul.bf16.gmra.mxu0 %v872
    %v1623 = vpop.f32.mrf.mxu0
    %v1624 = vadd.f32 %v1575, %v1623
    %v1625 = vpop.f32.mrf.mxu0
    %v1626 = vadd.f32 %v1577, %v1625
    %1627 = vmatmul.bf16.gmra.mxu0 %v874
    %v1628 = vpop.f32.mrf.mxu0
    %v1629 = vadd.f32 %v1580, %v1628
    %v1630 = vpop.f32.mrf.mxu0
    %v1631 = vadd.f32 %v1582, %v1630
    %1632 = vmatmul.bf16.gmra.mxu0 %v876
    %v1633 = vpop.f32.mrf.mxu0
    %v1634 = vadd.f32 %v1585, %v1633
    %v1635 = vpop.f32.mrf.mxu0
    %v1636 = vadd.f32 %v1587, %v1635
    %1637 = vmatmul.bf16.gmra.mxu0 %v878
    %v1638 = vpop.f32.mrf.mxu0
    %v1639 = vadd.f32 %v1590, %v1638
    %v1640 = vpop.f32.mrf.mxu0
    %v1641 = vadd.f32 %v1592, %v1640
    %1642 = vmatmul.bf16.gmra.mxu0 %v880
    %v1643 = vpop.f32.mrf.mxu0
    %v1644 = vadd.f32 %v1595, %v1643
    %v1645 = vpop.f32.mrf.mxu0
    %v1646 = vadd.f32 %v1597, %v1645
    %1647 = vmatmul.bf16.gmra.mxu0 %v882
    %v1648 = vpop.f32.mrf.mxu0
    %v1649 = vadd.f32 %v1600, %v1648
    %v1650 = vpop.f32.mrf.mxu0
    %v1651 = vadd.f32 %v1602, %v1650
    %1652 = vmatmul.bf16.gmra.mxu0 %v884
    %v1653 = vpop.f32.mrf.mxu0
    %v1654 = vadd.f32 %v1605, %v1653
    %v1655 = vpop.f32.mrf.mxu0
    %v1656 = vadd.f32 %v1607, %v1655
    %1657 = vmatmul.bf16.gmra.mxu0 %v886
    %v1658 = vpop.f32.mrf.mxu0
    %v1659 = vadd.f32 %v1610, %v1658
    %v1660 = vpop.f32.mrf.mxu0
    %v1661 = vadd.f32 %v1612, %v1660
    %1662 = vdwg.mxu0
    %v1663 = vld [vmem:[%s8] sm:$0xf]
    %v1664 = vld [vmem:[%s9] sm:$0xf]
    %1665 = vmatpush.msra.mxu0 %v1367
    %1666 = vmatpush.msra.mxu0 %v1365
    %1667 = vmatpush.msra.mxu0 %v1362
    %1668 = vmatpush.msra.mxu0 %v1360
    %1669 = vmatpush.msra.mxu0 %v1357
    %1670 = vmatpush.msra.mxu0 %v1355
    %1671 = vmatpush.msra.mxu0 %v1352
    %1672 = vmatpush.msra.mxu0 %v1350
    %1673 = vmatpush.msra.mxu0 %v1347
    %1674 = vmatpush.msra.mxu0 %v1345
    %1675 = vmatpush.msra.mxu0 %v1342
    %1676 = vmatpush.msra.mxu0 %v1340
    %1677 = vmatpush.msra.mxu0 %v1337
    %1678 = vmatpush.msra.mxu0 %v1335
    %1679 = vmatpush.msra.mxu0 %v1332
    %1680 = vmatpush.msra.mxu0 %v1330
    %1681 = vmatmul.f32.gmra.mxu0 1.0
    %v1682 = vpop.f32.mrf.mxu0
    %v1683 = vadd.f32 0.0, %v1682
    %1684 = vdwg.mxu0
    %1685 = vmatpush.msra.mxu0 %v1465
    %1686 = vmatpush.msra.mxu0 %v1463
    %1687 = vmatpush.msra.mxu0 %v1460
    %1688 = vmatpush.msra.mxu0 %v1458
    %1689 = vmatpush.msra.mxu0 %v1455
    %1690 = vmatpush.msra.mxu0 %v1453
    %1691 = vmatpush.msra.mxu0 %v1450
    %1692 = vmatpush.msra.mxu0 %v1448
    %1693 = vmatpush.msra.mxu0 %v1445
    %1694 = vmatpush.msra.mxu0 %v1443
    %1695 = vmatpush.msra.mxu0 %v1440
    %1696 = vmatpush.msra.mxu0 %v1438
    %1697 = vmatpush.msra.mxu0 %v1435
    %1698 = vmatpush.msra.mxu0 %v1433
    %1699 = vmatpush.msra.mxu0 %v1430
    %1700 = vmatpush.msra.mxu0 %v1428
    %1701 = vmatmul.f32.gmra.mxu0 1.0
    %v1702 = vpop.f32.mrf.mxu0
    %v1703 = vadd.f32 0.0, %v1702
    %1704 = vdwg.mxu0
    %1705 = vmatpush.msra.mxu0 %v1563
    %1706 = vmatpush.msra.mxu0 %v1561
    %1707 = vmatpush.msra.mxu0 %v1558
    %1708 = vmatpush.msra.mxu0 %v1556
    %1709 = vmatpush.msra.mxu0 %v1553
    %1710 = vmatpush.msra.mxu0 %v1551
    %1711 = vmatpush.msra.mxu0 %v1548
    %1712 = vmatpush.msra.mxu0 %v1546
    %1713 = vmatpush.msra.mxu0 %v1543
    %1714 = vmatpush.msra.mxu0 %v1541
    %1715 = vmatpush.msra.mxu0 %v1538
    %1716 = vmatpush.msra.mxu0 %v1536
    %1717 = vmatpush.msra.mxu0 %v1533
    %1718 = vmatpush.msra.mxu0 %v1531
    %1719 = vmatpush.msra.mxu0 %v1528
    %1720 = vmatpush.msra.mxu0 %v1526
    %1721 = vmatmul.f32.gmra.mxu0 1.0
    %v1722 = vpop.f32.mrf.mxu0
    %v1723 = vadd.f32 0.0, %v1722
    %1724 = vdwg.mxu0
    %1725 = vmatpush.msra.mxu0 %v1661
    %1726 = vmatpush.msra.mxu0 %v1659
    %1727 = vmatpush.msra.mxu0 %v1656
    %1728 = vmatpush.msra.mxu0 %v1654
    %1729 = vmatpush.msra.mxu0 %v1651
    %1730 = vmatpush.msra.mxu0 %v1649
    %1731 = vmatpush.msra.mxu0 %v1646
    %1732 = vmatpush.msra.mxu0 %v1644
    %1733 = vmatpush.msra.mxu0 %v1641
    %1734 = vmatpush.msra.mxu0 %v1639
    %1735 = vmatpush.msra.mxu0 %v1636
    %1736 = vmatpush.msra.mxu0 %v1634
    %1737 = vmatpush.msra.mxu0 %v1631
    %1738 = vmatpush.msra.mxu0 %v1629
    %1739 = vmatpush.msra.mxu0 %v1626
    %1740 = vmatpush.msra.mxu0 %v1624
    %1741 = vmatmul.f32.gmra.mxu0 1.0
    %v1742 = vpop.f32.mrf.mxu0
    %v1743 = vadd.f32 0.0, %v1742
    %1744 = vdwg.mxu0
    %v1745 = vmul.f32 %v1330, %v1330
    %v1746 = vmul.f32 %v1428, %v1428
    %v1747 = vmul.f32 %v1526, %v1526
    %v1748 = vmul.f32 %v1624, %v1624
    %v1749 = vmul.f32 %v1332, %v1332
    %v1750 = vmul.f32 %v1430, %v1430
    %v1751 = vmul.f32 %v1528, %v1528
    %v1752 = vmul.f32 %v1626, %v1626
    %v1753 = vmul.f32 %v1335, %v1335
    %v1754 = vmul.f32 %v1433, %v1433
    %v1755 = vmul.f32 %v1531, %v1531
    %v1756 = vmul.f32 %v1629, %v1629
    %v1757 = vmul.f32 %v1337, %v1337
    %v1758 = vmul.f32 %v1435, %v1435
    %v1759 = vmul.f32 %v1533, %v1533
    %v1760 = vmul.f32 %v1631, %v1631
    %v1761 = vmul.f32 %v1340, %v1340
    %v1762 = vmul.f32 %v1438, %v1438
    %v1763 = vmul.f32 %v1536, %v1536
    %v1764 = vmul.f32 %v1634, %v1634
    %v1765 = vmul.f32 %v1342, %v1342
    %v1766 = vmul.f32 %v1440, %v1440
    %v1767 = vmul.f32 %v1538, %v1538
    %v1768 = vmul.f32 %v1636, %v1636
    %v1769 = vmul.f32 %v1345, %v1345
    %v1770 = vmul.f32 %v1443, %v1443
    %v1771 = vmul.f32 %v1541, %v1541
    %v1772 = vmul.f32 %v1639, %v1639
    %v1773 = vmul.f32 %v1347, %v1347
    %v1774 = vmul.f32 %v1445, %v1445
    %v1775 = vmul.f32 %v1543, %v1543
    %v1776 = vmul.f32 %v1641, %v1641
    %v1777 = vmul.f32 %v1350, %v1350
    %v1778 = vmul.f32 %v1448, %v1448
    %v1779 = vmul.f32 %v1546, %v1546
    %v1780 = vmul.f32 %v1644, %v1644
    %v1781 = vmul.f32 %v1352, %v1352
    %v1782 = vmul.f32 %v1450, %v1450
    %v1783 = vmul.f32 %v1548, %v1548
    %v1784 = vmul.f32 %v1646, %v1646
    %v1785 = vmul.f32 %v1355, %v1355
    %v1786 = vmul.f32 %v1453, %v1453
    %v1787 = vmul.f32 %v1551, %v1551
    %v1788 = vmul.f32 %v1649, %v1649
    %v1789 = vmul.f32 %v1357, %v1357
    %v1790 = vmul.f32 %v1455, %v1455
    %v1791 = vmul.f32 %v1553, %v1553
    %v1792 = vmul.f32 %v1651, %v1651
    %v1793 = vmul.f32 %v1360, %v1360
    %v1794 = vmul.f32 %v1458, %v1458
    %v1795 = vmul.f32 %v1556, %v1556
    %v1796 = vmul.f32 %v1654, %v1654
    %v1797 = vmul.f32 %v1362, %v1362
    %v1798 = vmul.f32 %v1460, %v1460
    %v1799 = vmul.f32 %v1558, %v1558
    %v1800 = vmul.f32 %v1656, %v1656
    %v1801 = vmul.f32 %v1365, %v1365
    %v1802 = vmul.f32 %v1463, %v1463
    %v1803 = vmul.f32 %v1561, %v1561
    %v1804 = vmul.f32 %v1659, %v1659
    %v1805 = vmul.f32 %v1367, %v1367
    %v1806 = vmul.f32 %v1465, %v1465
    %v1807 = vmul.f32 %v1563, %v1563
    %v1808 = vmul.f32 %v1661, %v1661
    %1809 = vmatpush.msra.mxu0 %v1805
    %1810 = vmatpush.msra.mxu0 %v1801
    %1811 = vmatpush.msra.mxu0 %v1797
    %1812 = vmatpush.msra.mxu0 %v1793
    %1813 = vmatpush.msra.mxu0 %v1789
    %1814 = vmatpush.msra.mxu0 %v1785
    %1815 = vmatpush.msra.mxu0 %v1781
    %1816 = vmatpush.msra.mxu0 %v1777
    %1817 = vmatpush.msra.mxu0 %v1773
    %1818 = vmatpush.msra.mxu0 %v1769
    %1819 = vmatpush.msra.mxu0 %v1765
    %1820 = vmatpush.msra.mxu0 %v1761
    %1821 = vmatpush.msra.mxu0 %v1757
    %1822 = vmatpush.msra.mxu0 %v1753
    %1823 = vmatpush.msra.mxu0 %v1749
    %1824 = vmatpush.msra.mxu0 %v1745
    %1825 = vmatmul.f32.gmra.mxu0 1.0
    %v1826 = vpop.f32.mrf.mxu0
    %v1827 = vadd.f32 0.0, %v1826
    %1828 = vdwg.mxu0
    %1829 = vmatpush.msra.mxu0 %v1806
    %1830 = vmatpush.msra.mxu0 %v1802
    %1831 = vmatpush.msra.mxu0 %v1798
    %1832 = vmatpush.msra.mxu0 %v1794
    %1833 = vmatpush.msra.mxu0 %v1790
    %1834 = vmatpush.msra.mxu0 %v1786
    %1835 = vmatpush.msra.mxu0 %v1782
    %1836 = vmatpush.msra.mxu0 %v1778
    %1837 = vmatpush.msra.mxu0 %v1774
    %1838 = vmatpush.msra.mxu0 %v1770
    %1839 = vmatpush.msra.mxu0 %v1766
    %1840 = vmatpush.msra.mxu0 %v1762
    %1841 = vmatpush.msra.mxu0 %v1758
    %1842 = vmatpush.msra.mxu0 %v1754
    %1843 = vmatpush.msra.mxu0 %v1750
    %1844 = vmatpush.msra.mxu0 %v1746
    %1845 = vmatmul.f32.gmra.mxu0 1.0
    %v1846 = vpop.f32.mrf.mxu0
    %v1847 = vadd.f32 0.0, %v1846
    %1848 = vdwg.mxu0
    %1849 = vmatpush.msra.mxu0 %v1807
    %1850 = vmatpush.msra.mxu0 %v1803
    %1851 = vmatpush.msra.mxu0 %v1799
    %1852 = vmatpush.msra.mxu0 %v1795
    %1853 = vmatpush.msra.mxu0 %v1791
    %1854 = vmatpush.msra.mxu0 %v1787
    %1855 = vmatpush.msra.mxu0 %v1783
    %1856 = vmatpush.msra.mxu0 %v1779
    %1857 = vmatpush.msra.mxu0 %v1775
    %1858 = vmatpush.msra.mxu0 %v1771
    %1859 = vmatpush.msra.mxu0 %v1767
    %1860 = vmatpush.msra.mxu0 %v1763
    %1861 = vmatpush.msra.mxu0 %v1759
    %1862 = vmatpush.msra.mxu0 %v1755
    %1863 = vmatpush.msra.mxu0 %v1751
    %1864 = vmatpush.msra.mxu0 %v1747
    %1865 = vmatmul.f32.gmra.mxu0 1.0
    %v1866 = vpop.f32.mrf.mxu0
    %v1867 = vadd.f32 0.0, %v1866
    %1868 = vdwg.mxu0
    %1869 = vmatpush.msra.mxu0 %v1808
    %1870 = vmatpush.msra.mxu0 %v1804
    %1871 = vmatpush.msra.mxu0 %v1800
    %1872 = vmatpush.msra.mxu0 %v1796
    %1873 = vmatpush.msra.mxu0 %v1792
    %1874 = vmatpush.msra.mxu0 %v1788
    %1875 = vmatpush.msra.mxu0 %v1784
    %1876 = vmatpush.msra.mxu0 %v1780
    %1877 = vmatpush.msra.mxu0 %v1776
    %1878 = vmatpush.msra.mxu0 %v1772
    %1879 = vmatpush.msra.mxu0 %v1768
    %1880 = vmatpush.msra.mxu0 %v1764
    %1881 = vmatpush.msra.mxu0 %v1760
    %1882 = vmatpush.msra.mxu0 %v1756
    %1883 = vmatpush.msra.mxu0 %v1752
    %1884 = vmatpush.msra.mxu0 %v1748
    %1885 = vmatmul.f32.gmra.mxu0 1.0
    %v1886 = vpop.f32.mrf.mxu0
    %v1887 = vadd.f32 0.0, %v1886
    %1888 = vdwg.mxu0
    %v1889 = vmul.f32 %v1683, 0.0078125
    %v1890 = vmul.f32 %v1703, 0.0078125
    %v1891 = vmul.f32 %v1723, 0.0078125
    %v1892 = vmul.f32 %v1743, 0.0078125
    %v1893 = vmul.f32 %v1827, 0.0078125
    %v1894 = vmul.f32 %v1847, 0.0078125
    %v1895 = vmul.f32 %v1867, 0.0078125
    %v1896 = vmul.f32 %v1887, 0.0078125
    %v1897 = vmul.f32 %v1889, %v1889
    %v1898 = vmul.f32 %v1890, %v1890
    %v1899 = vmul.f32 %v1891, %v1891
    %v1900 = vmul.f32 %v1892, %v1892
    %v1901 = vsub.f32 %v1893, %v1897
    %v1902 = vsub.f32 %v1894, %v1898
    %v1903 = vsub.f32 %v1895, %v1899
    %v1904 = vsub.f32 %v1896, %v1900
    %v1905 = vmax.f32 %v1901, 0.0
    %v1906 = vmax.f32 %v1902, 0.0
    %v1907 = vmax.f32 %v1903, 0.0
    %v1908 = vmax.f32 %v1904, 0.0
    %v1909 = vadd.f32 %v1905, 1e-05
    %v1910 = vadd.f32 %v1906, 1e-05
    %v1911 = vadd.f32 %v1907, 1e-05
    %v1912 = vadd.f32 %v1908, 1e-05
    %v1913 = vrsqrt.pop %v1909
    %v1914 = vmul.f32 %v1913, %v1909
    %v1915 = vmul.f32 %v1914, %v1913
    %v1916 = vmul.f32 0.5, %v1915
    %v1917 = vsub.f32 1.5, %v1916
    %v1918 = vmul.f32 %v1913, %v1917
    %vm1919 = vweird.f32 %v1909
    %vm1920 = vweird.f32 %v1913
    %vm1921 = vmor %vm1919, %vm1920
    %v1922 = vsel %vm1921, %v1913, %v1918
    %v1923 = vrsqrt.pop %v1910
    %v1924 = vmul.f32 %v1923, %v1910
    %v1925 = vmul.f32 %v1924, %v1923
    %v1926 = vmul.f32 0.5, %v1925
    %v1927 = vsub.f32 1.5, %v1926
    %v1928 = vmul.f32 %v1923, %v1927
    %vm1929 = vweird.f32 %v1910
    %vm1930 = vweird.f32 %v1923
    %vm1931 = vmor %vm1929, %vm1930
    %v1932 = vsel %vm1931, %v1923, %v1928
    %v1933 = vrsqrt.pop %v1911
    %v1934 = vmul.f32 %v1933, %v1911
    %v1935 = vmul.f32 %v1934, %v1933
    %v1936 = vmul.f32 0.5, %v1935
    %v1937 = vsub.f32 1.5, %v1936
    %v1938 = vmul.f32 %v1933, %v1937
    %vm1939 = vweird.f32 %v1911
    %vm1940 = vweird.f32 %v1933
    %vm1941 = vmor %vm1939, %vm1940
    %v1942 = vsel %vm1941, %v1933, %v1938
    %v1943 = vrsqrt.pop %v1912
    %v1944 = vmul.f32 %v1943, %v1912
    %v1945 = vmul.f32 %v1944, %v1943
    %v1946 = vmul.f32 0.5, %v1945
    %v1947 = vsub.f32 1.5, %v1946
    %v1948 = vmul.f32 %v1943, %v1947
    %vm1949 = vweird.f32 %v1912
    %vm1950 = vweird.f32 %v1943
    %vm1951 = vmor %vm1949, %vm1950
    %v1952 = vsel %vm1951, %v1943, %v1948
    %v1954 = vperm.slane %v1663, 0
    %v1955 = vperm.slane %v1663, 1
    %v1956 = vperm.slane %v1663, 2
    %v1957 = vperm.slane %v1663, 3
    %v1962 = vmul.f32 %v1922, %v1954
    %v1963 = vmul.f32 %v1932, %v1955
    %v1964 = vmul.f32 %v1942, %v1956
    %v1965 = vmul.f32 %v1952, %v1957
    %v1966 = vperm.slane %v1889, 0
    %v1967 = vperm.slane %v1890, 0
    %v1968 = vperm.slane %v1891, 0
    %v1969 = vperm.slane %v1892, 0
    %v1970 = vsub.f32 %v1330, %v1966
    %v1971 = vsub.f32 %v1428, %v1967
    %v1972 = vsub.f32 %v1526, %v1968
    %v1973 = vsub.f32 %v1624, %v1969
    %v1974 = vsub.f32 %v1332, %v1966
    %v1975 = vsub.f32 %v1430, %v1967
    %v1976 = vsub.f32 %v1528, %v1968
    %v1977 = vsub.f32 %v1626, %v1969
    %v1978 = vsub.f32 %v1335, %v1966
    %v1979 = vsub.f32 %v1433, %v1967
    %v1980 = vsub.f32 %v1531, %v1968
    %v1981 = vsub.f32 %v1629, %v1969
    %v1982 = vsub.f32 %v1337, %v1966
    %v1983 = vsub.f32 %v1435, %v1967
    %v1984 = vsub.f32 %v1533, %v1968
    %v1985 = vsub.f32 %v1631, %v1969
    %v1986 = vsub.f32 %v1340, %v1966
    %v1987 = vsub.f32 %v1438, %v1967
    %v1988 = vsub.f32 %v1536, %v1968
    %v1989 = vsub.f32 %v1634, %v1969
    %v1990 = vsub.f32 %v1342, %v1966
    %v1991 = vsub.f32 %v1440, %v1967
    %v1992 = vsub.f32 %v1538, %v1968
    %v1993 = vsub.f32 %v1636, %v1969
    %v1994 = vsub.f32 %v1345, %v1966
    %v1995 = vsub.f32 %v1443, %v1967
    %v1996 = vsub.f32 %v1541, %v1968
    %v1997 = vsub.f32 %v1639, %v1969
    %v1998 = vsub.f32 %v1347, %v1966
    %v1999 = vsub.f32 %v1445, %v1967
    %v2000 = vsub.f32 %v1543, %v1968
    %v2001 = vsub.f32 %v1641, %v1969
    %v2002 = vsub.f32 %v1350, %v1966
    %v2003 = vsub.f32 %v1448, %v1967
    %v2004 = vsub.f32 %v1546, %v1968
    %v2005 = vsub.f32 %v1644, %v1969
    %v2006 = vsub.f32 %v1352, %v1966
    %v2007 = vsub.f32 %v1450, %v1967
    %v2008 = vsub.f32 %v1548, %v1968
    %v2009 = vsub.f32 %v1646, %v1969
    %v2010 = vsub.f32 %v1355, %v1966
    %v2011 = vsub.f32 %v1453, %v1967
    %v2012 = vsub.f32 %v1551, %v1968
    %v2013 = vsub.f32 %v1649, %v1969
    %v2014 = vsub.f32 %v1357, %v1966
    %v2015 = vsub.f32 %v1455, %v1967
    %v2016 = vsub.f32 %v1553, %v1968
    %v2017 = vsub.f32 %v1651, %v1969
    %v2018 = vsub.f32 %v1360, %v1966
    %v2019 = vsub.f32 %v1458, %v1967
    %v2020 = vsub.f32 %v1556, %v1968
    %v2021 = vsub.f32 %v1654, %v1969
    %v2022 = vsub.f32 %v1362, %v1966
    %v2023 = vsub.f32 %v1460, %v1967
    %v2024 = vsub.f32 %v1558, %v1968
    %v2025 = vsub.f32 %v1656, %v1969
    %v2026 = vsub.f32 %v1365, %v1966
    %v2027 = vsub.f32 %v1463, %v1967
    %v2028 = vsub.f32 %v1561, %v1968
    %v2029 = vsub.f32 %v1659, %v1969
    %v2030 = vsub.f32 %v1367, %v1966
    %v2031 = vsub.f32 %v1465, %v1967
    %v2032 = vsub.f32 %v1563, %v1968
    %v2033 = vsub.f32 %v1661, %v1969
    %v2034 = vperm.slane %v1962, 0
    %v2035 = vperm.slane %v1963, 0
    %v2036 = vperm.slane %v1964, 0
    %v2037 = vperm.slane %v1965, 0
    %v2038 = vmul.f32 %v1970, %v2034
    %v2039 = vmul.f32 %v1971, %v2035
    %v2040 = vmul.f32 %v1972, %v2036
    %v2041 = vmul.f32 %v1973, %v2037
    %v2042 = vmul.f32 %v1974, %v2034
    %v2043 = vmul.f32 %v1975, %v2035
    %v2044 = vmul.f32 %v1976, %v2036
    %v2045 = vmul.f32 %v1977, %v2037
    %v2046 = vmul.f32 %v1978, %v2034
    %v2047 = vmul.f32 %v1979, %v2035
    %v2048 = vmul.f32 %v1980, %v2036
    %v2049 = vmul.f32 %v1981, %v2037
    %v2050 = vmul.f32 %v1982, %v2034
    %v2051 = vmul.f32 %v1983, %v2035
    %v2052 = vmul.f32 %v1984, %v2036
    %v2053 = vmul.f32 %v1985, %v2037
    %v2054 = vmul.f32 %v1986, %v2034
    %v2055 = vmul.f32 %v1987, %v2035
    %v2056 = vmul.f32 %v1988, %v2036
    %v2057 = vmul.f32 %v1989, %v2037
    %v2058 = vmul.f32 %v1990, %v2034
    %v2059 = vmul.f32 %v1991, %v2035
    %v2060 = vmul.f32 %v1992, %v2036
    %v2061 = vmul.f32 %v1993, %v2037
    %v2062 = vmul.f32 %v1994, %v2034
    %v2063 = vmul.f32 %v1995, %v2035
    %v2064 = vmul.f32 %v1996, %v2036
    %v2065 = vmul.f32 %v1997, %v2037
    %v2066 = vmul.f32 %v1998, %v2034
    %v2067 = vmul.f32 %v1999, %v2035
    %v2068 = vmul.f32 %v2000, %v2036
    %v2069 = vmul.f32 %v2001, %v2037
    %v2070 = vmul.f32 %v2002, %v2034
    %v2071 = vmul.f32 %v2003, %v2035
    %v2072 = vmul.f32 %v2004, %v2036
    %v2073 = vmul.f32 %v2005, %v2037
    %v2074 = vmul.f32 %v2006, %v2034
    %v2075 = vmul.f32 %v2007, %v2035
    %v2076 = vmul.f32 %v2008, %v2036
    %v2077 = vmul.f32 %v2009, %v2037
    %v2078 = vmul.f32 %v2010, %v2034
    %v2079 = vmul.f32 %v2011, %v2035
    %v2080 = vmul.f32 %v2012, %v2036
    %v2081 = vmul.f32 %v2013, %v2037
    %v2082 = vmul.f32 %v2014, %v2034
    %v2083 = vmul.f32 %v2015, %v2035
    %v2084 = vmul.f32 %v2016, %v2036
    %v2085 = vmul.f32 %v2017, %v2037
    %v2086 = vmul.f32 %v2018, %v2034
    %v2087 = vmul.f32 %v2019, %v2035
    %v2088 = vmul.f32 %v2020, %v2036
    %v2089 = vmul.f32 %v2021, %v2037
    %v2090 = vmul.f32 %v2022, %v2034
    %v2091 = vmul.f32 %v2023, %v2035
    %v2092 = vmul.f32 %v2024, %v2036
    %v2093 = vmul.f32 %v2025, %v2037
    %v2094 = vmul.f32 %v2026, %v2034
    %v2095 = vmul.f32 %v2027, %v2035
    %v2096 = vmul.f32 %v2028, %v2036
    %v2097 = vmul.f32 %v2029, %v2037
    %v2098 = vmul.f32 %v2030, %v2034
    %v2099 = vmul.f32 %v2031, %v2035
    %v2100 = vmul.f32 %v2032, %v2036
    %v2101 = vmul.f32 %v2033, %v2037
    %v2103 = vperm.slane %v1664, 0
    %v2104 = vperm.slane %v1664, 1
    %v2105 = vperm.slane %v1664, 2
    %v2106 = vperm.slane %v1664, 3
    %v2111 = vadd.f32 %v2038, %v2103
    %v2112 = vadd.f32 %v2039, %v2104
    %v2113 = vadd.f32 %v2040, %v2105
    %v2114 = vadd.f32 %v2041, %v2106
    %v2115 = vadd.f32 %v2042, %v2103
    %v2116 = vadd.f32 %v2043, %v2104
    %v2117 = vadd.f32 %v2044, %v2105
    %v2118 = vadd.f32 %v2045, %v2106
    %v2119 = vadd.f32 %v2046, %v2103
    %v2120 = vadd.f32 %v2047, %v2104
    %v2121 = vadd.f32 %v2048, %v2105
    %v2122 = vadd.f32 %v2049, %v2106
    %v2123 = vadd.f32 %v2050, %v2103
    %v2124 = vadd.f32 %v2051, %v2104
    %v2125 = vadd.f32 %v2052, %v2105
    %v2126 = vadd.f32 %v2053, %v2106
    %v2127 = vadd.f32 %v2054, %v2103
    %v2128 = vadd.f32 %v2055, %v2104
    %v2129 = vadd.f32 %v2056, %v2105
    %v2130 = vadd.f32 %v2057, %v2106
    %v2131 = vadd.f32 %v2058, %v2103
    %v2132 = vadd.f32 %v2059, %v2104
    %v2133 = vadd.f32 %v2060, %v2105
    %v2134 = vadd.f32 %v2061, %v2106
    %v2135 = vadd.f32 %v2062, %v2103
    %v2136 = vadd.f32 %v2063, %v2104
    %v2137 = vadd.f32 %v2064, %v2105
    %v2138 = vadd.f32 %v2065, %v2106
    %v2139 = vadd.f32 %v2066, %v2103
    %v2140 = vadd.f32 %v2067, %v2104
    %v2141 = vadd.f32 %v2068, %v2105
    %v2142 = vadd.f32 %v2069, %v2106
    %v2143 = vadd.f32 %v2070, %v2103
    %v2144 = vadd.f32 %v2071, %v2104
    %v2145 = vadd.f32 %v2072, %v2105
    %v2146 = vadd.f32 %v2073, %v2106
    %v2147 = vadd.f32 %v2074, %v2103
    %v2148 = vadd.f32 %v2075, %v2104
    %v2149 = vadd.f32 %v2076, %v2105
    %v2150 = vadd.f32 %v2077, %v2106
    %v2151 = vadd.f32 %v2078, %v2103
    %v2152 = vadd.f32 %v2079, %v2104
    %v2153 = vadd.f32 %v2080, %v2105
    %v2154 = vadd.f32 %v2081, %v2106
    %v2155 = vadd.f32 %v2082, %v2103
    %v2156 = vadd.f32 %v2083, %v2104
    %v2157 = vadd.f32 %v2084, %v2105
    %v2158 = vadd.f32 %v2085, %v2106
    %v2159 = vadd.f32 %v2086, %v2103
    %v2160 = vadd.f32 %v2087, %v2104
    %v2161 = vadd.f32 %v2088, %v2105
    %v2162 = vadd.f32 %v2089, %v2106
    %v2163 = vadd.f32 %v2090, %v2103
    %v2164 = vadd.f32 %v2091, %v2104
    %v2165 = vadd.f32 %v2092, %v2105
    %v2166 = vadd.f32 %v2093, %v2106
    %v2167 = vadd.f32 %v2094, %v2103
    %v2168 = vadd.f32 %v2095, %v2104
    %v2169 = vadd.f32 %v2096, %v2105
    %v2170 = vadd.f32 %v2097, %v2106
    %v2171 = vadd.f32 %v2098, %v2103
    %v2172 = vadd.f32 %v2099, %v2104
    %v2173 = vadd.f32 %v2100, %v2105
    %v2174 = vadd.f32 %v2101, %v2106
    %v2175 = vmul.f32 %v2111, 0.01
    %v2176 = vmul.f32 %v2112, 0.01
    %v2177 = vmul.f32 %v2113, 0.01
    %v2178 = vmul.f32 %v2114, 0.01
    %v2179 = vmul.f32 %v2115, 0.01
    %v2180 = vmul.f32 %v2116, 0.01
    %v2181 = vmul.f32 %v2117, 0.01
    %v2182 = vmul.f32 %v2118, 0.01
    %v2183 = vmul.f32 %v2119, 0.01
    %v2184 = vmul.f32 %v2120, 0.01
    %v2185 = vmul.f32 %v2121, 0.01
    %v2186 = vmul.f32 %v2122, 0.01
    %v2187 = vmul.f32 %v2123, 0.01
    %v2188 = vmul.f32 %v2124, 0.01
    %v2189 = vmul.f32 %v2125, 0.01
    %v2190 = vmul.f32 %v2126, 0.01
    %v2191 = vmul.f32 %v2127, 0.01
    %v2192 = vmul.f32 %v2128, 0.01
    %v2193 = vmul.f32 %v2129, 0.01
    %v2194 = vmul.f32 %v2130, 0.01
    %v2195 = vmul.f32 %v2131, 0.01
    %v2196 = vmul.f32 %v2132, 0.01
    %v2197 = vmul.f32 %v2133, 0.01
    %v2198 = vmul.f32 %v2134, 0.01
    %v2199 = vmul.f32 %v2135, 0.01
    %v2200 = vmul.f32 %v2136, 0.01
    %v2201 = vmul.f32 %v2137, 0.01
    %v2202 = vmul.f32 %v2138, 0.01
    %v2203 = vmul.f32 %v2139, 0.01
    %v2204 = vmul.f32 %v2140, 0.01
    %v2205 = vmul.f32 %v2141, 0.01
    %v2206 = vmul.f32 %v2142, 0.01
    %v2207 = vmul.f32 %v2143, 0.01
    %v2208 = vmul.f32 %v2144, 0.01
    %v2209 = vmul.f32 %v2145, 0.01
    %v2210 = vmul.f32 %v2146, 0.01
    %v2211 = vmul.f32 %v2147, 0.01
    %v2212 = vmul.f32 %v2148, 0.01
    %v2213 = vmul.f32 %v2149, 0.01
    %v2214 = vmul.f32 %v2150, 0.01
    %v2215 = vmul.f32 %v2151, 0.01
    %v2216 = vmul.f32 %v2152, 0.01
    %v2217 = vmul.f32 %v2153, 0.01
    %v2218 = vmul.f32 %v2154, 0.01
    %v2219 = vmul.f32 %v2155, 0.01
    %v2220 = vmul.f32 %v2156, 0.01
    %v2221 = vmul.f32 %v2157, 0.01
    %v2222 = vmul.f32 %v2158, 0.01
    %v2223 = vmul.f32 %v2159, 0.01
    %v2224 = vmul.f32 %v2160, 0.01
    %v2225 = vmul.f32 %v2161, 0.01
    %v2226 = vmul.f32 %v2162, 0.01
    %v2227 = vmul.f32 %v2163, 0.01
    %v2228 = vmul.f32 %v2164, 0.01
    %v2229 = vmul.f32 %v2165, 0.01
    %v2230 = vmul.f32 %v2166, 0.01
    %v2231 = vmul.f32 %v2167, 0.01
    %v2232 = vmul.f32 %v2168, 0.01
    %v2233 = vmul.f32 %v2169, 0.01
    %v2234 = vmul.f32 %v2170, 0.01
    %v2235 = vmul.f32 %v2171, 0.01
    %v2236 = vmul.f32 %v2172, 0.01
    %v2237 = vmul.f32 %v2173, 0.01
    %v2238 = vmul.f32 %v2174, 0.01
    %v2239 = vmax.f32 %v2111, %v2175
    %v2240 = vmax.f32 %v2112, %v2176
    %v2241 = vmax.f32 %v2113, %v2177
    %v2242 = vmax.f32 %v2114, %v2178
    %v2243 = vmax.f32 %v2115, %v2179
    %v2244 = vmax.f32 %v2116, %v2180
    %v2245 = vmax.f32 %v2117, %v2181
    %v2246 = vmax.f32 %v2118, %v2182
    %v2247 = vmax.f32 %v2119, %v2183
    %v2248 = vmax.f32 %v2120, %v2184
    %v2249 = vmax.f32 %v2121, %v2185
    %v2250 = vmax.f32 %v2122, %v2186
    %v2251 = vmax.f32 %v2123, %v2187
    %v2252 = vmax.f32 %v2124, %v2188
    %v2253 = vmax.f32 %v2125, %v2189
    %v2254 = vmax.f32 %v2126, %v2190
    %v2255 = vmax.f32 %v2127, %v2191
    %v2256 = vmax.f32 %v2128, %v2192
    %v2257 = vmax.f32 %v2129, %v2193
    %v2258 = vmax.f32 %v2130, %v2194
    %v2259 = vmax.f32 %v2131, %v2195
    %v2260 = vmax.f32 %v2132, %v2196
    %v2261 = vmax.f32 %v2133, %v2197
    %v2262 = vmax.f32 %v2134, %v2198
    %v2263 = vmax.f32 %v2135, %v2199
    %v2264 = vmax.f32 %v2136, %v2200
    %v2265 = vmax.f32 %v2137, %v2201
    %v2266 = vmax.f32 %v2138, %v2202
    %v2267 = vmax.f32 %v2139, %v2203
    %v2268 = vmax.f32 %v2140, %v2204
    %v2269 = vmax.f32 %v2141, %v2205
    %v2270 = vmax.f32 %v2142, %v2206
    %v2271 = vmax.f32 %v2143, %v2207
    %v2272 = vmax.f32 %v2144, %v2208
    %v2273 = vmax.f32 %v2145, %v2209
    %v2274 = vmax.f32 %v2146, %v2210
    %v2275 = vmax.f32 %v2147, %v2211
    %v2276 = vmax.f32 %v2148, %v2212
    %v2277 = vmax.f32 %v2149, %v2213
    %v2278 = vmax.f32 %v2150, %v2214
    %v2279 = vmax.f32 %v2151, %v2215
    %v2280 = vmax.f32 %v2152, %v2216
    %v2281 = vmax.f32 %v2153, %v2217
    %v2282 = vmax.f32 %v2154, %v2218
    %v2283 = vmax.f32 %v2155, %v2219
    %v2284 = vmax.f32 %v2156, %v2220
    %v2285 = vmax.f32 %v2157, %v2221
    %v2286 = vmax.f32 %v2158, %v2222
    %v2287 = vmax.f32 %v2159, %v2223
    %v2288 = vmax.f32 %v2160, %v2224
    %v2289 = vmax.f32 %v2161, %v2225
    %v2290 = vmax.f32 %v2162, %v2226
    %v2291 = vmax.f32 %v2163, %v2227
    %v2292 = vmax.f32 %v2164, %v2228
    %v2293 = vmax.f32 %v2165, %v2229
    %v2294 = vmax.f32 %v2166, %v2230
    %v2295 = vmax.f32 %v2167, %v2231
    %v2296 = vmax.f32 %v2168, %v2232
    %v2297 = vmax.f32 %v2169, %v2233
    %v2298 = vmax.f32 %v2170, %v2234
    %v2299 = vmax.f32 %v2171, %v2235
    %v2300 = vmax.f32 %v2172, %v2236
    %v2301 = vmax.f32 %v2173, %v2237
    %v2302 = vmax.f32 %v2174, %v2238
    %v2303 = vpack.c.bf16 %v2243, %v2239
    %v2304 = vpack.c.bf16 %v2244, %v2240
    %v2305 = vpack.c.bf16 %v2245, %v2241
    %v2306 = vpack.c.bf16 %v2246, %v2242
    %v2307 = vpack.c.bf16 %v2251, %v2247
    %v2308 = vpack.c.bf16 %v2252, %v2248
    %v2309 = vpack.c.bf16 %v2253, %v2249
    %v2310 = vpack.c.bf16 %v2254, %v2250
    %v2311 = vpack.c.bf16 %v2259, %v2255
    %v2312 = vpack.c.bf16 %v2260, %v2256
    %v2313 = vpack.c.bf16 %v2261, %v2257
    %v2314 = vpack.c.bf16 %v2262, %v2258
    %v2315 = vpack.c.bf16 %v2267, %v2263
    %v2316 = vpack.c.bf16 %v2268, %v2264
    %v2317 = vpack.c.bf16 %v2269, %v2265
    %v2318 = vpack.c.bf16 %v2270, %v2266
    %v2319 = vpack.c.bf16 %v2275, %v2271
    %v2320 = vpack.c.bf16 %v2276, %v2272
    %v2321 = vpack.c.bf16 %v2277, %v2273
    %v2322 = vpack.c.bf16 %v2278, %v2274
    %v2323 = vpack.c.bf16 %v2283, %v2279
    %v2324 = vpack.c.bf16 %v2284, %v2280
    %v2325 = vpack.c.bf16 %v2285, %v2281
    %v2326 = vpack.c.bf16 %v2286, %v2282
    %v2327 = vpack.c.bf16 %v2291, %v2287
    %v2328 = vpack.c.bf16 %v2292, %v2288
    %v2329 = vpack.c.bf16 %v2293, %v2289
    %v2330 = vpack.c.bf16 %v2294, %v2290
    %v2331 = vpack.c.bf16 %v2299, %v2295
    %v2332 = vpack.c.bf16 %v2300, %v2296
    %v2333 = vpack.c.bf16 %v2301, %v2297
    %v2334 = vpack.c.bf16 %v2302, %v2298
    %v2335 = vld [vmem:[#allocation5] sm:$0xf]
    %v2336 = vld [vmem:[#allocation5 + $0x4] sm:$0xf]
    %v2337 = vld [vmem:[#allocation5 + $0x8] sm:$0xf]
    %v2338 = vld [vmem:[#allocation5 + $0xc] sm:$0xf]
    %v2339 = vld [vmem:[#allocation5 + $0x10] sm:$0xf]
    %v2340 = vld [vmem:[#allocation5 + $0x14] sm:$0xf]
    %v2341 = vld [vmem:[#allocation5 + $0x18] sm:$0xf]
    %v2342 = vld [vmem:[#allocation5 + $0x1c] sm:$0xf]
    %v2343 = vld [vmem:[#allocation5 + $0x20] sm:$0xf]
    %v2344 = vld [vmem:[#allocation5 + $0x24] sm:$0xf]
    %v2345 = vld [vmem:[#allocation5 + $0x28] sm:$0xf]
    %v2346 = vld [vmem:[#allocation5 + $0x2c] sm:$0xf]
    %v2347 = vld [vmem:[#allocation5 + $0x30] sm:$0xf]
    %v2348 = vld [vmem:[#allocation5 + $0x34] sm:$0xf]
    %v2349 = vld [vmem:[#allocation5 + $0x38] sm:$0xf]
    %v2350 = vld [vmem:[#allocation5 + $0x3c] sm:$0xf]
    %v2351 = vld [vmem:[#allocation5 + $0x40] sm:$0xf]
    %v2352 = vld [vmem:[#allocation5 + $0x44] sm:$0xf]
    %v2353 = vld [vmem:[#allocation5 + $0x48] sm:$0xf]
    %v2354 = vld [vmem:[#allocation5 + $0x4c] sm:$0xf]
    %v2355 = vld [vmem:[#allocation5 + $0x50] sm:$0xf]
    %v2356 = vld [vmem:[#allocation5 + $0x54] sm:$0xf]
    %v2357 = vld [vmem:[#allocation5 + $0x58] sm:$0xf]
    %v2358 = vld [vmem:[#allocation5 + $0x5c] sm:$0xf]
    %v2359 = vld [vmem:[#allocation5 + $0x60] sm:$0xf]
    %v2360 = vld [vmem:[#allocation5 + $0x64] sm:$0xf]
    %v2361 = vld [vmem:[#allocation5 + $0x68] sm:$0xf]
    %v2362 = vld [vmem:[#allocation5 + $0x6c] sm:$0xf]
    %v2363 = vld [vmem:[#allocation5 + $0x70] sm:$0xf]
    %v2364 = vld [vmem:[#allocation5 + $0x74] sm:$0xf]
    %v2365 = vld [vmem:[#allocation5 + $0x78] sm:$0xf]
    %v2366 = vld [vmem:[#allocation5 + $0x7c] sm:$0xf]
    %v2367 = vld [vmem:[#allocation5 + $0x80] sm:$0xf]
    %v2368 = vld [vmem:[#allocation5 + $0x84] sm:$0xf]
    %v2369 = vld [vmem:[#allocation5 + $0x88] sm:$0xf]
    %v2370 = vld [vmem:[#allocation5 + $0x8c] sm:$0xf]
    %v2371 = vld [vmem:[#allocation5 + $0x90] sm:$0xf]
    %v2372 = vld [vmem:[#allocation5 + $0x94] sm:$0xf]
    %v2373 = vld [vmem:[#allocation5 + $0x98] sm:$0xf]
    %v2374 = vld [vmem:[#allocation5 + $0x9c] sm:$0xf]
    %v2375 = vld [vmem:[#allocation5 + $0xa0] sm:$0xf]
    %v2376 = vld [vmem:[#allocation5 + $0xa4] sm:$0xf]
    %v2377 = vld [vmem:[#allocation5 + $0xa8] sm:$0xf]
    %v2378 = vld [vmem:[#allocation5 + $0xac] sm:$0xf]
    %v2379 = vld [vmem:[#allocation5 + $0xb0] sm:$0xf]
    %v2380 = vld [vmem:[#allocation5 + $0xb4] sm:$0xf]
    %v2381 = vld [vmem:[#allocation5 + $0xb8] sm:$0xf]
    %v2382 = vld [vmem:[#allocation5 + $0xbc] sm:$0xf]
    %v2383 = vld [vmem:[#allocation5 + $0xc0] sm:$0xf]
    %v2384 = vld [vmem:[#allocation5 + $0xc4] sm:$0xf]
    %v2385 = vld [vmem:[#allocation5 + $0xc8] sm:$0xf]
    %v2386 = vld [vmem:[#allocation5 + $0xcc] sm:$0xf]
    %v2387 = vld [vmem:[#allocation5 + $0xd0] sm:$0xf]
    %v2388 = vld [vmem:[#allocation5 + $0xd4] sm:$0xf]
    %v2389 = vld [vmem:[#allocation5 + $0xd8] sm:$0xf]
    %v2390 = vld [vmem:[#allocation5 + $0xdc] sm:$0xf]
    %v2391 = vld [vmem:[#allocation5 + $0xe0] sm:$0xf]
    %v2392 = vld [vmem:[#allocation5 + $0xe4] sm:$0xf]
    %v2393 = vld [vmem:[#allocation5 + $0xe8] sm:$0xf]
    %v2394 = vld [vmem:[#allocation5 + $0xec] sm:$0xf]
    %v2395 = vld [vmem:[#allocation5 + $0xf0] sm:$0xf]
    %v2396 = vld [vmem:[#allocation5 + $0xf4] sm:$0xf]
    %v2397 = vld [vmem:[#allocation5 + $0xf8] sm:$0xf]
    %v2398 = vld [vmem:[#allocation5 + $0xfc] sm:$0xf]
    %v2399 = vld [vmem:[%s11] sm:$0x1]
    %v2401 = vperm.slane %v2399, 0
    %v2467 = vunpack.c.l.b16 %v2335
    %v2468 = vunpack.c.l.b16 %v2336
    %v2469 = vunpack.c.l.b16 %v2337
    %v2470 = vunpack.c.l.b16 %v2338
    %v2471 = vunpack.c.l.b16 %v2339
    %v2472 = vunpack.c.l.b16 %v2340
    %v2473 = vunpack.c.l.b16 %v2341
    %v2474 = vunpack.c.l.b16 %v2342
    %v2475 = vunpack.c.l.b16 %v2343
    %v2476 = vunpack.c.l.b16 %v2344
    %v2477 = vunpack.c.l.b16 %v2345
    %v2478 = vunpack.c.l.b16 %v2346
    %v2479 = vunpack.c.l.b16 %v2347
    %v2480 = vunpack.c.l.b16 %v2348
    %v2481 = vunpack.c.l.b16 %v2349
    %v2482 = vunpack.c.l.b16 %v2350
    %v2483 = vunpack.c.l.b16 %v2351
    %v2484 = vunpack.c.l.b16 %v2352
    %v2485 = vunpack.c.l.b16 %v2353
    %v2486 = vunpack.c.l.b16 %v2354
    %v2487 = vunpack.c.l.b16 %v2355
    %v2488 = vunpack.c.l.b16 %v2356
    %v2489 = vunpack.c.l.b16 %v2357
    %v2490 = vunpack.c.l.b16 %v2358
    %v2491 = vunpack.c.l.b16 %v2359
    %v2492 = vunpack.c.l.b16 %v2360
    %v2493 = vunpack.c.l.b16 %v2361
    %v2494 = vunpack.c.l.b16 %v2362
    %v2495 = vunpack.c.l.b16 %v2363
    %v2496 = vunpack.c.l.b16 %v2364
    %v2497 = vunpack.c.l.b16 %v2365
    %v2498 = vunpack.c.l.b16 %v2366
    %v2499 = vunpack.c.l.b16 %v2367
    %v2500 = vunpack.c.l.b16 %v2368
    %v2501 = vunpack.c.l.b16 %v2369
    %v2502 = vunpack.c.l.b16 %v2370
    %v2503 = vunpack.c.l.b16 %v2371
    %v2504 = vunpack.c.l.b16 %v2372
    %v2505 = vunpack.c.l.b16 %v2373
    %v2506 = vunpack.c.l.b16 %v2374
    %v2507 = vunpack.c.l.b16 %v2375
    %v2508 = vunpack.c.l.b16 %v2376
    %v2509 = vunpack.c.l.b16 %v2377
    %v2510 = vunpack.c.l.b16 %v2378
    %v2511 = vunpack.c.l.b16 %v2379
    %v2512 = vunpack.c.l.b16 %v2380
    %v2513 = vunpack.c.l.b16 %v2381
    %v2514 = vunpack.c.l.b16 %v2382
    %v2515 = vunpack.c.l.b16 %v2383
    %v2516 = vunpack.c.l.b16 %v2384
    %v2517 = vunpack.c.l.b16 %v2385
    %v2518 = vunpack.c.l.b16 %v2386
    %v2519 = vunpack.c.l.b16 %v2387
    %v2520 = vunpack.c.l.b16 %v2388
    %v2521 = vunpack.c.l.b16 %v2389
    %v2522 = vunpack.c.l.b16 %v2390
    %v2523 = vunpack.c.l.b16 %v2391
    %v2524 = vunpack.c.l.b16 %v2392
    %v2525 = vunpack.c.l.b16 %v2393
    %v2526 = vunpack.c.l.b16 %v2394
    %v2527 = vunpack.c.l.b16 %v2395
    %v2528 = vunpack.c.l.b16 %v2396
    %v2529 = vunpack.c.l.b16 %v2397
    %v2530 = vunpack.c.l.b16 %v2398
    %v2531 = vpack.c.b16 %v2468, %v2467
    %v2532 = vpack.c.b16 %v2470, %v2469
    %v2533 = vpack.c.b16 %v2472, %v2471
    %v2534 = vpack.c.b16 %v2474, %v2473
    %v2535 = vpack.c.b16 %v2476, %v2475
    %v2536 = vpack.c.b16 %v2478, %v2477
    %v2537 = vpack.c.b16 %v2480, %v2479
    %v2538 = vpack.c.b16 %v2482, %v2481
    %v2539 = vpack.c.b16 %v2484, %v2483
    %v2540 = vpack.c.b16 %v2486, %v2485
    %v2541 = vpack.c.b16 %v2488, %v2487
    %v2542 = vpack.c.b16 %v2490, %v2489
    %v2543 = vpack.c.b16 %v2492, %v2491
    %v2544 = vpack.c.b16 %v2494, %v2493
    %v2545 = vpack.c.b16 %v2496, %v2495
    %v2546 = vpack.c.b16 %v2498, %v2497
    %v2547 = vpack.c.b16 %v2500, %v2499
    %v2548 = vpack.c.b16 %v2502, %v2501
    %v2549 = vpack.c.b16 %v2504, %v2503
    %v2550 = vpack.c.b16 %v2506, %v2505
    %v2551 = vpack.c.b16 %v2508, %v2507
    %v2552 = vpack.c.b16 %v2510, %v2509
    %v2553 = vpack.c.b16 %v2512, %v2511
    %v2554 = vpack.c.b16 %v2514, %v2513
    %v2555 = vpack.c.b16 %v2516, %v2515
    %v2556 = vpack.c.b16 %v2518, %v2517
    %v2557 = vpack.c.b16 %v2520, %v2519
    %v2558 = vpack.c.b16 %v2522, %v2521
    %v2559 = vpack.c.b16 %v2524, %v2523
    %v2560 = vpack.c.b16 %v2526, %v2525
    %v2561 = vpack.c.b16 %v2528, %v2527
    %v2562 = vpack.c.b16 %v2530, %v2529
    %2595 = vmatpush.bf16.msra.mxu0 %v2538
    %2596 = vmatpush.bf16.msra.mxu0 %v2537
    %2597 = vmatpush.bf16.msra.mxu0 %v2536
    %2598 = vmatpush.bf16.msra.mxu0 %v2535
    %2599 = vmatpush.bf16.msra.mxu0 %v2534
    %2600 = vmatpush.bf16.msra.mxu0 %v2533
    %2601 = vmatpush.bf16.msra.mxu0 %v2532
    %2602 = vmatpush.bf16.msra.mxu0 %v2531
    %2603 = vmatmul.bf16.gmra.mxu0 %v2303
    %v2604 = vpop.f32.mrf.mxu0
    %v2605 = vadd.f32 %v2401, %v2604
    %v2606 = vpop.f32.mrf.mxu0
    %v2607 = vadd.f32 %v2401, %v2606
    %2608 = vmatmul.bf16.gmra.mxu0 %v2307
    %v2609 = vpop.f32.mrf.mxu0
    %v2610 = vadd.f32 %v2401, %v2609
    %v2611 = vpop.f32.mrf.mxu0
    %v2612 = vadd.f32 %v2401, %v2611
    %2613 = vmatmul.bf16.gmra.mxu0 %v2311
    %v2614 = vpop.f32.mrf.mxu0
    %v2615 = vadd.f32 %v2401, %v2614
    %v2616 = vpop.f32.mrf.mxu0
    %v2617 = vadd.f32 %v2401, %v2616
    %2618 = vmatmul.bf16.gmra.mxu0 %v2315
    %v2619 = vpop.f32.mrf.mxu0
    %v2620 = vadd.f32 %v2401, %v2619
    %v2621 = vpop.f32.mrf.mxu0
    %v2622 = vadd.f32 %v2401, %v2621
    %2623 = vmatmul.bf16.gmra.mxu0 %v2319
    %v2624 = vpop.f32.mrf.mxu0
    %v2625 = vadd.f32 %v2401, %v2624
    %v2626 = vpop.f32.mrf.mxu0
    %v2627 = vadd.f32 %v2401, %v2626
    %2628 = vmatmul.bf16.gmra.mxu0 %v2323
    %v2629 = vpop.f32.mrf.mxu0
    %v2630 = vadd.f32 %v2401, %v2629
    %v2631 = vpop.f32.mrf.mxu0
    %v2632 = vadd.f32 %v2401, %v2631
    %2633 = vmatmul.bf16.gmra.mxu0 %v2327
    %v2634 = vpop.f32.mrf.mxu0
    %v2635 = vadd.f32 %v2401, %v2634
    %v2636 = vpop.f32.mrf.mxu0
    %v2637 = vadd.f32 %v2401, %v2636
    %2638 = vmatmul.bf16.gmra.mxu0 %v2331
    %v2639 = vpop.f32.mrf.mxu0
    %v2640 = vadd.f32 %v2401, %v2639
    %v2641 = vpop.f32.mrf.mxu0
    %v2642 = vadd.f32 %v2401, %v2641
    %2643 = vdwg.mxu0
    %2644 = vmatpush.bf16.msra.mxu0 %v2546
    %2645 = vmatpush.bf16.msra.mxu0 %v2545
    %2646 = vmatpush.bf16.msra.mxu0 %v2544
    %2647 = vmatpush.bf16.msra.mxu0 %v2543
    %2648 = vmatpush.bf16.msra.mxu0 %v2542
    %2649 = vmatpush.bf16.msra.mxu0 %v2541
    %2650 = vmatpush.bf16.msra.mxu0 %v2540
    %2651 = vmatpush.bf16.msra.mxu0 %v2539
    %2652 = vmatmul.bf16.gmra.mxu0 %v2304
    %v2653 = vpop.f32.mrf.mxu0
    %v2654 = vadd.f32 %v2605, %v2653
    %v2655 = vpop.f32.mrf.mxu0
    %v2656 = vadd.f32 %v2607, %v2655
    %2657 = vmatmul.bf16.gmra.mxu0 %v2308
    %v2658 = vpop.f32.mrf.mxu0
    %v2659 = vadd.f32 %v2610, %v2658
    %v2660 = vpop.f32.mrf.mxu0
    %v2661 = vadd.f32 %v2612, %v2660
    %2662 = vmatmul.bf16.gmra.mxu0 %v2312
    %v2663 = vpop.f32.mrf.mxu0
    %v2664 = vadd.f32 %v2615, %v2663
    %v2665 = vpop.f32.mrf.mxu0
    %v2666 = vadd.f32 %v2617, %v2665
    %2667 = vmatmul.bf16.gmra.mxu0 %v2316
    %v2668 = vpop.f32.mrf.mxu0
    %v2669 = vadd.f32 %v2620, %v2668
    %v2670 = vpop.f32.mrf.mxu0
    %v2671 = vadd.f32 %v2622, %v2670
    %2672 = vmatmul.bf16.gmra.mxu0 %v2320
    %v2673 = vpop.f32.mrf.mxu0
    %v2674 = vadd.f32 %v2625, %v2673
    %v2675 = vpop.f32.mrf.mxu0
    %v2676 = vadd.f32 %v2627, %v2675
    %2677 = vmatmul.bf16.gmra.mxu0 %v2324
    %v2678 = vpop.f32.mrf.mxu0
    %v2679 = vadd.f32 %v2630, %v2678
    %v2680 = vpop.f32.mrf.mxu0
    %v2681 = vadd.f32 %v2632, %v2680
    %2682 = vmatmul.bf16.gmra.mxu0 %v2328
    %v2683 = vpop.f32.mrf.mxu0
    %v2684 = vadd.f32 %v2635, %v2683
    %v2685 = vpop.f32.mrf.mxu0
    %v2686 = vadd.f32 %v2637, %v2685
    %2687 = vmatmul.bf16.gmra.mxu0 %v2332
    %v2688 = vpop.f32.mrf.mxu0
    %v2689 = vadd.f32 %v2640, %v2688
    %v2690 = vpop.f32.mrf.mxu0
    %v2691 = vadd.f32 %v2642, %v2690
    %2692 = vdwg.mxu0
    %2693 = vmatpush.bf16.msra.mxu0 %v2554
    %2694 = vmatpush.bf16.msra.mxu0 %v2553
    %2695 = vmatpush.bf16.msra.mxu0 %v2552
    %2696 = vmatpush.bf16.msra.mxu0 %v2551
    %2697 = vmatpush.bf16.msra.mxu0 %v2550
    %2698 = vmatpush.bf16.msra.mxu0 %v2549
    %2699 = vmatpush.bf16.msra.mxu0 %v2548
    %2700 = vmatpush.bf16.msra.mxu0 %v2547
    %2701 = vmatmul.bf16.gmra.mxu0 %v2305
    %v2702 = vpop.f32.mrf.mxu0
    %v2703 = vadd.f32 %v2654, %v2702
    %v2704 = vpop.f32.mrf.mxu0
    %v2705 = vadd.f32 %v2656, %v2704
    %2706 = vmatmul.bf16.gmra.mxu0 %v2309
    %v2707 = vpop.f32.mrf.mxu0
    %v2708 = vadd.f32 %v2659, %v2707
    %v2709 = vpop.f32.mrf.mxu0
    %v2710 = vadd.f32 %v2661, %v2709
    %2711 = vmatmul.bf16.gmra.mxu0 %v2313
    %v2712 = vpop.f32.mrf.mxu0
    %v2713 = vadd.f32 %v2664, %v2712
    %v2714 = vpop.f32.mrf.mxu0
    %v2715 = vadd.f32 %v2666, %v2714
    %2716 = vmatmul.bf16.gmra.mxu0 %v2317
    %v2717 = vpop.f32.mrf.mxu0
    %v2718 = vadd.f32 %v2669, %v2717
    %v2719 = vpop.f32.mrf.mxu0
    %v2720 = vadd.f32 %v2671, %v2719
    %2721 = vmatmul.bf16.gmra.mxu0 %v2321
    %v2722 = vpop.f32.mrf.mxu0
    %v2723 = vadd.f32 %v2674, %v2722
    %v2724 = vpop.f32.mrf.mxu0
    %v2725 = vadd.f32 %v2676, %v2724
    %2726 = vmatmul.bf16.gmra.mxu0 %v2325
    %v2727 = vpop.f32.mrf.mxu0
    %v2728 = vadd.f32 %v2679, %v2727
    %v2729 = vpop.f32.mrf.mxu0
    %v2730 = vadd.f32 %v2681, %v2729
    %2731 = vmatmul.bf16.gmra.mxu0 %v2329
    %v2732 = vpop.f32.mrf.mxu0
    %v2733 = vadd.f32 %v2684, %v2732
    %v2734 = vpop.f32.mrf.mxu0
    %v2735 = vadd.f32 %v2686, %v2734
    %2736 = vmatmul.bf16.gmra.mxu0 %v2333
    %v2737 = vpop.f32.mrf.mxu0
    %v2738 = vadd.f32 %v2689, %v2737
    %v2739 = vpop.f32.mrf.mxu0
    %v2740 = vadd.f32 %v2691, %v2739
    %2741 = vdwg.mxu0
    %2742 = vmatpush.bf16.msra.mxu0 %v2562
    %2743 = vmatpush.bf16.msra.mxu0 %v2561
    %2744 = vmatpush.bf16.msra.mxu0 %v2560
    %2745 = vmatpush.bf16.msra.mxu0 %v2559
    %2746 = vmatpush.bf16.msra.mxu0 %v2558
    %2747 = vmatpush.bf16.msra.mxu0 %v2557
    %2748 = vmatpush.bf16.msra.mxu0 %v2556
    %2749 = vmatpush.bf16.msra.mxu0 %v2555
    %2750 = vmatmul.bf16.gmra.mxu0 %v2306
    %v2751 = vpop.f32.mrf.mxu0
    %v2752 = vadd.f32 %v2703, %v2751
    %v2753 = vpop.f32.mrf.mxu0
    %v2754 = vadd.f32 %v2705, %v2753
    %2755 = vmatmul.bf16.gmra.mxu0 %v2310
    %v2756 = vpop.f32.mrf.mxu0
    %v2757 = vadd.f32 %v2708, %v2756
    %v2758 = vpop.f32.mrf.mxu0
    %v2759 = vadd.f32 %v2710, %v2758
    %2760 = vmatmul.bf16.gmra.mxu0 %v2314
    %v2761 = vpop.f32.mrf.mxu0
    %v2762 = vadd.f32 %v2713, %v2761
    %v2763 = vpop.f32.mrf.mxu0
    %v2764 = vadd.f32 %v2715, %v2763
    %2765 = vmatmul.bf16.gmra.mxu0 %v2318
    %v2766 = vpop.f32.mrf.mxu0
    %v2767 = vadd.f32 %v2718, %v2766
    %v2768 = vpop.f32.mrf.mxu0
    %v2769 = vadd.f32 %v2720, %v2768
    %2770 = vmatmul.bf16.gmra.mxu0 %v2322
    %v2771 = vpop.f32.mrf.mxu0
    %v2772 = vadd.f32 %v2723, %v2771
    %v2773 = vpop.f32.mrf.mxu0
    %v2774 = vadd.f32 %v2725, %v2773
    %2775 = vmatmul.bf16.gmra.mxu0 %v2326
    %v2776 = vpop.f32.mrf.mxu0
    %v2777 = vadd.f32 %v2728, %v2776
    %v2778 = vpop.f32.mrf.mxu0
    %v2779 = vadd.f32 %v2730, %v2778
    %2780 = vmatmul.bf16.gmra.mxu0 %v2330
    %v2781 = vpop.f32.mrf.mxu0
    %v2782 = vadd.f32 %v2733, %v2781
    %v2783 = vpop.f32.mrf.mxu0
    %v2784 = vadd.f32 %v2735, %v2783
    %2785 = vmatmul.bf16.gmra.mxu0 %v2334
    %v2786 = vpop.f32.mrf.mxu0
    %v2787 = vadd.f32 %v2738, %v2786
    %v2788 = vpop.f32.mrf.mxu0
    %v2789 = vadd.f32 %v2740, %v2788
    %2790 = vdwg.mxu0
    %2791 = vadd.xlane.f32.xlu0 %v2752
    %v2792 = vpop.xlane.xlu0 %2791
    %2793 = vadd.xlane.f32.xlu0 %v2754
    %v2794 = vpop.xlane.xlu0 %2793
    %2795 = vadd.xlane.f32.xlu0 %v2757
    %v2796 = vpop.xlane.xlu0 %2795
    %2797 = vadd.xlane.f32.xlu0 %v2759
    %v2798 = vpop.xlane.xlu0 %2797
    %2799 = vadd.xlane.f32.xlu0 %v2762
    %v2800 = vpop.xlane.xlu0 %2799
    %2801 = vadd.xlane.f32.xlu0 %v2764
    %v2802 = vpop.xlane.xlu0 %2801
    %2803 = vadd.xlane.f32.xlu0 %v2767
    %v2804 = vpop.xlane.xlu0 %2803
    %2805 = vadd.xlane.f32.xlu0 %v2769
    %v2806 = vpop.xlane.xlu0 %2805
    %2807 = vadd.xlane.f32.xlu0 %v2772
    %v2808 = vpop.xlane.xlu0 %2807
    %2809 = vadd.xlane.f32.xlu0 %v2774
    %v2810 = vpop.xlane.xlu0 %2809
    %2811 = vadd.xlane.f32.xlu0 %v2777
    %v2812 = vpop.xlane.xlu0 %2811
    %2813 = vadd.xlane.f32.xlu0 %v2779
    %v2814 = vpop.xlane.xlu0 %2813
    %2815 = vadd.xlane.f32.xlu0 %v2782
    %v2816 = vpop.xlane.xlu0 %2815
    %2817 = vadd.xlane.f32.xlu0 %v2784
    %v2818 = vpop.xlane.xlu0 %2817
    %2819 = vadd.xlane.f32.xlu0 %v2787
    %v2820 = vpop.xlane.xlu0 %2819
    %2821 = vadd.xlane.f32.xlu0 %v2789
    %v2822 = vpop.xlane.xlu0 %2821
    %v2823 = vxor.u32 %v2792, 2147483648
    %v2824 = vxor.u32 %v2794, 2147483648
    %v2825 = vxor.u32 %v2796, 2147483648
    %v2826 = vxor.u32 %v2798, 2147483648
    %v2827 = vxor.u32 %v2800, 2147483648
    %v2828 = vxor.u32 %v2802, 2147483648
    %v2829 = vxor.u32 %v2804, 2147483648
    %v2830 = vxor.u32 %v2806, 2147483648
    %v2831 = vxor.u32 %v2808, 2147483648
    %v2832 = vxor.u32 %v2810, 2147483648
    %v2833 = vxor.u32 %v2812, 2147483648
    %v2834 = vxor.u32 %v2814, 2147483648
    %v2835 = vxor.u32 %v2816, 2147483648
    %v2836 = vxor.u32 %v2818, 2147483648
    %v2837 = vxor.u32 %v2820, 2147483648
    %v2838 = vxor.u32 %v2822, 2147483648
    %v2839 = vmul.f32 %v2823, 1.442695
    %v2840 = vpow.pop %v2839
    %v2841 = vmul.f32 %v2824, 1.442695
    %v2842 = vpow.pop %v2841
    %v2843 = vmul.f32 %v2825, 1.442695
    %v2844 = vpow.pop %v2843
    %v2845 = vmul.f32 %v2826, 1.442695
    %v2846 = vpow.pop %v2845
    %v2847 = vmul.f32 %v2827, 1.442695
    %v2848 = vpow.pop %v2847
    %v2849 = vmul.f32 %v2828, 1.442695
    %v2850 = vpow.pop %v2849
    %v2851 = vmul.f32 %v2829, 1.442695
    %v2852 = vpow.pop %v2851
    %v2853 = vmul.f32 %v2830, 1.442695
    %v2854 = vpow.pop %v2853
    %v2855 = vmul.f32 %v2831, 1.442695
    %v2856 = vpow.pop %v2855
    %v2857 = vmul.f32 %v2832, 1.442695
    %v2858 = vpow.pop %v2857
    %v2859 = vmul.f32 %v2833, 1.442695
    %v2860 = vpow.pop %v2859
    %v2861 = vmul.f32 %v2834, 1.442695
    %v2862 = vpow.pop %v2861
    %v2863 = vmul.f32 %v2835, 1.442695
    %v2864 = vpow.pop %v2863
    %v2865 = vmul.f32 %v2836, 1.442695
    %v2866 = vpow.pop %v2865
    %v2867 = vmul.f32 %v2837, 1.442695
    %v2868 = vpow.pop %v2867
    %v2869 = vmul.f32 %v2838, 1.442695
    %v2870 = vpow.pop %v2869
    %v2871 = vadd.f32 %v2840, 1.0
    %v2872 = vadd.f32 %v2842, 1.0
    %v2873 = vadd.f32 %v2844, 1.0
    %v2874 = vadd.f32 %v2846, 1.0
    %v2875 = vadd.f32 %v2848, 1.0
    %v2876 = vadd.f32 %v2850, 1.0
    %v2877 = vadd.f32 %v2852, 1.0
    %v2878 = vadd.f32 %v2854, 1.0
    %v2879 = vadd.f32 %v2856, 1.0
    %v2880 = vadd.f32 %v2858, 1.0
    %v2881 = vadd.f32 %v2860, 1.0
    %v2882 = vadd.f32 %v2862, 1.0
    %v2883 = vadd.f32 %v2864, 1.0
    %v2884 = vadd.f32 %v2866, 1.0
    %v2885 = vadd.f32 %v2868, 1.0
    %v2886 = vadd.f32 %v2870, 1.0
    %v2887 = vrcp.pop %v2871
    %v2888 = vmul.f32 %v2871, %v2887
    %v2889 = vsub.f32 1.0, %v2888
    %v2890 = vmul.f32 %v2887, %v2889
    %v2891 = vadd.f32 %v2887, %v2890
    %vm2892 = vweird.f32 %v2871
    %vm2893 = vweird.f32 %v2887
    %vm2894 = vmor %vm2892, %vm2893
    %v2895 = vsel %vm2894, %v2887, %v2891
    %v2896 = vand.u32 2147483647, %v2871
    %vm2897 = vcmp.eq.f32.partialorder %v2896, 8.507059e+37
    %v2898 = vand.u32 %v2871, 2147483648
    %v2899 = vor.u32 1.1754944e-38, %v2898
    %v2900 = vsel %vm2897, %v2899, %v2895
    %v2901 = vmul.f32 1.0, %v2900
    %v2902 = vrcp.pop %v2872
    %v2903 = vmul.f32 %v2872, %v2902
    %v2904 = vsub.f32 1.0, %v2903
    %v2905 = vmul.f32 %v2902, %v2904
    %v2906 = vadd.f32 %v2902, %v2905
    %vm2907 = vweird.f32 %v2872
    %vm2908 = vweird.f32 %v2902
    %vm2909 = vmor %vm2907, %vm2908
    %v2910 = vsel %vm2909, %v2902, %v2906
    %v2911 = vand.u32 2147483647, %v2872
    %vm2912 = vcmp.eq.f32.partialorder %v2911, 8.507059e+37
    %v2913 = vand.u32 %v2872, 2147483648
    %v2914 = vor.u32 1.1754944e-38, %v2913
    %v2915 = vsel %vm2912, %v2914, %v2910
    %v2916 = vmul.f32 1.0, %v2915
    %v2917 = vrcp.pop %v2873
    %v2918 = vmul.f32 %v2873, %v2917
    %v2919 = vsub.f32 1.0, %v2918
    %v2920 = vmul.f32 %v2917, %v2919
    %v2921 = vadd.f32 %v2917, %v2920
    %vm2922 = vweird.f32 %v2873
    %vm2923 = vweird.f32 %v2917
    %vm2924 = vmor %vm2922, %vm2923
    %v2925 = vsel %vm2924, %v2917, %v2921
    %v2926 = vand.u32 2147483647, %v2873
    %vm2927 = vcmp.eq.f32.partialorder %v2926, 8.507059e+37
    %v2928 = vand.u32 %v2873, 2147483648
    %v2929 = vor.u32 1.1754944e-38, %v2928
    %v2930 = vsel %vm2927, %v2929, %v2925
    %v2931 = vmul.f32 1.0, %v2930
    %v2932 = vrcp.pop %v2874
    %v2933 = vmul.f32 %v2874, %v2932
    %v2934 = vsub.f32 1.0, %v2933
    %v2935 = vmul.f32 %v2932, %v2934
    %v2936 = vadd.f32 %v2932, %v2935
    %vm2937 = vweird.f32 %v2874
    %vm2938 = vweird.f32 %v2932
    %vm2939 = vmor %vm2937, %vm2938
    %v2940 = vsel %vm2939, %v2932, %v2936
    %v2941 = vand.u32 2147483647, %v2874
    %vm2942 = vcmp.eq.f32.partialorder %v2941, 8.507059e+37
    %v2943 = vand.u32 %v2874, 2147483648
    %v2944 = vor.u32 1.1754944e-38, %v2943
    %v2945 = vsel %vm2942, %v2944, %v2940
    %v2946 = vmul.f32 1.0, %v2945
    %v2947 = vrcp.pop %v2875
    %v2948 = vmul.f32 %v2875, %v2947
    %v2949 = vsub.f32 1.0, %v2948
    %v2950 = vmul.f32 %v2947, %v2949
    %v2951 = vadd.f32 %v2947, %v2950
    %vm2952 = vweird.f32 %v2875
    %vm2953 = vweird.f32 %v2947
    %vm2954 = vmor %vm2952, %vm2953
    %v2955 = vsel %vm2954, %v2947, %v2951
    %v2956 = vand.u32 2147483647, %v2875
    %vm2957 = vcmp.eq.f32.partialorder %v2956, 8.507059e+37
    %v2958 = vand.u32 %v2875, 2147483648
    %v2959 = vor.u32 1.1754944e-38, %v2958
    %v2960 = vsel %vm2957, %v2959, %v2955
    %v2961 = vmul.f32 1.0, %v2960
    %v2962 = vrcp.pop %v2876
    %v2963 = vmul.f32 %v2876, %v2962
    %v2964 = vsub.f32 1.0, %v2963
    %v2965 = vmul.f32 %v2962, %v2964
    %v2966 = vadd.f32 %v2962, %v2965
    %vm2967 = vweird.f32 %v2876
    %vm2968 = vweird.f32 %v2962
    %vm2969 = vmor %vm2967, %vm2968
    %v2970 = vsel %vm2969, %v2962, %v2966
    %v2971 = vand.u32 2147483647, %v2876
    %vm2972 = vcmp.eq.f32.partialorder %v2971, 8.507059e+37
    %v2973 = vand.u32 %v2876, 2147483648
    %v2974 = vor.u32 1.1754944e-38, %v2973
    %v2975 = vsel %vm2972, %v2974, %v2970
    %v2976 = vmul.f32 1.0, %v2975
    %v2977 = vrcp.pop %v2877
    %v2978 = vmul.f32 %v2877, %v2977
    %v2979 = vsub.f32 1.0, %v2978
    %v2980 = vmul.f32 %v2977, %v2979
    %v2981 = vadd.f32 %v2977, %v2980
    %vm2982 = vweird.f32 %v2877
    %vm2983 = vweird.f32 %v2977
    %vm2984 = vmor %vm2982, %vm2983
    %v2985 = vsel %vm2984, %v2977, %v2981
    %v2986 = vand.u32 2147483647, %v2877
    %vm2987 = vcmp.eq.f32.partialorder %v2986, 8.507059e+37
    %v2988 = vand.u32 %v2877, 2147483648
    %v2989 = vor.u32 1.1754944e-38, %v2988
    %v2990 = vsel %vm2987, %v2989, %v2985
    %v2991 = vmul.f32 1.0, %v2990
    %v2992 = vrcp.pop %v2878
    %v2993 = vmul.f32 %v2878, %v2992
    %v2994 = vsub.f32 1.0, %v2993
    %v2995 = vmul.f32 %v2992, %v2994
    %v2996 = vadd.f32 %v2992, %v2995
    %vm2997 = vweird.f32 %v2878
    %vm2998 = vweird.f32 %v2992
    %vm2999 = vmor %vm2997, %vm2998
    %v3000 = vsel %vm2999, %v2992, %v2996
    %v3001 = vand.u32 2147483647, %v2878
    %vm3002 = vcmp.eq.f32.partialorder %v3001, 8.507059e+37
    %v3003 = vand.u32 %v2878, 2147483648
    %v3004 = vor.u32 1.1754944e-38, %v3003
    %v3005 = vsel %vm3002, %v3004, %v3000
    %v3006 = vmul.f32 1.0, %v3005
    %v3007 = vrcp.pop %v2879
    %v3008 = vmul.f32 %v2879, %v3007
    %v3009 = vsub.f32 1.0, %v3008
    %v3010 = vmul.f32 %v3007, %v3009
    %v3011 = vadd.f32 %v3007, %v3010
    %vm3012 = vweird.f32 %v2879
    %vm3013 = vweird.f32 %v3007
    %vm3014 = vmor %vm3012, %vm3013
    %v3015 = vsel %vm3014, %v3007, %v3011
    %v3016 = vand.u32 2147483647, %v2879
    %vm3017 = vcmp.eq.f32.partialorder %v3016, 8.507059e+37
    %v3018 = vand.u32 %v2879, 2147483648
    %v3019 = vor.u32 1.1754944e-38, %v3018
    %v3020 = vsel %vm3017, %v3019, %v3015
    %v3021 = vmul.f32 1.0, %v3020
    %v3022 = vrcp.pop %v2880
    %v3023 = vmul.f32 %v2880, %v3022
    %v3024 = vsub.f32 1.0, %v3023
    %v3025 = vmul.f32 %v3022, %v3024
    %v3026 = vadd.f32 %v3022, %v3025
    %vm3027 = vweird.f32 %v2880
    %vm3028 = vweird.f32 %v3022
    %vm3029 = vmor %vm3027, %vm3028
    %v3030 = vsel %vm3029, %v3022, %v3026
    %v3031 = vand.u32 2147483647, %v2880
    %vm3032 = vcmp.eq.f32.partialorder %v3031, 8.507059e+37
    %v3033 = vand.u32 %v2880, 2147483648
    %v3034 = vor.u32 1.1754944e-38, %v3033
    %v3035 = vsel %vm3032, %v3034, %v3030
    %v3036 = vmul.f32 1.0, %v3035
    %v3037 = vrcp.pop %v2881
    %v3038 = vmul.f32 %v2881, %v3037
    %v3039 = vsub.f32 1.0, %v3038
    %v3040 = vmul.f32 %v3037, %v3039
    %v3041 = vadd.f32 %v3037, %v3040
    %vm3042 = vweird.f32 %v2881
    %vm3043 = vweird.f32 %v3037
    %vm3044 = vmor %vm3042, %vm3043
    %v3045 = vsel %vm3044, %v3037, %v3041
    %v3046 = vand.u32 2147483647, %v2881
    %vm3047 = vcmp.eq.f32.partialorder %v3046, 8.507059e+37
    %v3048 = vand.u32 %v2881, 2147483648
    %v3049 = vor.u32 1.1754944e-38, %v3048
    %v3050 = vsel %vm3047, %v3049, %v3045
    %v3051 = vmul.f32 1.0, %v3050
    %v3052 = vrcp.pop %v2882
    %v3053 = vmul.f32 %v2882, %v3052
    %v3054 = vsub.f32 1.0, %v3053
    %v3055 = vmul.f32 %v3052, %v3054
    %v3056 = vadd.f32 %v3052, %v3055
    %vm3057 = vweird.f32 %v2882
    %vm3058 = vweird.f32 %v3052
    %vm3059 = vmor %vm3057, %vm3058
    %v3060 = vsel %vm3059, %v3052, %v3056
    %v3061 = vand.u32 2147483647, %v2882
    %vm3062 = vcmp.eq.f32.partialorder %v3061, 8.507059e+37
    %v3063 = vand.u32 %v2882, 2147483648
    %v3064 = vor.u32 1.1754944e-38, %v3063
    %v3065 = vsel %vm3062, %v3064, %v3060
    %v3066 = vmul.f32 1.0, %v3065
    %v3067 = vrcp.pop %v2883
    %v3068 = vmul.f32 %v2883, %v3067
    %v3069 = vsub.f32 1.0, %v3068
    %v3070 = vmul.f32 %v3067, %v3069
    %v3071 = vadd.f32 %v3067, %v3070
    %vm3072 = vweird.f32 %v2883
    %vm3073 = vweird.f32 %v3067
    %vm3074 = vmor %vm3072, %vm3073
    %v3075 = vsel %vm3074, %v3067, %v3071
    %v3076 = vand.u32 2147483647, %v2883
    %vm3077 = vcmp.eq.f32.partialorder %v3076, 8.507059e+37
    %v3078 = vand.u32 %v2883, 2147483648
    %v3079 = vor.u32 1.1754944e-38, %v3078
    %v3080 = vsel %vm3077, %v3079, %v3075
    %v3081 = vmul.f32 1.0, %v3080
    %v3082 = vrcp.pop %v2884
    %v3083 = vmul.f32 %v2884, %v3082
    %v3084 = vsub.f32 1.0, %v3083
    %v3085 = vmul.f32 %v3082, %v3084
    %v3086 = vadd.f32 %v3082, %v3085
    %vm3087 = vweird.f32 %v2884
    %vm3088 = vweird.f32 %v3082
    %vm3089 = vmor %vm3087, %vm3088
    %v3090 = vsel %vm3089, %v3082, %v3086
    %v3091 = vand.u32 2147483647, %v2884
    %vm3092 = vcmp.eq.f32.partialorder %v3091, 8.507059e+37
    %v3093 = vand.u32 %v2884, 2147483648
    %v3094 = vor.u32 1.1754944e-38, %v3093
    %v3095 = vsel %vm3092, %v3094, %v3090
    %v3096 = vmul.f32 1.0, %v3095
    %v3097 = vrcp.pop %v2885
    %v3098 = vmul.f32 %v2885, %v3097
    %v3099 = vsub.f32 1.0, %v3098
    %v3100 = vmul.f32 %v3097, %v3099
    %v3101 = vadd.f32 %v3097, %v3100
    %vm3102 = vweird.f32 %v2885
    %vm3103 = vweird.f32 %v3097
    %vm3104 = vmor %vm3102, %vm3103
    %v3105 = vsel %vm3104, %v3097, %v3101
    %v3106 = vand.u32 2147483647, %v2885
    %vm3107 = vcmp.eq.f32.partialorder %v3106, 8.507059e+37
    %v3108 = vand.u32 %v2885, 2147483648
    %v3109 = vor.u32 1.1754944e-38, %v3108
    %v3110 = vsel %vm3107, %v3109, %v3105
    %v3111 = vmul.f32 1.0, %v3110
    %v3112 = vrcp.pop %v2886
    %v3113 = vmul.f32 %v2886, %v3112
    %v3114 = vsub.f32 1.0, %v3113
    %v3115 = vmul.f32 %v3112, %v3114
    %v3116 = vadd.f32 %v3112, %v3115
    %vm3117 = vweird.f32 %v2886
    %vm3118 = vweird.f32 %v3112
    %vm3119 = vmor %vm3117, %vm3118
    %v3120 = vsel %vm3119, %v3112, %v3116
    %v3121 = vand.u32 2147483647, %v2886
    %vm3122 = vcmp.eq.f32.partialorder %v3121, 8.507059e+37
    %v3123 = vand.u32 %v2886, 2147483648
    %v3124 = vor.u32 1.1754944e-38, %v3123
    %v3125 = vsel %vm3122, %v3124, %v3120
    %v3126 = vmul.f32 1.0, %v3125
    %v3143 = vlaneseq
    %v3144 = vand.u32 %v3143, 127
    %v3145 = vperm.slane %v2901, %v3144
    %v3146 = vadd.s32 %v3144, 4294967288
    %v3147 = vperm.slane %v2916, %v3146
    %vm3148 = vcmask 130112
    %v3149 = vsel %vm3148, %v3147, %v3145
    %v3150 = vadd.s32 %v3144, 4294967280
    %v3151 = vperm.slane %v2931, %v3150
    %vm3152 = vcmask 195712
    %v3153 = vsel %vm3152, %v3151, %v3149
    %v3154 = vadd.s32 %v3144, 4294967272
    %v3155 = vperm.slane %v2946, %v3154
    %vm3156 = vcmask 261312
    %v3157 = vsel %vm3156, %v3155, %v3153
    %v3158 = vadd.s32 %v3144, 4294967264
    %v3159 = vperm.slane %v2961, %v3158
    %vm3160 = vcmask 326912
    %v3161 = vsel %vm3160, %v3159, %v3157
    %v3162 = vadd.s32 %v3144, 4294967256
    %v3163 = vperm.slane %v2976, %v3162
    %vm3164 = vcmask 392512
    %v3165 = vsel %vm3164, %v3163, %v3161
    %v3166 = vadd.s32 %v3144, 4294967248
    %v3167 = vperm.slane %v2991, %v3166
    %vm3168 = vcmask 458112
    %v3169 = vsel %vm3168, %v3167, %v3165
    %v3170 = vadd.s32 %v3144, 4294967240
    %v3171 = vperm.slane %v3006, %v3170
    %vm3172 = vcmask 523712
    %v3173 = vsel %vm3172, %v3171, %v3169
    %v3174 = vadd.s32 %v3144, 4294967232
    %v3175 = vperm.slane %v3021, %v3174
    %vm3176 = vcmask 589312
    %v3177 = vsel %vm3176, %v3175, %v3173
    %v3178 = vadd.s32 %v3144, 4294967224
    %v3179 = vperm.slane %v3036, %v3178
    %vm3180 = vcmask 654912
    %v3181 = vsel %vm3180, %v3179, %v3177
    %v3182 = vadd.s32 %v3144, 4294967216
    %v3183 = vperm.slane %v3051, %v3182
    %vm3184 = vcmask 720512
    %v3185 = vsel %vm3184, %v3183, %v3181
    %v3186 = vadd.s32 %v3144, 4294967208
    %v3187 = vperm.slane %v3066, %v3186
    %vm3188 = vcmask 786112
    %v3189 = vsel %vm3188, %v3187, %v3185
    %v3190 = vadd.s32 %v3144, 4294967200
    %v3191 = vperm.slane %v3081, %v3190
    %vm3192 = vcmask 851712
    %v3193 = vsel %vm3192, %v3191, %v3189
    %v3194 = vadd.s32 %v3144, 4294967192
    %v3195 = vperm.slane %v3096, %v3194
    %vm3196 = vcmask 917312
    %v3197 = vsel %vm3196, %v3195, %v3193
    %v3198 = vadd.s32 %v3144, 4294967184
    %v3199 = vperm.slane %v3111, %v3198
    %vm3200 = vcmask 982912
    %v3201 = vsel %vm3200, %v3199, %v3197
    %v3202 = vadd.s32 %v3144, 4294967176
    %v3203 = vperm.slane %v3126, %v3202
    %vm3204 = vcmask 1048512
    %v3205 = vsel %vm3204, %v3203, %v3201
    %3207 = vst [vmem:[#allocation7] sm:$0x1] %v3205
    // Predicated region
    $region58: #{net_forward.1} parent=1 // pred_check
      _
    $region59: #{net_forward.1} parent=1 // pred_check_branch
      %3209 = sbr.rel (0) target = $region61
    $region60: #{net_forward.1} parent=1 // pred_region
      %3211 = vsyncadd [#allocation4], 0
      %s3213 = sshll.u32 [#allocation7], 4
      %s3214 = int_to_ptr.vmem [resolvable:$true] %s3213
      %s3215 = sshll.u32 %s12, 4
      %s3216 = int_to_ptr.hbm [resolvable:$true] %s3215
      %3218 = dma.vmem_to_hbm [thread:$0]  %s3214, 16, %s3216, [#allocation4]
    $region61: #{net_forward.1} parent=1 // pred_fallthru
      _
    // Predicated region
    $region62: #{net_forward.1} parent=1 // pred_check
      _
    $region63: #{net_forward.1} parent=1 // pred_check_branch
      %3220 = sbr.rel (0) target = $region65
    $region64: #{net_forward.1} parent=1 // pred_region
      %3222 = dma.done [#allocation4], 16
    $region65: #{net_forward.1} parent=1 // pred_fallthru
      _
    %3223 = vsyncpa [#allocation3], 1
    %3224 = vsyncpa [#allocation6], 1
    %3225 = vsyncpa [#allocation4], 1

</llo_original>
